<compile_context>
chip_gen: v5e
topology: v5e:2x2
jax: 0.10.0
libtpu: 0.0.40
codegen_flags: <defaults>
</compile_context>

<pallas_src>
import functools

import numpy as np
import jax
import jax.numpy as jnp
from jax.experimental import pallas as pl
from jax.experimental.pallas import tpu as pltpu

_LANE = 128   # lane width: feature / hidden / class axes padded to this


def _round_up(x, m):
    return ((x + m - 1) // m) * m


def _pad2d(x, rows, cols):
    r, c = x.shape
    return jnp.pad(x, ((0, rows - r), (0, cols - c)))


def _choose_tiles(n):
    """Pick (tile_m, tile_k), both multiples of 128.

    tile_m grows up to 512 (amortizes the re-streamed RHS + ~0.35us/step grid
    overhead on this HBM-bound aggregation) while keeping >= 2 row blocks so
    both v7x TensorCores get work.  tile_k = 256 fills the 2x256x256 MXU depth
    on v6e/v7x; on v5e (4x128^2 MXU) it is neutral.
    """
    n128 = _round_up(n, 128)
    tile_m = 128
    while tile_m < 512 and n128 // (tile_m * 2) >= 2:
        tile_m *= 2
    tile_k = min(256, n128)
    return tile_m, tile_k


def _block_sparse_schedule(a_np, tile_m, tile_k):
    """Host-side per-row-block list of nonzero source blocks + counts.

    Padded entries repeat the last valid block index so the pipelined DMA
    revisits the same block (no extra HBM traffic); their accumulate is
    masked off in the kernel with pl.when(k < count).
    """
    n = a_np.shape[0]
    nmb, nkb = n // tile_m, n // tile_k
    mask = (a_np.reshape(nmb, tile_m, nkb, tile_k) != 0).any(axis=(1, 3))
    counts = mask.sum(axis=1).astype(np.int32)
    max_nnz = max(int(counts.max()), 1)
    bids = np.zeros((nmb, max_nnz), np.int32)
    for i in range(nmb):
        idx = np.nonzero(mask[i])[0].astype(np.int32)
        if idx.size == 0:                      # fully padded row block
            idx = np.zeros((1,), np.int32)
        bids[i, : idx.size] = idx
        bids[i, idx.size:] = idx[-1]
    return jnp.asarray(bids), jnp.asarray(counts), max_nnz


# ---------------------------------------------------------------------------
# Layer 1 (fused):  HW2 = relu( A_norm @ (X @ W1) + b1 ) @ W2
# ---------------------------------------------------------------------------
def _layer1_kernel(bid_ref, cnt_ref, a_ref, x_ref, w1_ref, b1_ref, w2_ref,
                   o_ref, acc_ref):
    i = pl.program_id(0)
    k = pl.program_id(1)
    count = cnt_ref[i]

    def contrib():
        # on-the-fly feature transform (X_k @ W1), then aggregate with A_ik;
        # recompute per row block is free: kernel sits far below MXU roofline.
        xw = jnp.dot(x_ref[...], w1_ref[...],
                     preferred_element_type=jnp.float32).astype(jnp.bfloat16)
        return jnp.dot(a_ref[...], xw, preferred_element_type=jnp.float32)

    @pl.when(k == 0)                       # first block: write, no zero+add pass
    def _():
        acc_ref[...] = contrib()

    @pl.when(jnp.logical_and(k > 0, k < count))
    def _():
        acc_ref[...] += contrib()

    @pl.when(k == pl.num_programs(1) - 1)  # finalize: bias + ReLU + W2 projection
    def _():
        h = jnp.maximum(acc_ref[...] + b1_ref[...], 0.0)        # f32 elementwise
        o_ref[...] = jnp.dot(h.astype(jnp.bfloat16), w2_ref[...],
                             preferred_element_type=jnp.float32
                             ).astype(o_ref.dtype)


def _layer1(a_p, x_p, w1_p, b1_p, w2_p, bids, counts, tile_m, tile_k):
    n_p = a_p.shape[0]
    f_p = x_p.shape[1]
    h_p = w1_p.shape[1]
    c_p = w2_p.shape[1]
    max_nnz = bids.shape[1]
    return pl.pallas_call(
        _layer1_kernel,
        out_shape=jax.ShapeDtypeStruct((n_p, c_p), jnp.bfloat16),
        grid_spec=pltpu.PrefetchScalarGridSpec(
            num_scalar_prefetch=2,
            grid=(n_p // tile_m, max_nnz),
            in_specs=[
                pl.BlockSpec((tile_m, tile_k),
                             lambda i, k, bid, cnt: (i, bid[i, k])),   # A_norm
                pl.BlockSpec((tile_k, f_p),
                             lambda i, k, bid, cnt: (bid[i, k], 0)),   # X
                pl.BlockSpec((f_p, h_p), lambda i, k, bid, cnt: (0, 0)),   # W1
                pl.BlockSpec((1, h_p), lambda i, k, bid, cnt: (0, 0)),     # b1
                pl.BlockSpec((h_p, c_p), lambda i, k, bid, cnt: (0, 0)),   # W2
            ],
            out_specs=pl.BlockSpec((tile_m, c_p),
                                   lambda i, k, bid, cnt: (i, 0)),
            scratch_shapes=[pltpu.VMEM((tile_m, h_p), jnp.float32)],
        ),
        compiler_params=pltpu.CompilerParams(
            dimension_semantics=("parallel", "arbitrary")),
    )(bids, counts, a_p, x_p, w1_p, b1_p, w2_p)


# ---------------------------------------------------------------------------
# Layer 2:  out = log_softmax( A_norm @ HW2 + b2 , dim=1 )
# ---------------------------------------------------------------------------
def _layer2_kernel(bid_ref, cnt_ref, a_ref, hw_ref, b2_ref, o_ref, acc_ref, *,
                   valid_cols):
    i = pl.program_id(0)
    k = pl.program_id(1)
    count = cnt_ref[i]

    def contrib():
        return jnp.dot(a_ref[...], hw_ref[...],
                       preferred_element_type=jnp.float32)

    @pl.when(k == 0)
    def _():
        acc_ref[...] = contrib()

    @pl.when(jnp.logical_and(k > 0, k < count))
    def _():
        acc_ref[...] += contrib()

    @pl.when(k == pl.num_programs(1) - 1)
    def _():
        z = acc_ref[...] + b2_ref[...]                     # f32
        lane = jax.lax.broadcasted_iota(jnp.int32, z.shape, 1)
        valid = lane < valid_cols
        zm = jnp.where(valid, z, -1e30)                    # f32-only mask math
        m = jnp.max(zm, axis=1, keepdims=True)
        lse = m + jnp.log(jnp.sum(jnp.exp(zm - m), axis=1, keepdims=True))
        o_ref[...] = jnp.where(valid, z - lse, 0.0).astype(o_ref.dtype)


def _layer2(a_p, hw2, b2_p, bids, counts, tile_m, tile_k, num_classes):
    n_p = a_p.shape[0]
    c_p = hw2.shape[1]
    max_nnz = bids.shape[1]
    kernel = functools.partial(_layer2_kernel, valid_cols=num_classes)
    return pl.pallas_call(
        kernel,
        out_shape=jax.ShapeDtypeStruct((n_p, c_p), jnp.float32),
        grid_spec=pltpu.PrefetchScalarGridSpec(
            num_scalar_prefetch=2,
            grid=(n_p // tile_m, max_nnz),
            in_specs=[
                pl.BlockSpec((tile_m, tile_k),
                             lambda i, k, bid, cnt: (i, bid[i, k])),   # A_norm
                pl.BlockSpec((tile_k, c_p),
                             lambda i, k, bid, cnt: (bid[i, k], 0)),   # HW2
                pl.BlockSpec((1, c_p), lambda i, k, bid, cnt: (0, 0)), # b2
            ],
            out_specs=pl.BlockSpec((tile_m, c_p),
                                   lambda i, k, bid, cnt: (i, 0)),
            scratch_shapes=[pltpu.VMEM((tile_m, c_p), jnp.float32)],
        ),
        compiler_params=pltpu.CompilerParams(
            dimension_semantics=("parallel", "arbitrary")),
    )(bids, counts, a_p, hw2, b2_p)


# ---------------------------------------------------------------------------
# Full forward: GCN1 -> ReLU -> dropout(eval) -> GCN2 -> log_softmax
# ---------------------------------------------------------------------------
def gcn_forward(a_norm, x, w1, b1, w2, b2, *, tile_m=None, tile_k=None):
    n, f = x.shape
    hidden = w1.shape[1]
    classes = w2.shape[1]

    tm, tk = _choose_tiles(n)
    tile_m = tile_m or tm
    tile_k = tile_k or tk

    n_p = _round_up(n, max(tile_m, tile_k))
    f_p = _round_up(f, _LANE)
    h_p = _round_up(hidden, _LANE)
    c_p = _round_up(classes, _LANE)

    # bf16 MXU operands (zero padding -> padded rows/cols are inert)
    a_f32 = _pad2d(a_norm, n_p, n_p)
    a_p = a_f32.astype(jnp.bfloat16)
    x_p = _pad2d(x, n_p, f_p).astype(jnp.bfloat16)
    w1_p = _pad2d(w1, f_p, h_p).astype(jnp.bfloat16)
    w2_p = _pad2d(w2, h_p, c_p).astype(jnp.bfloat16)
    # biases / elementwise path stay f32
    b1_p = _pad2d(b1, 1, h_p).astype(jnp.float32)
    b2_p = _pad2d(b2, 1, c_p).astype(jnp.float32)

    # Block-sparsity schedule (host side), shared by both layers.
    # TODO(synk): for huge graphs build this directly from edge_index instead of
    #             materializing a dense N x N adjacency on the host path.
    bids, counts, _ = _block_sparse_schedule(np.asarray(a_f32), tile_m, tile_k)

    # ---- GCN layer 1 (fused transform + aggregate + ReLU + W2 projection) ----
    hw2 = _layer1(a_p, x_p, w1_p, b1_p, w2_p, bids, counts, tile_m, tile_k)

    # ---- Dropout: identity in eval mode ----
    # TODO(synk): training-mode dropout needs pltpu.prng_seed +
    #             pltpu.stateful_bernoulli on the hidden activations (and would
    #             un-fuse the W2 projection); forward here matches eval semantics.

    # ---- GCN layer 2 (aggregate + bias + masked log-softmax) ----
    out = _layer2(a_p, hw2, b2_p, bids, counts, tile_m, tile_k, classes)

    return out[:n, :classes]


# ---------------------------------------------------------------------------
# Graph / parameter construction + pure-JAX reference
# ---------------------------------------------------------------------------
def build_normalized_adjacency(edge_index, num_nodes):
    """Dense PyG-style gcn_norm: D^{-1/2} (A + I) D^{-1/2}, A[dst, src] = 1."""
    src, dst = edge_index[0], edge_index[1]
    adj = jnp.zeros((num_nodes, num_nodes), jnp.float32)
    adj = adj.at[dst, src].set(1.0)
    adj = adj + jnp.eye(num_nodes, dtype=jnp.float32)  # self loops
    deg = jnp.sum(adj, axis=1)
    dinv = jax.lax.rsqrt(deg)
    return dinv[:, None] * adj * dinv[None, :]


def glorot(key, shape):
    fan_in, fan_out = shape
    limit = jnp.sqrt(6.0 / (fan_in + fan_out))
    return jax.random.uniform(key, shape, jnp.float32, -limit, limit)


def reference_forward(a_norm, x, w1, b1, w2, b2):
    h = jnp.maximum(a_norm @ (x @ w1) + b1, 0.0)
    z = a_norm @ (h @ w2) + b2
    return jax.nn.log_softmax(z, axis=1)


if __name__ == "__main__":
    key = jax.random.PRNGKey(0)

    num_nodes = 1024           # -> tile_m=512, tile_k=256: 2 'parallel' row blocks
    num_features = 4
    num_classes = 3
    hidden = num_features * 3  # GCNConv(num_features, num_features * 3)

    k_x, k_w1, k_w2 = jax.random.split(key, 3)

    # Node features
    x = jax.random.normal(k_x, (num_nodes, num_features), jnp.float32)

    # Simple undirected ring graph as edge_index (2, E)
    s = jnp.arange(num_nodes, dtype=jnp.int32)
    d = (s + 1) % num_nodes
    edge_index = jnp.stack(
        [jnp.concatenate([s, d]), jnp.concatenate([d, s])], axis=0
    )

    # Parameters (GCNConv: glorot weight, zero bias), deterministic init
    w1 = glorot(k_w1, (num_features, hidden))
    b1 = jnp.zeros((1, hidden), jnp.float32)
    w2 = glorot(k_w2, (hidden, num_classes))
    b2 = jnp.zeros((1, num_classes), jnp.float32)

    a_norm = build_normalized_adjacency(edge_index, num_nodes)

    out = gcn_forward(a_norm, x, w1, b1, w2, b2)
    jax.block_until_ready(out)

    assert out.shape == (num_nodes, num_classes)

    # rows of log_softmax output must exp-sum to 1
    row_sums = jnp.exp(out).sum(axis=1)
    assert bool(jnp.all(jnp.abs(row_sums - 1.0) < 1e-3))

    # compare against a pure-JAX f32 reference (bf16 MXU operands -> loose tol)
    ref = reference_forward(a_norm, x, w1, b1, w2, b2)
    max_err = float(jnp.max(jnp.abs(out - ref)))
    assert max_err < 0.15, f"max abs err vs reference: {max_err}"

    print("KERNEL_OK")
</pallas_src>

<mosaic_0001>
module attributes {stable_mosaic.version = 11 : i64} {
  func.func @_layer1_kernel(%arg0: i32, %arg1: i32, %arg2: memref<2x4xi32, #tpu.memory_space<smem>>, %arg3: memref<2xi32, #tpu.memory_space<smem>>, %arg4: memref<512x256xbf16, #tpu.memory_space<vmem>>, %arg5: memref<256x128xbf16, #tpu.memory_space<vmem>>, %arg6: memref<128x128xbf16, #tpu.memory_space<vmem>>, %arg7: memref<1x128xf32, #tpu.memory_space<vmem>>, %arg8: memref<128x128xbf16, #tpu.memory_space<vmem>>, %arg9: memref<512x128xbf16, #tpu.memory_space<vmem>>, %arg10: memref<512x128xf32, #tpu.memory_space<vmem>>) attributes {dimension_semantics = [#tpu.dimension_semantics<parallel>, #tpu.dimension_semantics<arbitrary>], iteration_bounds = array<i64: 2, 4>, scalar_prefetch = 2 : i64, scratch_operands = 1 : i64, tpu.core_type = #tpu.core_type<tc>, window_params = [{transform_indices = @transform_0, window_bounds = array<i64: 512, 256>}, {transform_indices = @transform_1, window_bounds = array<i64: 256, 128>}, {pipeline_mode = #tpu.pipeline_mode<synchronous>, transform_indices = @transform_2, window_bounds = array<i64: 128, 128>}, {pipeline_mode = #tpu.pipeline_mode<synchronous>, transform_indices = @transform_3, window_bounds = array<i64: 1, 128>}, {pipeline_mode = #tpu.pipeline_mode<synchronous>, transform_indices = @transform_4, window_bounds = array<i64: 128, 128>}, {transform_indices = @transform_5, window_bounds = array<i64: 512, 128>}]} {
    %0 = arith.index_cast %arg0 : i32 to index
    %1 = memref.load %arg3[%0] : memref<2xi32, #tpu.memory_space<smem>>
    %c0_i32 = arith.constant 0 : i32
    %2 = arith.cmpi eq, %arg1, %c0_i32 : i32
    %3 = arith.extui %2 : i1 to i32
    %c0_i32_0 = arith.constant 0 : i32
    %4 = arith.cmpi ne, %3, %c0_i32_0 : i32
    scf.if %4 {
      %c0 = arith.constant 0 : index
      %c0_4 = arith.constant 0 : index
      %13 = vector.load %arg5[%c0, %c0_4] : memref<256x128xbf16, #tpu.memory_space<vmem>>, vector<256x128xbf16>
      %c0_5 = arith.constant 0 : index
      %c0_6 = arith.constant 0 : index
      %14 = vector.load %arg6[%c0_5, %c0_6] : memref<128x128xbf16, #tpu.memory_space<vmem>>, vector<128x128xbf16>
      %cst = arith.constant dense<0.000000e+00> : vector<256x128xf32>
      %15 = tpu.matmul %13, %14, %cst {dimension_numbers = #tpu.dot_dimension_numbers<[1], [0], [0], [1], [0, 0, 1, 1], [], []>} : vector<256x128xbf16>, vector<128x128xbf16>, vector<256x128xf32> -> vector<256x128xf32>
      %16 = arith.truncf %15 : vector<256x128xf32> to vector<256x128xbf16>
      %c0_7 = arith.constant 0 : index
      %c0_8 = arith.constant 0 : index
      %17 = vector.load %arg4[%c0_7, %c0_8] : memref<512x256xbf16, #tpu.memory_space<vmem>>, vector<512x256xbf16>
      %cst_9 = arith.constant dense<0.000000e+00> : vector<512x128xf32>
      %18 = tpu.matmul %17, %16, %cst_9 {dimension_numbers = #tpu.dot_dimension_numbers<[1], [0], [0], [1], [0, 0, 1, 1], [], []>} : vector<512x256xbf16>, vector<256x128xbf16>, vector<512x128xf32> -> vector<512x128xf32>
      %c0_10 = arith.constant 0 : index
      %c0_11 = arith.constant 0 : index
      %19 = vector.load %arg10[%c0_10, %c0_11] : memref<512x128xf32, #tpu.memory_space<vmem>>, vector<512x128xf32>
      tpu.vector_store %arg10[%c0_10, %c0_11], %18 {strides = array<i32>} : memref<512x128xf32, #tpu.memory_space<vmem>>, vector<512x128xf32>,
    } else {
    }
    %c0_i32_1 = arith.constant 0 : i32
    %5 = arith.cmpi sgt, %arg1, %c0_i32_1 : i32
    %6 = arith.cmpi slt, %arg1, %1 : i32
    %7 = arith.andi %5, %6 : i1
    %8 = arith.extui %7 : i1 to i32
    %c0_i32_2 = arith.constant 0 : i32
    %9 = arith.cmpi ne, %8, %c0_i32_2 : i32
    scf.if %9 {
      %c0 = arith.constant 0 : index
      %c0_4 = arith.constant 0 : index
      %13 = vector.load %arg10[%c0, %c0_4] : memref<512x128xf32, #tpu.memory_space<vmem>>, vector<512x128xf32>
      %c0_5 = arith.constant 0 : index
      %c0_6 = arith.constant 0 : index
      %14 = vector.load %arg5[%c0_5, %c0_6] : memref<256x128xbf16, #tpu.memory_space<vmem>>, vector<256x128xbf16>
      %c0_7 = arith.constant 0 : index
      %c0_8 = arith.constant 0 : index
      %15 = vector.load %arg6[%c0_7, %c0_8] : memref<128x128xbf16, #tpu.memory_space<vmem>>, vector<128x128xbf16>
      %cst = arith.constant dense<0.000000e+00> : vector<256x128xf32>
      %16 = tpu.matmul %14, %15, %cst {dimension_numbers = #tpu.dot_dimension_numbers<[1], [0], [0], [1], [0, 0, 1, 1], [], []>} : vector<256x128xbf16>, vector<128x128xbf16>, vector<256x128xf32> -> vector<256x128xf32>
      %17 = arith.truncf %16 : vector<256x128xf32> to vector<256x128xbf16>
      %c0_9 = arith.constant 0 : index
      %c0_10 = arith.constant 0 : index
      %18 = vector.load %arg4[%c0_9, %c0_10] : memref<512x256xbf16, #tpu.memory_space<vmem>>, vector<512x256xbf16>
      %cst_11 = arith.constant dense<0.000000e+00> : vector<512x128xf32>
      %19 = tpu.matmul %18, %17, %cst_11 {dimension_numbers = #tpu.dot_dimension_numbers<[1], [0], [0], [1], [0, 0, 1, 1], [], []>} : vector<512x256xbf16>, vector<256x128xbf16>, vector<512x128xf32> -> vector<512x128xf32>
      %20 = arith.addf %13, %19 : vector<512x128xf32>
      %c0_12 = arith.constant 0 : index
      %c0_13 = arith.constant 0 : index
      %21 = vector.load %arg10[%c0_12, %c0_13] : memref<512x128xf32, #tpu.memory_space<vmem>>, vector<512x128xf32>
      tpu.vector_store %arg10[%c0_12, %c0_13], %20 {strides = array<i32>} : memref<512x128xf32, #tpu.memory_space<vmem>>, vector<512x128xf32>,
    } else {
    }
    %c3_i32 = arith.constant 3 : i32
    %10 = arith.cmpi eq, %arg1, %c3_i32 : i32
    %11 = arith.extui %10 : i1 to i32
    %c0_i32_3 = arith.constant 0 : i32
    %12 = arith.cmpi ne, %11, %c0_i32_3 : i32
    scf.if %12 {
      %c0 = arith.constant 0 : index
      %c0_4 = arith.constant 0 : index
      %13 = vector.load %arg10[%c0, %c0_4] : memref<512x128xf32, #tpu.memory_space<vmem>>, vector<512x128xf32>
      %c0_5 = arith.constant 0 : index
      %c0_6 = arith.constant 0 : index
      %14 = vector.load %arg7[%c0_5, %c0_6] : memref<1x128xf32, #tpu.memory_space<vmem>>, vector<1x128xf32>
      %15 = vector.broadcast %14 : vector<1x128xf32> to vector<512x128xf32>
      %16 = arith.addf %13, %15 : vector<512x128xf32>
      %cst = arith.constant 0.000000e+00 : f32
      %17 = vector.broadcast %cst : f32 to vector<512x128xf32>
      %18 = arith.maximumf %16, %17 : vector<512x128xf32>
      %19 = arith.truncf %18 : vector<512x128xf32> to vector<512x128xbf16>
      %c0_7 = arith.constant 0 : index
      %c0_8 = arith.constant 0 : index
      %20 = vector.load %arg8[%c0_7, %c0_8] : memref<128x128xbf16, #tpu.memory_space<vmem>>, vector<128x128xbf16>
      %cst_9 = arith.constant dense<0.000000e+00> : vector<512x128xf32>
      %21 = tpu.matmul %19, %20, %cst_9 {dimension_numbers = #tpu.dot_dimension_numbers<[1], [0], [0], [1], [0, 0, 1, 1], [], []>} : vector<512x128xbf16>, vector<128x128xbf16>, vector<512x128xf32> -> vector<512x128xf32>
      %22 = arith.truncf %21 : vector<512x128xf32> to vector<512x128xbf16>
      %c0_10 = arith.constant 0 : index
      %c0_11 = arith.constant 0 : index
      %23 = vector.load %arg9[%c0_10, %c0_11] : memref<512x128xbf16, #tpu.memory_space<vmem>>, vector<512x128xbf16>
      tpu.vector_store %arg9[%c0_10, %c0_11], %22 {strides = array<i32>} : memref<512x128xbf16, #tpu.memory_space<vmem>>, vector<512x128xbf16>,
    } else {
    }
    return
  }
  func.func @transform_0(%arg0: i32, %arg1: i32, %arg2: memref<2x4xi32, #tpu.memory_space<smem>>, %arg3: memref<2xi32, #tpu.memory_space<smem>>) -> (i32, i32) {
    %0 = arith.index_cast %arg0 : i32 to index
    %1 = arith.index_cast %arg1 : i32 to index
    %2 = memref.load %arg2[%0, %1] : memref<2x4xi32, #tpu.memory_space<smem>>
    %c0_i32 = arith.constant 0 : i32
    return %arg0, %2 : i32, i32
  }
  func.func @transform_1(%arg0: i32, %arg1: i32, %arg2: memref<2x4xi32, #tpu.memory_space<smem>>, %arg3: memref<2xi32, #tpu.memory_space<smem>>) -> (i32, i32) {
    %0 = arith.index_cast %arg0 : i32 to index
    %1 = arith.index_cast %arg1 : i32 to index
    %2 = memref.load %arg2[%0, %1] : memref<2x4xi32, #tpu.memory_space<smem>>
    %c0_i32 = arith.constant 0 : i32
    %c0_i32_0 = arith.constant 0 : i32
    return %2, %c0_i32 : i32, i32
  }
  func.func @transform_2(%arg0: i32, %arg1: i32, %arg2: memref<2x4xi32, #tpu.memory_space<smem>>, %arg3: memref<2xi32, #tpu.memory_space<smem>>) -> (i32, i32) {
    %c0_i32 = arith.constant 0 : i32
    %c0_i32_0 = arith.constant 0 : i32
    %c0_i32_1 = arith.constant 0 : i32
    return %c0_i32, %c0_i32_0 : i32, i32
  }
  func.func @transform_3(%arg0: i32, %arg1: i32, %arg2: memref<2x4xi32, #tpu.memory_space<smem>>, %arg3: memref<2xi32, #tpu.memory_space<smem>>) -> (i32, i32) {
    %c0_i32 = arith.constant 0 : i32
    %c0_i32_0 = arith.constant 0 : i32
    %c0_i32_1 = arith.constant 0 : i32
    return %c0_i32, %c0_i32_0 : i32, i32
  }
  func.func @transform_4(%arg0: i32, %arg1: i32, %arg2: memref<2x4xi32, #tpu.memory_space<smem>>, %arg3: memref<2xi32, #tpu.memory_space<smem>>) -> (i32, i32) {
    %c0_i32 = arith.constant 0 : i32
    %c0_i32_0 = arith.constant 0 : i32
    %c0_i32_1 = arith.constant 0 : i32
    return %c0_i32, %c0_i32_0 : i32, i32
  }
  func.func @transform_5(%arg0: i32, %arg1: i32, %arg2: memref<2x4xi32, #tpu.memory_space<smem>>, %arg3: memref<2xi32, #tpu.memory_space<smem>>) -> (i32, i32) {
    %c0_i32 = arith.constant 0 : i32
    %c0_i32_0 = arith.constant 0 : i32
    return %arg0, %c0_i32 : i32, i32
  }
}

</mosaic_0001>

<llo_original>
// kernel: tpu_custom_call.1
$region0: #{tpu_custom_call.1}
  #allocation0 [shape = 'u32[]', space=smem, size = 0x4, offset = 0x4, fixed_abs, tag = 'smem constant byte address 0x4 - core index']
  #allocation1 [shape = 'u32[72,128]{1,0:T(1,128)}', space=vmem, size = 0x9000, scoped, tag = 'internal scratch']
  #allocation2 [shape = 'f32[512,128]{1,0:T(8,128)}', space=vmem, size = 0x40000, scoped, tag = 'scratch operand']
  #allocation3 [shape = 's32[1]{0}', space=sflag, size = 0x4, scoped, tag = 'scoped memory for tpu_custom_call.1']
  #allocation4 [shape = 'u8[1024]{0}', space=smem, size = 0x400, scoped, tag = 'prefetched SMEM operand 0']
  #allocation5 [shape = 'u8[512]{0}', space=smem, size = 0x200, scoped, tag = 'prefetched SMEM operand 1']
  %s0 = inlined_call_operand.hbm [shape: s32[2,4], index: 0, kind: input, shape index: {}]
  %s1 = inlined_call_operand.hbm [shape: s32[2], index: 1, kind: input, shape index: {}]
  %s2 = inlined_call_operand.hbm [shape: bf16[1024,1024], index: 2, kind: input, shape index: {}]
  %s3 = inlined_call_operand.hbm [shape: bf16[1024,128], index: 3, kind: input, shape index: {}]
  %s4 = inlined_call_operand.hbm [shape: bf16[128,128], index: 4, kind: input, shape index: {}]
  %s5 = inlined_call_operand.hbm [shape: f32[1,128], index: 5, kind: input, shape index: {}]
  %s6 = inlined_call_operand.hbm [shape: bf16[128,128], index: 6, kind: input, shape index: {}]
  %s7 = inlined_call_operand.hbm [shape: bf16[1024,128], index: 7, kind: output, shape index: {}]
  %s8 = sld [smem:[#allocation0]]
  $region85: #{tpu_custom_call.1} parent=0
    _
  %s10 = ssub.s32 1, %s8
  %s11 = scalar_select 0, %s10, %s8
  %s13 = sshll.u32 %s0, 4
  %s14 = int_to_ptr.hbm [resolvable:$true] %s13
  %16 = dma.hbm_to_smem %s14, 32, [#allocation4], [#allocation3]
  %s18 = sshll.u32 %s1, 4
  %s19 = int_to_ptr.hbm [resolvable:$true] %s18
  %21 = dma.hbm_to_smem %s19, 16, [#allocation5], [#allocation3]
  %23 = dma.done [#allocation3], 48
  %24 = sfence
  $region1: #{tpu_custom_call.1} parent=0
    #allocation6 [shape = 'u8[524288]{0}', space=vmem, size = 0x80000, scoped, tag = 'input window, operand 2']
    #allocation7 [shape = 's32[2]{0}', space=sflag, size = 0x8, scoped, tag = 'scoped memory for tpu_custom_call.1']
    #allocation8 [shape = 's32[2]{0}', space=sflag, size = 0x8, scoped, tag = 'scoped memory for tpu_custom_call.1']
    #allocation9 [shape = 'u8[131072]{0}', space=vmem, size = 0x20000, scoped, tag = 'input window, operand 3']
    #allocation10 [shape = 's32[2]{0}', space=sflag, size = 0x8, scoped, tag = 'scoped memory for tpu_custom_call.1']
    #allocation11 [shape = 'u8[32768]{0}', space=vmem, size = 0x8000, scoped, tag = 'input window, operand 4, single buffered']
    #allocation12 [shape = 'u8[512]{0}', space=vmem, size = 0x400, scoped, tag = 'input window, operand 5, single buffered']
    #allocation13 [shape = 's32[1]{0}', space=sflag, size = 0x4, scoped, tag = 'scoped memory for tpu_custom_call.1']
    #allocation14 [shape = 'u8[32768]{0}', space=vmem, size = 0x8000, scoped, tag = 'input window, operand 6, single buffered']
    #allocation15 [shape = 'u8[262144]{0}', space=vmem, size = 0x40000, scoped, tag = 'output window, operand 0']
    %25 = vsyncpa [#allocation7], 0
    %s26 = scalar_lea.sflag [#allocation7], 1
    %27 = vsyncpa %s26, 0
    %28 = vsyncpa [#allocation10], 0
    %s29 = scalar_lea.sflag [#allocation10], 1
    %30 = vsyncpa %s29, 0
    %31 = vsyncpa [#allocation13], 0
    %32 = vsyncpa [#allocation8], 0
    %s33 = scalar_lea.sflag [#allocation8], 1
    %34 = vsyncpa %s33, 0
    loop: start=0, step=1, limit=10
    $region2: #{tpu_custom_call.1} parent=1 // loop_pre_header
      _
    $region3: #{tpu_custom_call.1} parent=1 // loop_header
      %s36 = sphi 0, %s40
      %p37 = scmp.ge.s32.totalorder %s36, 10
      %s43 = sphi 0, %s55
      %s44 = sphi 0, %s51
      %s45 = sphi 0, %s43
      %s46 = sphi 0, %s44
      %s47 = sphi 0, %s45
      %s48 = sphi 0, %s46
      %s76 = sphi 0, %s78
      %s79 = sphi 0, %s76
      %s80 = sphi 0, %s79
      %s96 = sphi 0, %s80
      %s118 = sphi 0, %s120
      %s121 = sphi 0, %s118
      %s122 = sphi 0, %s121
      %s138 = sphi 0, %s122
      %s142 = sphi 0, %s142
      %s144 = sphi 0, %s142
      %s145 = sphi 0, %s144
      %s159 = sphi 0, %s145
      %s163 = sphi 0, %s163
      %s165 = sphi 0, %s163
      %s166 = sphi 0, %s165
      %s180 = sphi 0, %s166
      %s184 = sphi 0, %s184
      %s186 = sphi 0, %s184
      %s187 = sphi 0, %s186
      %s201 = sphi 0, %s187
      %s207 = sphi 0, %s209
      %s210 = sphi 0, %s207
      %s211 = sphi 0, %s210
      %s227 = sphi 0, %s211
    $region4: #{tpu_custom_call.1} parent=1 // loop_header_branch
      %39 = sbr.rel (%p37) target = $region8
    $region5: #{tpu_custom_call.1} parent=1 // loop_body
      %s41 = ssub.s32 %s36, 1
      %s42 = ssub.s32 %s36, 2
      %s49 = sadd.s32 1, %s44
      %p50 = scmp.ge.s32.totalorder %s49, 4
      %s51 = scalar_select %p50, 0, %s49
      %s52 = sadd.s32 1, %s43
      %s53 = scalar_select %p50, %s52, %s43
      %p54 = scmp.ge.s32.totalorder %s53, 2
      %s55 = scalar_select %p54, 0, %s53
      %s56 = sshra.s32 %s44, 7
      %s57 = sand.u32 %s44, 127
      %s58 = sadd.s32 %s56, %s43
      %s59 = smul.u32 %s58, 128
      %s60 = sshra.s32 %s44, 7
      %s61 = sand.u32 %s44, 127
      %s62 = sadd.s32 %s59, %s61
      %s63 = sld [smem:[#allocation4 + %s62]]
      %s64 = sshra.s32 %s51, 7
      %s65 = sand.u32 %s51, 127
      %s66 = sadd.s32 %s64, %s55
      %s67 = smul.u32 %s66, 128
      %s68 = sshra.s32 %s51, 7
      %s69 = sand.u32 %s51, 127
      %s70 = sadd.s32 %s67, %s69
      %s71 = sld [smem:[#allocation4 + %s70]]
      %s72 = ssub.s32 %s43, %s55
      %s73 = ssub.s32 %s63, %s71
      %s74 = sor.u32 %s72, %s73
      %p75 = scmp.eq.s32.totalorder %s74, 0
      %s77 = sadd.s32 %s76, 1
      %s78 = scalar_select %p75, %s76, %s77
      %p81 = pneg %p75
      %p82 = scmp.eq.s32.totalorder %s36, 7
      %p83 = por %p81, %p82
      %p84 = scmp.ne.s32.totalorder %s76, %s79
      %p85 = scmp.eq.s32.totalorder %s36, 0
      %p86 = por %p84, %p85
      %p87 = scmp.ne.s32.totalorder %s76, %s79
      %p88 = scmp.eq.s32.totalorder %s41, 7
      %p89 = por %p87, %p88
      %p90 = scmp.ne.s32.totalorder %s79, %s80
      %p91 = scmp.eq.s32.totalorder %s41, 0
      %p92 = por %p90, %p91
      %p93 = scmp.ne.s32.totalorder %s79, %s80
      %p94 = scmp.eq.s32.totalorder %s42, 7
      %p95 = por %p93, %p94
      %p97 = scmp.ne.s32.totalorder %s80, %s96
      %p98 = scmp.eq.s32.totalorder %s42, 0
      %p99 = por %p97, %p98
      %s100 = sshra.s32 %s44, 7
      %s101 = sand.u32 %s44, 127
      %s102 = sadd.s32 %s100, %s43
      %s103 = smul.u32 %s102, 128
      %s104 = sshra.s32 %s44, 7
      %s105 = sand.u32 %s44, 127
      %s106 = sadd.s32 %s103, %s105
      %s107 = sld [smem:[#allocation4 + %s106]]
      %s108 = sshra.s32 %s51, 7
      %s109 = sand.u32 %s51, 127
      %s110 = sadd.s32 %s108, %s55
      %s111 = smul.u32 %s110, 128
      %s112 = sshra.s32 %s51, 7
      %s113 = sand.u32 %s51, 127
      %s114 = sadd.s32 %s111, %s113
      %s115 = sld [smem:[#allocation4 + %s114]]
      %s116 = ssub.s32 %s107, %s115
      %p117 = scmp.eq.s32.totalorder %s116, 0
      %s119 = sadd.s32 %s118, 1
      %s120 = scalar_select %p117, %s118, %s119
      %p123 = pneg %p117
      %p124 = scmp.eq.s32.totalorder %s36, 7
      %p125 = por %p123, %p124
      %p126 = scmp.ne.s32.totalorder %s118, %s121
      %p127 = scmp.eq.s32.totalorder %s36, 0
      %p128 = por %p126, %p127
      %p129 = scmp.ne.s32.totalorder %s118, %s121
      %p130 = scmp.eq.s32.totalorder %s41, 7
      %p131 = por %p129, %p130
      %p132 = scmp.ne.s32.totalorder %s121, %s122
      %p133 = scmp.eq.s32.totalorder %s41, 0
      %p134 = por %p132, %p133
      %p135 = scmp.ne.s32.totalorder %s121, %s122
      %p136 = scmp.eq.s32.totalorder %s42, 7
      %p137 = por %p135, %p136
      %p139 = scmp.ne.s32.totalorder %s122, %s138
      %p140 = scmp.eq.s32.totalorder %s42, 0
      %p141 = por %p139, %p140
      %s143 = sadd.s32 %s142, 1
      %p146 = scmp.eq.s32.totalorder %s36, 7
      %p147 = scmp.ne.s32.totalorder %s142, %s144
      %p148 = scmp.eq.s32.totalorder %s36, 0
      %p149 = por %p147, %p148
      %p150 = scmp.ne.s32.totalorder %s142, %s144
      %p151 = scmp.eq.s32.totalorder %s41, 7
      %p152 = por %p150, %p151
      %p153 = scmp.ne.s32.totalorder %s144, %s145
      %p154 = scmp.eq.s32.totalorder %s41, 0
      %p155 = por %p153, %p154
      %p156 = scmp.ne.s32.totalorder %s144, %s145
      %p157 = scmp.eq.s32.totalorder %s42, 7
      %p158 = por %p156, %p157
      %p160 = scmp.ne.s32.totalorder %s145, %s159
      %p161 = scmp.eq.s32.totalorder %s42, 0
      %p162 = por %p160, %p161
      %s164 = sadd.s32 %s163, 1
      %p167 = scmp.eq.s32.totalorder %s36, 7
      %p168 = scmp.ne.s32.totalorder %s163, %s165
      %p169 = scmp.eq.s32.totalorder %s36, 0
      %p170 = por %p168, %p169
      %p171 = scmp.ne.s32.totalorder %s163, %s165
      %p172 = scmp.eq.s32.totalorder %s41, 7
      %p173 = por %p171, %p172
      %p174 = scmp.ne.s32.totalorder %s165, %s166
      %p175 = scmp.eq.s32.totalorder %s41, 0
      %p176 = por %p174, %p175
      %p177 = scmp.ne.s32.totalorder %s165, %s166
      %p178 = scmp.eq.s32.totalorder %s42, 7
      %p179 = por %p177, %p178
      %p181 = scmp.ne.s32.totalorder %s166, %s180
      %p182 = scmp.eq.s32.totalorder %s42, 0
      %p183 = por %p181, %p182
      %s185 = sadd.s32 %s184, 1
      %p188 = scmp.eq.s32.totalorder %s36, 7
      %p189 = scmp.ne.s32.totalorder %s184, %s186
      %p190 = scmp.eq.s32.totalorder %s36, 0
      %p191 = por %p189, %p190
      %p192 = scmp.ne.s32.totalorder %s184, %s186
      %p193 = scmp.eq.s32.totalorder %s41, 7
      %p194 = por %p192, %p193
      %p195 = scmp.ne.s32.totalorder %s186, %s187
      %p196 = scmp.eq.s32.totalorder %s41, 0
      %p197 = por %p195, %p196
      %p198 = scmp.ne.s32.totalorder %s186, %s187
      %p199 = scmp.eq.s32.totalorder %s42, 7
      %p200 = por %p198, %p199
      %p202 = scmp.ne.s32.totalorder %s187, %s201
      %p203 = scmp.eq.s32.totalorder %s42, 0
      %p204 = por %p202, %p203
      %s205 = ssub.s32 %s43, %s55
      %p206 = scmp.eq.s32.totalorder %s205, 0
      %s208 = sadd.s32 %s207, 1
      %s209 = scalar_select %p206, %s207, %s208
      %p212 = pneg %p206
      %p213 = scmp.eq.s32.totalorder %s36, 7
      %p214 = por %p212, %p213
      %p215 = scmp.ne.s32.totalorder %s207, %s210
      %p216 = scmp.eq.s32.totalorder %s36, 0
      %p217 = por %p215, %p216
      %p218 = scmp.ne.s32.totalorder %s207, %s210
      %p219 = scmp.eq.s32.totalorder %s41, 7
      %p220 = por %p218, %p219
      %p221 = scmp.ne.s32.totalorder %s210, %s211
      %p222 = scmp.eq.s32.totalorder %s41, 0
      %p223 = por %p221, %p222
      %p224 = scmp.ne.s32.totalorder %s210, %s211
      %p225 = scmp.eq.s32.totalorder %s42, 7
      %p226 = por %p224, %p225
      %p228 = scmp.ne.s32.totalorder %s211, %s227
      %p229 = scmp.eq.s32.totalorder %s42, 0
      %p230 = por %p228, %p229
      %p231 = scmp.le.s32.totalorder 1, %s36
      %p232 = scmp.lt.s32.totalorder %s36, 9
      %p233 = pnand %p231, %p232
      %p234 = pneg %p233
      // Predicated region
      $region9: #{tpu_custom_call.1} parent=5 // pred_check
        _
      $region10: #{tpu_custom_call.1} parent=5 // pred_check_branch
        %236 = sbr.rel (%p233) target = $region12
      $region11: #{tpu_custom_call.1} parent=5 // pred_region
        %s237 = ssub.s32 %s36, 1
        // Predicated region
        $region13: #{tpu_custom_call.1} parent=11 // pred_check
          %p238 = pneg %p155
        $region14: #{tpu_custom_call.1} parent=11 // pred_check_branch
          %240 = sbr.rel (%p238) target = $region16
        $region15: #{tpu_custom_call.1} parent=11 // pred_region
          %242 = vsyncadd [#allocation10], 0
          %s243 = sshll.u32 %s4, 4
          %s244 = int_to_ptr.hbm [resolvable:$true] %s243
          %s245 = sshll.u32 [#allocation11], 4
          %s246 = int_to_ptr.vmem [resolvable:$true] %s245
          %251 = dma.hbm_to_vmem [thread:$0]  %s244, 1024, %s246, [#allocation10], 64, 64, 4
        $region16: #{tpu_custom_call.1} parent=11 // pred_fallthru
          _
        // Predicated region
        $region17: #{tpu_custom_call.1} parent=11 // pred_check
          %p252 = pneg %p176
        $region18: #{tpu_custom_call.1} parent=11 // pred_check_branch
          %254 = sbr.rel (%p252) target = $region20
        $region19: #{tpu_custom_call.1} parent=11 // pred_region
          %256 = vsyncadd [#allocation13], 0
          %s258 = sshll.u32 %s5, 4
          %s259 = int_to_ptr.hbm [resolvable:$true] %s258
          %s260 = sshll.u32 [#allocation12], 4
          %s261 = int_to_ptr.vmem [resolvable:$true] %s260
          %263 = dma.hbm_to_vmem [thread:$0]  %s259, 16, %s261, [#allocation13]
        $region20: #{tpu_custom_call.1} parent=11 // pred_fallthru
          _
        // Predicated region
        $region21: #{tpu_custom_call.1} parent=11 // pred_check
          %p264 = pneg %p197
        $region22: #{tpu_custom_call.1} parent=11 // pred_check_branch
          %266 = sbr.rel (%p264) target = $region24
        $region23: #{tpu_custom_call.1} parent=11 // pred_region
          %268 = vsyncadd [#allocation13], 0
          %s269 = sshll.u32 %s6, 4
          %s270 = int_to_ptr.hbm [resolvable:$true] %s269
          %s271 = sshll.u32 [#allocation14], 4
          %s272 = int_to_ptr.vmem [resolvable:$true] %s271
          %277 = dma.hbm_to_vmem [thread:$0]  %s270, 1024, %s272, [#allocation13], 64, 64, 4
        $region24: #{tpu_custom_call.1} parent=11 // pred_fallthru
          _
      $region12: #{tpu_custom_call.1} parent=5 // pred_fallthru
        _
      %p278 = scmp.lt.s32.totalorder %s36, 8
      // Predicated region
      $region25: #{tpu_custom_call.1} parent=5 // pred_check
        %p279 = pneg %p278
      $region26: #{tpu_custom_call.1} parent=5 // pred_check_branch
        %281 = sbr.rel (%p279) target = $region28
      $region27: #{tpu_custom_call.1} parent=5 // pred_region
        // Predicated region
        $region29: #{tpu_custom_call.1} parent=27 // pred_check
          %p282 = pneg %p86
        $region30: #{tpu_custom_call.1} parent=27 // pred_check_branch
          %284 = sbr.rel (%p282) target = $region32
        $region31: #{tpu_custom_call.1} parent=27 // pred_region
          %s285 = sand.u32 %s76, 1
          %s286 = scalar_lea.sflag [#allocation7], %s285
          %s287 = sand.u32 %s76, 1
          %s288 = smul.addr %s287, 512
          %s289 = scalar_lea.vmem [#allocation6], %s288
          %s290 = sshra.s32 %s44, 7
          %s291 = sand.u32 %s44, 127
          %s292 = sadd.s32 %s290, %s43
          %s293 = smul.u32 %s292, 128
          %s294 = sshra.s32 %s44, 7
          %s295 = sand.u32 %s44, 127
          %s296 = sadd.s32 %s293, %s295
          %s297 = sld [smem:[#allocation4 + %s296]]
          %s298 = smul.u32 64, %s43
          %s299 = smul.u32 2, %s297
          %301 = vsyncadd %s286, 0
          %s302 = smul.addr %s298, 8
          %s303 = sadd.s32 %s299, %s302
          %s304 = smul.addr %s303, 4
          %s305 = scalar_lea.hbm %s2, %s304
          %s306 = sshll.u32 %s305, 4
          %s307 = int_to_ptr.hbm [resolvable:$true] %s306
          %s308 = sshll.u32 %s289, 4
          %s309 = int_to_ptr.vmem [resolvable:$true] %s308
          %314 = dma.hbm_to_vmem [thread:$0]  %s307, 8192, %s309, %s286, 512, 128, 8
        $region32: #{tpu_custom_call.1} parent=27 // pred_fallthru
          _
        // Predicated region
        $region33: #{tpu_custom_call.1} parent=27 // pred_check
          %p315 = pneg %p128
        $region34: #{tpu_custom_call.1} parent=27 // pred_check_branch
          %317 = sbr.rel (%p315) target = $region36
        $region35: #{tpu_custom_call.1} parent=27 // pred_region
          %s318 = sand.u32 %s36, 1
          %s319 = scalar_lea.sflag [#allocation10], %s318
          %s320 = sand.u32 %s118, 1
          %s321 = smul.addr %s320, 128
          %s322 = scalar_lea.vmem [#allocation9], %s321
          %s323 = sshra.s32 %s44, 7
          %s324 = sand.u32 %s44, 127
          %s325 = sadd.s32 %s323, %s43
          %s326 = smul.u32 %s325, 128
          %s327 = sshra.s32 %s44, 7
          %s328 = sand.u32 %s44, 127
          %s329 = sadd.s32 %s326, %s328
          %s330 = sld [smem:[#allocation4 + %s329]]
          %s331 = smul.u32 32, %s330
          %333 = vsyncadd %s319, 0
          %s334 = smul.addr %s331, 4
          %s335 = scalar_lea.hbm %s3, %s334
          %s336 = sshll.u32 %s335, 4
          %s337 = int_to_ptr.hbm [resolvable:$true] %s336
          %s338 = sshll.u32 %s322, 4
          %s339 = int_to_ptr.vmem [resolvable:$true] %s338
          %344 = dma.hbm_to_vmem [thread:$0]  %s337, 2048, %s339, %s319, 64, 64, 4
        $region36: #{tpu_custom_call.1} parent=27 // pred_fallthru
          _
      $region28: #{tpu_custom_call.1} parent=5 // pred_fallthru
        _
      %p345 = scmp.le.s32.totalorder 1, %s36
      %p346 = scmp.lt.s32.totalorder %s36, 9
      %p347 = pnand %p345, %p346
      %p348 = pneg %p347
      // Predicated region
      $region37: #{tpu_custom_call.1} parent=5 // pred_check
        _
      $region38: #{tpu_custom_call.1} parent=5 // pred_check_branch
        %350 = sbr.rel (%p347) target = $region40
      $region39: #{tpu_custom_call.1} parent=5 // pred_region
        %s351 = ssub.s32 %s36, 1
        %s352 = sand.u32 %s79, 1
        %s353 = scalar_lea.sflag [#allocation7], %s352
        %s354 = sand.u32 %s79, 1
        %s355 = smul.addr %s354, 512
        %s356 = scalar_lea.vmem [#allocation6], %s355
        // Predicated region
        $region41: #{tpu_custom_call.1} parent=39 // pred_check
          %p357 = pneg %p92
        $region42: #{tpu_custom_call.1} parent=39 // pred_check_branch
          %359 = sbr.rel (%p357) target = $region44
        $region43: #{tpu_custom_call.1} parent=39 // pred_region
          %361 = dma.done %s353, 8192
        $region44: #{tpu_custom_call.1} parent=39 // pred_fallthru
          _
        %s362 = sand.u32 %s41, 1
        %s363 = scalar_lea.sflag [#allocation10], %s362
        %s364 = sand.u32 %s121, 1
        %s365 = smul.addr %s364, 128
        %s366 = scalar_lea.vmem [#allocation9], %s365
        // Predicated region
        $region45: #{tpu_custom_call.1} parent=39 // pred_check
          %p367 = pneg %p134
        $region46: #{tpu_custom_call.1} parent=39 // pred_check_branch
          %369 = sbr.rel (%p367) target = $region48
        $region47: #{tpu_custom_call.1} parent=39 // pred_region
          %371 = dma.done %s363, 2048
        $region48: #{tpu_custom_call.1} parent=39 // pred_fallthru
          _
        // Predicated region
        $region49: #{tpu_custom_call.1} parent=39 // pred_check
          %p372 = pneg %p155
        $region50: #{tpu_custom_call.1} parent=39 // pred_check_branch
          %374 = sbr.rel (%p372) target = $region52
        $region51: #{tpu_custom_call.1} parent=39 // pred_region
          %376 = dma.done [#allocation10], 1024
        $region52: #{tpu_custom_call.1} parent=39 // pred_fallthru
          _
        // Predicated region
        $region53: #{tpu_custom_call.1} parent=39 // pred_check
          %p377 = pneg %p176
        $region54: #{tpu_custom_call.1} parent=39 // pred_check_branch
          %379 = sbr.rel (%p377) target = $region56
        $region55: #{tpu_custom_call.1} parent=39 // pred_region
          %381 = dma.done [#allocation13], 16
        $region56: #{tpu_custom_call.1} parent=39 // pred_fallthru
          _
        // Predicated region
        $region57: #{tpu_custom_call.1} parent=39 // pred_check
          %p382 = pneg %p197
        $region58: #{tpu_custom_call.1} parent=39 // pred_check_branch
          %384 = sbr.rel (%p382) target = $region60
        $region59: #{tpu_custom_call.1} parent=39 // pred_region
          %386 = dma.done [#allocation13], 1024
        $region60: #{tpu_custom_call.1} parent=39 // pred_fallthru
          _
        %s387 = sand.u32 %s79, 1
        %s388 = scalar_lea.sflag [#allocation7], %s387
        %s389 = sand.u32 %s79, 1
        %s390 = smul.addr %s389, 512
        %s391 = scalar_lea.vmem [#allocation6], %s390
        %p392 = pneg %p92
        %p393 = pneg %p89
        %s394 = sand.u32 %s41, 1
        %s395 = scalar_lea.sflag [#allocation10], %s394
        %s396 = sand.u32 %s121, 1
        %s397 = smul.addr %s396, 128
        %s398 = scalar_lea.vmem [#allocation9], %s397
        %p399 = pneg %p134
        %p400 = pneg %p131
        %p401 = pneg %p155
        %p402 = pneg %p152
        %p403 = pneg %p176
        %p404 = pneg %p173
        %p405 = pneg %p197
        %p406 = pneg %p194
        %p407 = pneg %p223
        %p408 = pneg %p220
        %s409 = sand.u32 %s210, 1
        %s410 = scalar_lea.sflag [#allocation8], %s409
        %s411 = sand.u32 %s210, 1
        %s412 = smul.addr %s411, 256
        %s413 = scalar_lea.vmem [#allocation15], %s412
        %s414 = sshra.s32 %s46, 7
        %s415 = sand.u32 %s46, 127
        %s416 = sadd.s32 %s414, %s45
        %s417 = smul.u32 %s416, 128
        %s418 = sshra.s32 %s46, 7
        %s419 = sand.u32 %s46, 127
        %s420 = sadd.s32 %s417, %s419
        %s421 = sld [smem:[#allocation4 + %s420]]
        %s422 = smul.u32 64, %s45
        %s423 = smul.u32 2, %s421
        %s424 = sshra.s32 %s46, 7
        %s425 = sand.u32 %s46, 127
        %s426 = sadd.s32 %s424, %s45
        %s427 = smul.u32 %s426, 128
        %s428 = sshra.s32 %s46, 7
        %s429 = sand.u32 %s46, 127
        %s430 = sadd.s32 %s427, %s429
        %s431 = sld [smem:[#allocation4 + %s430]]
        %s432 = smul.u32 32, %s431
        %s433 = smul.u32 64, %s45
        %s434 = sld [smem:[#allocation5 + %s45]]
        %p435 = scmp.eq.s32.totalorder %s46, 0
        // Predicated region
        $region61: #{tpu_custom_call.1} parent=39 // pred_check
          %p436 = pneg %p435
        $region62: #{tpu_custom_call.1} parent=39 // pred_check_branch
          %438 = sbr.rel (%p436) target = $region64
        $region63: #{tpu_custom_call.1} parent=39 // pred_region
          %v439 = vld [vmem:[%s366] sm:$0xf]
          %v440 = vld [vmem:[%s366 + $0x4] sm:$0xf]
          %v441 = vld [vmem:[%s366 + $0x8] sm:$0xf]
          %v442 = vld [vmem:[%s366 + $0xc] sm:$0xf]
          %v443 = vld [vmem:[%s366 + $0x10] sm:$0xf]
          %v444 = vld [vmem:[%s366 + $0x14] sm:$0xf]
          %v445 = vld [vmem:[%s366 + $0x18] sm:$0xf]
          %v446 = vld [vmem:[%s366 + $0x1c] sm:$0xf]
          %v447 = vld [vmem:[%s366 + $0x20] sm:$0xf]
          %v448 = vld [vmem:[%s366 + $0x24] sm:$0xf]
          %v449 = vld [vmem:[%s366 + $0x28] sm:$0xf]
          %v450 = vld [vmem:[%s366 + $0x2c] sm:$0xf]
          %v451 = vld [vmem:[%s366 + $0x30] sm:$0xf]
          %v452 = vld [vmem:[%s366 + $0x34] sm:$0xf]
          %v453 = vld [vmem:[%s366 + $0x38] sm:$0xf]
          %v454 = vld [vmem:[%s366 + $0x3c] sm:$0xf]
          %v455 = vld [vmem:[%s366 + $0x40] sm:$0xf]
          %v456 = vld [vmem:[%s366 + $0x44] sm:$0xf]
          %v457 = vld [vmem:[%s366 + $0x48] sm:$0xf]
          %v458 = vld [vmem:[%s366 + $0x4c] sm:$0xf]
          %v459 = vld [vmem:[%s366 + $0x50] sm:$0xf]
          %v460 = vld [vmem:[%s366 + $0x54] sm:$0xf]
          %v461 = vld [vmem:[%s366 + $0x58] sm:$0xf]
          %v462 = vld [vmem:[%s366 + $0x5c] sm:$0xf]
          %v463 = vld [vmem:[%s366 + $0x60] sm:$0xf]
          %v464 = vld [vmem:[%s366 + $0x64] sm:$0xf]
          %v465 = vld [vmem:[%s366 + $0x68] sm:$0xf]
          %v466 = vld [vmem:[%s366 + $0x6c] sm:$0xf]
          %v467 = vld [vmem:[%s366 + $0x70] sm:$0xf]
          %v468 = vld [vmem:[%s366 + $0x74] sm:$0xf]
          %v469 = vld [vmem:[%s366 + $0x78] sm:$0xf]
          %v470 = vld [vmem:[%s366 + $0x7c] sm:$0xf]
          %v471 = vld [vmem:[#allocation11] sm:$0xf]
          %v472 = vld [vmem:[#allocation11 + $0x4] sm:$0xf]
          %v473 = vld [vmem:[#allocation11 + $0x8] sm:$0xf]
          %v474 = vld [vmem:[#allocation11 + $0xc] sm:$0xf]
          %v475 = vld [vmem:[#allocation11 + $0x10] sm:$0xf]
          %v476 = vld [vmem:[#allocation11 + $0x14] sm:$0xf]
          %v477 = vld [vmem:[#allocation11 + $0x18] sm:$0xf]
          %v478 = vld [vmem:[#allocation11 + $0x1c] sm:$0xf]
          %v479 = vld [vmem:[#allocation11 + $0x20] sm:$0xf]
          %v480 = vld [vmem:[#allocation11 + $0x24] sm:$0xf]
          %v481 = vld [vmem:[#allocation11 + $0x28] sm:$0xf]
          %v482 = vld [vmem:[#allocation11 + $0x2c] sm:$0xf]
          %v483 = vld [vmem:[#allocation11 + $0x30] sm:$0xf]
          %v484 = vld [vmem:[#allocation11 + $0x34] sm:$0xf]
          %v485 = vld [vmem:[#allocation11 + $0x38] sm:$0xf]
          %v486 = vld [vmem:[#allocation11 + $0x3c] sm:$0xf]
          %v519 = vunpack.c.l.b16 %v439
          %v520 = vunpack.c.l.b16 %v440
          %v521 = vunpack.c.l.b16 %v441
          %v522 = vunpack.c.l.b16 %v442
          %v523 = vunpack.c.l.b16 %v443
          %v524 = vunpack.c.l.b16 %v444
          %v525 = vunpack.c.l.b16 %v445
          %v526 = vunpack.c.l.b16 %v446
          %v527 = vunpack.c.l.b16 %v447
          %v528 = vunpack.c.l.b16 %v448
          %v529 = vunpack.c.l.b16 %v449
          %v530 = vunpack.c.l.b16 %v450
          %v531 = vunpack.c.l.b16 %v451
          %v532 = vunpack.c.l.b16 %v452
          %v533 = vunpack.c.l.b16 %v453
          %v534 = vunpack.c.l.b16 %v454
          %v535 = vunpack.c.l.b16 %v455
          %v536 = vunpack.c.l.b16 %v456
          %v537 = vunpack.c.l.b16 %v457
          %v538 = vunpack.c.l.b16 %v458
          %v539 = vunpack.c.l.b16 %v459
          %v540 = vunpack.c.l.b16 %v460
          %v541 = vunpack.c.l.b16 %v461
          %v542 = vunpack.c.l.b16 %v462
          %v543 = vunpack.c.l.b16 %v463
          %v544 = vunpack.c.l.b16 %v464
          %v545 = vunpack.c.l.b16 %v465
          %v546 = vunpack.c.l.b16 %v466
          %v547 = vunpack.c.l.b16 %v467
          %v548 = vunpack.c.l.b16 %v468
          %v549 = vunpack.c.l.b16 %v469
          %v550 = vunpack.c.l.b16 %v470
          %v551 = vpack.c.b16 %v520, %v519
          %v552 = vpack.c.b16 %v522, %v521
          %v553 = vpack.c.b16 %v524, %v523
          %v554 = vpack.c.b16 %v526, %v525
          %v555 = vpack.c.b16 %v528, %v527
          %v556 = vpack.c.b16 %v530, %v529
          %v557 = vpack.c.b16 %v532, %v531
          %v558 = vpack.c.b16 %v534, %v533
          %v559 = vpack.c.b16 %v536, %v535
          %v560 = vpack.c.b16 %v538, %v537
          %v561 = vpack.c.b16 %v540, %v539
          %v562 = vpack.c.b16 %v542, %v541
          %v563 = vpack.c.b16 %v544, %v543
          %v564 = vpack.c.b16 %v546, %v545
          %v565 = vpack.c.b16 %v548, %v547
          %v566 = vpack.c.b16 %v550, %v549
          %v599 = vunpack.c.l.b16 %v471
          %v600 = vunpack.c.l.b16 %v472
          %v601 = vunpack.c.l.b16 %v473
          %v602 = vunpack.c.l.b16 %v474
          %v603 = vunpack.c.l.b16 %v475
          %v604 = vunpack.c.l.b16 %v476
          %v605 = vunpack.c.l.b16 %v477
          %v606 = vunpack.c.l.b16 %v478
          %v607 = vunpack.c.l.b16 %v479
          %v608 = vunpack.c.l.b16 %v480
          %v609 = vunpack.c.l.b16 %v481
          %v610 = vunpack.c.l.b16 %v482
          %v611 = vunpack.c.l.b16 %v483
          %v612 = vunpack.c.l.b16 %v484
          %v613 = vunpack.c.l.b16 %v485
          %v614 = vunpack.c.l.b16 %v486
          %v615 = vpack.c.b16 %v600, %v599
          %v616 = vpack.c.b16 %v602, %v601
          %v617 = vpack.c.b16 %v604, %v603
          %v618 = vpack.c.b16 %v606, %v605
          %v619 = vpack.c.b16 %v608, %v607
          %v620 = vpack.c.b16 %v610, %v609
          %v621 = vpack.c.b16 %v612, %v611
          %v622 = vpack.c.b16 %v614, %v613
          %631 = vmatpush.bf16.msra.mxu0 %v622
          %632 = vmatpush.bf16.msra.mxu0 %v621
          %633 = vmatpush.bf16.msra.mxu0 %v620
          %634 = vmatpush.bf16.msra.mxu0 %v619
          %635 = vmatpush.bf16.msra.mxu0 %v618
          %636 = vmatpush.bf16.msra.mxu0 %v617
          %637 = vmatpush.bf16.msra.mxu0 %v616
          %638 = vmatpush.bf16.msra.mxu0 %v615
          %639 = vmatmul.bf16.gmra.mxu0 %v551
          %v640 = vpop.f32.mrf.mxu0
          %v641 = vadd.f32 0.0, %v640
          %v642 = vpop.f32.mrf.mxu0
          %v643 = vadd.f32 0.0, %v642
          %644 = vmatmul.bf16.gmra.mxu0 %v552
          %v645 = vpop.f32.mrf.mxu0
          %v646 = vadd.f32 0.0, %v645
          %v647 = vpop.f32.mrf.mxu0
          %v648 = vadd.f32 0.0, %v647
          %649 = vmatmul.bf16.gmra.mxu0 %v553
          %v650 = vpop.f32.mrf.mxu0
          %v651 = vadd.f32 0.0, %v650
          %v652 = vpop.f32.mrf.mxu0
          %v653 = vadd.f32 0.0, %v652
          %654 = vmatmul.bf16.gmra.mxu0 %v554
          %v655 = vpop.f32.mrf.mxu0
          %v656 = vadd.f32 0.0, %v655
          %v657 = vpop.f32.mrf.mxu0
          %v658 = vadd.f32 0.0, %v657
          %659 = vmatmul.bf16.gmra.mxu0 %v555
          %v660 = vpop.f32.mrf.mxu0
          %v661 = vadd.f32 0.0, %v660
          %v662 = vpop.f32.mrf.mxu0
          %v663 = vadd.f32 0.0, %v662
          %664 = vmatmul.bf16.gmra.mxu0 %v556
          %v665 = vpop.f32.mrf.mxu0
          %v666 = vadd.f32 0.0, %v665
          %v667 = vpop.f32.mrf.mxu0
          %v668 = vadd.f32 0.0, %v667
          %669 = vmatmul.bf16.gmra.mxu0 %v557
          %v670 = vpop.f32.mrf.mxu0
          %v671 = vadd.f32 0.0, %v670
          %v672 = vpop.f32.mrf.mxu0
          %v673 = vadd.f32 0.0, %v672
          %674 = vmatmul.bf16.gmra.mxu0 %v558
          %v675 = vpop.f32.mrf.mxu0
          %v676 = vadd.f32 0.0, %v675
          %v677 = vpop.f32.mrf.mxu0
          %v678 = vadd.f32 0.0, %v677
          %679 = vmatmul.bf16.gmra.mxu0 %v559
          %v680 = vpop.f32.mrf.mxu0
          %v681 = vadd.f32 0.0, %v680
          %v682 = vpop.f32.mrf.mxu0
          %v683 = vadd.f32 0.0, %v682
          %684 = vmatmul.bf16.gmra.mxu0 %v560
          %v685 = vpop.f32.mrf.mxu0
          %v686 = vadd.f32 0.0, %v685
          %v687 = vpop.f32.mrf.mxu0
          %v688 = vadd.f32 0.0, %v687
          %689 = vmatmul.bf16.gmra.mxu0 %v561
          %v690 = vpop.f32.mrf.mxu0
          %v691 = vadd.f32 0.0, %v690
          %v692 = vpop.f32.mrf.mxu0
          %v693 = vadd.f32 0.0, %v692
          %694 = vmatmul.bf16.gmra.mxu0 %v562
          %v695 = vpop.f32.mrf.mxu0
          %v696 = vadd.f32 0.0, %v695
          %v697 = vpop.f32.mrf.mxu0
          %v698 = vadd.f32 0.0, %v697
          %699 = vmatmul.bf16.gmra.mxu0 %v563
          %v700 = vpop.f32.mrf.mxu0
          %v701 = vadd.f32 0.0, %v700
          %v702 = vpop.f32.mrf.mxu0
          %v703 = vadd.f32 0.0, %v702
          %704 = vmatmul.bf16.gmra.mxu0 %v564
          %v705 = vpop.f32.mrf.mxu0
          %v706 = vadd.f32 0.0, %v705
          %v707 = vpop.f32.mrf.mxu0
          %v708 = vadd.f32 0.0, %v707
          %709 = vmatmul.bf16.gmra.mxu0 %v565
          %v710 = vpop.f32.mrf.mxu0
          %v711 = vadd.f32 0.0, %v710
          %v712 = vpop.f32.mrf.mxu0
          %v713 = vadd.f32 0.0, %v712
          %714 = vmatmul.bf16.gmra.mxu0 %v566
          %v715 = vpop.f32.mrf.mxu0
          %v716 = vadd.f32 0.0, %v715
          %v717 = vpop.f32.mrf.mxu0
          %v718 = vadd.f32 0.0, %v717
          %719 = vdwg.mxu0
          %v720 = vpack.c.bf16 %v643, %v641
          %v721 = vpack.c.bf16 %v648, %v646
          %v722 = vpack.c.bf16 %v653, %v651
          %v723 = vpack.c.bf16 %v658, %v656
          %v724 = vpack.c.bf16 %v663, %v661
          %v725 = vpack.c.bf16 %v668, %v666
          %v726 = vpack.c.bf16 %v673, %v671
          %v727 = vpack.c.bf16 %v678, %v676
          %v728 = vpack.c.bf16 %v683, %v681
          %v729 = vpack.c.bf16 %v688, %v686
          %v730 = vpack.c.bf16 %v693, %v691
          %v731 = vpack.c.bf16 %v698, %v696
          %v732 = vpack.c.bf16 %v703, %v701
          %v733 = vpack.c.bf16 %v708, %v706
          %v734 = vpack.c.bf16 %v713, %v711
          %v735 = vpack.c.bf16 %v718, %v716
          %v736 = vld [vmem:[%s356] sm:$0xff]
          %v737 = vld [vmem:[%s356 + $0x8] sm:$0xff]
          %v738 = vld [vmem:[%s356 + $0x10] sm:$0xff]
          %v739 = vld [vmem:[%s356 + $0x18] sm:$0xff]
          %v740 = vld [vmem:[%s356 + $0x20] sm:$0xff]
          %v741 = vld [vmem:[%s356 + $0x28] sm:$0xff]
          %v742 = vld [vmem:[%s356 + $0x30] sm:$0xff]
          %v743 = vld [vmem:[%s356 + $0x38] sm:$0xff]
          %v744 = vld [vmem:[%s356 + $0x40] sm:$0xff]
          %v745 = vld [vmem:[%s356 + $0x48] sm:$0xff]
          %v746 = vld [vmem:[%s356 + $0x50] sm:$0xff]
          %v747 = vld [vmem:[%s356 + $0x58] sm:$0xff]
          %v748 = vld [vmem:[%s356 + $0x60] sm:$0xff]
          %v749 = vld [vmem:[%s356 + $0x68] sm:$0xff]
          %v750 = vld [vmem:[%s356 + $0x70] sm:$0xff]
          %v751 = vld [vmem:[%s356 + $0x78] sm:$0xff]
          %v752 = vld [vmem:[%s356 + $0x80] sm:$0xff]
          %v753 = vld [vmem:[%s356 + $0x88] sm:$0xff]
          %v754 = vld [vmem:[%s356 + $0x90] sm:$0xff]
          %v755 = vld [vmem:[%s356 + $0x98] sm:$0xff]
          %v756 = vld [vmem:[%s356 + $0xa0] sm:$0xff]
          %v757 = vld [vmem:[%s356 + $0xa8] sm:$0xff]
          %v758 = vld [vmem:[%s356 + $0xb0] sm:$0xff]
          %v759 = vld [vmem:[%s356 + $0xb8] sm:$0xff]
          %v760 = vld [vmem:[%s356 + $0xc0] sm:$0xff]
          %v761 = vld [vmem:[%s356 + $0xc8] sm:$0xff]
          %v762 = vld [vmem:[%s356 + $0xd0] sm:$0xff]
          %v763 = vld [vmem:[%s356 + $0xd8] sm:$0xff]
          %v764 = vld [vmem:[%s356 + $0xe0] sm:$0xff]
          %v765 = vld [vmem:[%s356 + $0xe8] sm:$0xff]
          %v766 = vld [vmem:[%s356 + $0xf0] sm:$0xff]
          %v767 = vld [vmem:[%s356 + $0xf8] sm:$0xff]
          %v768 = vld [vmem:[%s356 + $0x100] sm:$0xff]
          %v769 = vld [vmem:[%s356 + $0x108] sm:$0xff]
          %v770 = vld [vmem:[%s356 + $0x110] sm:$0xff]
          %v771 = vld [vmem:[%s356 + $0x118] sm:$0xff]
          %v772 = vld [vmem:[%s356 + $0x120] sm:$0xff]
          %v773 = vld [vmem:[%s356 + $0x128] sm:$0xff]
          %v774 = vld [vmem:[%s356 + $0x130] sm:$0xff]
          %v775 = vld [vmem:[%s356 + $0x138] sm:$0xff]
          %v776 = vld [vmem:[%s356 + $0x140] sm:$0xff]
          %v777 = vld [vmem:[%s356 + $0x148] sm:$0xff]
          %v778 = vld [vmem:[%s356 + $0x150] sm:$0xff]
          %v779 = vld [vmem:[%s356 + $0x158] sm:$0xff]
          %v780 = vld [vmem:[%s356 + $0x160] sm:$0xff]
          %v781 = vld [vmem:[%s356 + $0x168] sm:$0xff]
          %v782 = vld [vmem:[%s356 + $0x170] sm:$0xff]
          %v783 = vld [vmem:[%s356 + $0x178] sm:$0xff]
          %v784 = vld [vmem:[%s356 + $0x180] sm:$0xff]
          %v785 = vld [vmem:[%s356 + $0x188] sm:$0xff]
          %v786 = vld [vmem:[%s356 + $0x190] sm:$0xff]
          %v787 = vld [vmem:[%s356 + $0x198] sm:$0xff]
          %v788 = vld [vmem:[%s356 + $0x1a0] sm:$0xff]
          %v789 = vld [vmem:[%s356 + $0x1a8] sm:$0xff]
          %v790 = vld [vmem:[%s356 + $0x1b0] sm:$0xff]
          %v791 = vld [vmem:[%s356 + $0x1b8] sm:$0xff]
          %v792 = vld [vmem:[%s356 + $0x1c0] sm:$0xff]
          %v793 = vld [vmem:[%s356 + $0x1c8] sm:$0xff]
          %v794 = vld [vmem:[%s356 + $0x1d0] sm:$0xff]
          %v795 = vld [vmem:[%s356 + $0x1d8] sm:$0xff]
          %v796 = vld [vmem:[%s356 + $0x1e0] sm:$0xff]
          %v797 = vld [vmem:[%s356 + $0x1e8] sm:$0xff]
          %v798 = vld [vmem:[%s356 + $0x1f0] sm:$0xff]
          %v799 = vld [vmem:[%s356 + $0x1f8] sm:$0xff]
          %v864 = vunpack.c.l.b16 %v736
          %v865 = vunpack.c.h.b16 %v736
          %v866 = vunpack.c.l.b16 %v737
          %v867 = vunpack.c.h.b16 %v737
          %v868 = vunpack.c.l.b16 %v738
          %v869 = vunpack.c.h.b16 %v738
          %v870 = vunpack.c.l.b16 %v739
          %v871 = vunpack.c.h.b16 %v739
          %v872 = vunpack.c.l.b16 %v740
          %v873 = vunpack.c.h.b16 %v740
          %v874 = vunpack.c.l.b16 %v741
          %v875 = vunpack.c.h.b16 %v741
          %v876 = vunpack.c.l.b16 %v742
          %v877 = vunpack.c.h.b16 %v742
          %v878 = vunpack.c.l.b16 %v743
          %v879 = vunpack.c.h.b16 %v743
          %v880 = vunpack.c.l.b16 %v744
          %v881 = vunpack.c.h.b16 %v744
          %v882 = vunpack.c.l.b16 %v745
          %v883 = vunpack.c.h.b16 %v745
          %v884 = vunpack.c.l.b16 %v746
          %v885 = vunpack.c.h.b16 %v746
          %v886 = vunpack.c.l.b16 %v747
          %v887 = vunpack.c.h.b16 %v747
          %v888 = vunpack.c.l.b16 %v748
          %v889 = vunpack.c.h.b16 %v748
          %v890 = vunpack.c.l.b16 %v749
          %v891 = vunpack.c.h.b16 %v749
          %v892 = vunpack.c.l.b16 %v750
          %v893 = vunpack.c.h.b16 %v750
          %v894 = vunpack.c.l.b16 %v751
          %v895 = vunpack.c.h.b16 %v751
          %v896 = vunpack.c.l.b16 %v752
          %v897 = vunpack.c.h.b16 %v752
          %v898 = vunpack.c.l.b16 %v753
          %v899 = vunpack.c.h.b16 %v753
          %v900 = vunpack.c.l.b16 %v754
          %v901 = vunpack.c.h.b16 %v754
          %v902 = vunpack.c.l.b16 %v755
          %v903 = vunpack.c.h.b16 %v755
          %v904 = vunpack.c.l.b16 %v756
          %v905 = vunpack.c.h.b16 %v756
          %v906 = vunpack.c.l.b16 %v757
          %v907 = vunpack.c.h.b16 %v757
          %v908 = vunpack.c.l.b16 %v758
          %v909 = vunpack.c.h.b16 %v758
          %v910 = vunpack.c.l.b16 %v759
          %v911 = vunpack.c.h.b16 %v759
          %v912 = vunpack.c.l.b16 %v760
          %v913 = vunpack.c.h.b16 %v760
          %v914 = vunpack.c.l.b16 %v761
          %v915 = vunpack.c.h.b16 %v761
          %v916 = vunpack.c.l.b16 %v762
          %v917 = vunpack.c.h.b16 %v762
          %v918 = vunpack.c.l.b16 %v763
          %v919 = vunpack.c.h.b16 %v763
          %v920 = vunpack.c.l.b16 %v764
          %v921 = vunpack.c.h.b16 %v764
          %v922 = vunpack.c.l.b16 %v765
          %v923 = vunpack.c.h.b16 %v765
          %v924 = vunpack.c.l.b16 %v766
          %v925 = vunpack.c.h.b16 %v766
          %v926 = vunpack.c.l.b16 %v767
          %v927 = vunpack.c.h.b16 %v767
          %v928 = vunpack.c.l.b16 %v768
          %v929 = vunpack.c.h.b16 %v768
          %v930 = vunpack.c.l.b16 %v769
          %v931 = vunpack.c.h.b16 %v769
          %v932 = vunpack.c.l.b16 %v770
          %v933 = vunpack.c.h.b16 %v770
          %v934 = vunpack.c.l.b16 %v771
          %v935 = vunpack.c.h.b16 %v771
          %v936 = vunpack.c.l.b16 %v772
          %v937 = vunpack.c.h.b16 %v772
          %v938 = vunpack.c.l.b16 %v773
          %v939 = vunpack.c.h.b16 %v773
          %v940 = vunpack.c.l.b16 %v774
          %v941 = vunpack.c.h.b16 %v774
          %v942 = vunpack.c.l.b16 %v775
          %v943 = vunpack.c.h.b16 %v775
          %v944 = vunpack.c.l.b16 %v776
          %v945 = vunpack.c.h.b16 %v776
          %v946 = vunpack.c.l.b16 %v777
          %v947 = vunpack.c.h.b16 %v777
          %v948 = vunpack.c.l.b16 %v778
          %v949 = vunpack.c.h.b16 %v778
          %v950 = vunpack.c.l.b16 %v779
          %v951 = vunpack.c.h.b16 %v779
          %v952 = vunpack.c.l.b16 %v780
          %v953 = vunpack.c.h.b16 %v780
          %v954 = vunpack.c.l.b16 %v781
          %v955 = vunpack.c.h.b16 %v781
          %v956 = vunpack.c.l.b16 %v782
          %v957 = vunpack.c.h.b16 %v782
          %v958 = vunpack.c.l.b16 %v783
          %v959 = vunpack.c.h.b16 %v783
          %v960 = vunpack.c.l.b16 %v784
          %v961 = vunpack.c.h.b16 %v784
          %v962 = vunpack.c.l.b16 %v785
          %v963 = vunpack.c.h.b16 %v785
          %v964 = vunpack.c.l.b16 %v786
          %v965 = vunpack.c.h.b16 %v786
          %v966 = vunpack.c.l.b16 %v787
          %v967 = vunpack.c.h.b16 %v787
          %v968 = vunpack.c.l.b16 %v788
          %v969 = vunpack.c.h.b16 %v788
          %v970 = vunpack.c.l.b16 %v789
          %v971 = vunpack.c.h.b16 %v789
          %v972 = vunpack.c.l.b16 %v790
          %v973 = vunpack.c.h.b16 %v790
          %v974 = vunpack.c.l.b16 %v791
          %v975 = vunpack.c.h.b16 %v791
          %v976 = vunpack.c.l.b16 %v792
          %v977 = vunpack.c.h.b16 %v792
          %v978 = vunpack.c.l.b16 %v793
          %v979 = vunpack.c.h.b16 %v793
          %v980 = vunpack.c.l.b16 %v794
          %v981 = vunpack.c.h.b16 %v794
          %v982 = vunpack.c.l.b16 %v795
          %v983 = vunpack.c.h.b16 %v795
          %v984 = vunpack.c.l.b16 %v796
          %v985 = vunpack.c.h.b16 %v796
          %v986 = vunpack.c.l.b16 %v797
          %v987 = vunpack.c.h.b16 %v797
          %v988 = vunpack.c.l.b16 %v798
          %v989 = vunpack.c.h.b16 %v798
          %v990 = vunpack.c.l.b16 %v799
          %v991 = vunpack.c.h.b16 %v799
          %v992 = vpack.c.b16 %v866, %v864
          %v993 = vpack.c.b16 %v867, %v865
          %v994 = vpack.c.b16 %v870, %v868
          %v995 = vpack.c.b16 %v871, %v869
          %v996 = vpack.c.b16 %v874, %v872
          %v997 = vpack.c.b16 %v875, %v873
          %v998 = vpack.c.b16 %v878, %v876
          %v999 = vpack.c.b16 %v879, %v877
          %v1000 = vpack.c.b16 %v882, %v880
          %v1001 = vpack.c.b16 %v883, %v881
          %v1002 = vpack.c.b16 %v886, %v884
          %v1003 = vpack.c.b16 %v887, %v885
          %v1004 = vpack.c.b16 %v890, %v888
          %v1005 = vpack.c.b16 %v891, %v889
          %v1006 = vpack.c.b16 %v894, %v892
          %v1007 = vpack.c.b16 %v895, %v893
          %v1008 = vpack.c.b16 %v898, %v896
          %v1009 = vpack.c.b16 %v899, %v897
          %v1010 = vpack.c.b16 %v902, %v900
          %v1011 = vpack.c.b16 %v903, %v901
          %v1012 = vpack.c.b16 %v906, %v904
          %v1013 = vpack.c.b16 %v907, %v905
          %v1014 = vpack.c.b16 %v910, %v908
          %v1015 = vpack.c.b16 %v911, %v909
          %v1016 = vpack.c.b16 %v914, %v912
          %v1017 = vpack.c.b16 %v915, %v913
          %v1018 = vpack.c.b16 %v918, %v916
          %v1019 = vpack.c.b16 %v919, %v917
          %v1020 = vpack.c.b16 %v922, %v920
          %v1021 = vpack.c.b16 %v923, %v921
          %v1022 = vpack.c.b16 %v926, %v924
          %v1023 = vpack.c.b16 %v927, %v925
          %v1024 = vpack.c.b16 %v930, %v928
          %v1025 = vpack.c.b16 %v931, %v929
          %v1026 = vpack.c.b16 %v934, %v932
          %v1027 = vpack.c.b16 %v935, %v933
          %v1028 = vpack.c.b16 %v938, %v936
          %v1029 = vpack.c.b16 %v939, %v937
          %v1030 = vpack.c.b16 %v942, %v940
          %v1031 = vpack.c.b16 %v943, %v941
          %v1032 = vpack.c.b16 %v946, %v944
          %v1033 = vpack.c.b16 %v947, %v945
          %v1034 = vpack.c.b16 %v950, %v948
          %v1035 = vpack.c.b16 %v951, %v949
          %v1036 = vpack.c.b16 %v954, %v952
          %v1037 = vpack.c.b16 %v955, %v953
          %v1038 = vpack.c.b16 %v958, %v956
          %v1039 = vpack.c.b16 %v959, %v957
          %v1040 = vpack.c.b16 %v962, %v960
          %v1041 = vpack.c.b16 %v963, %v961
          %v1042 = vpack.c.b16 %v966, %v964
          %v1043 = vpack.c.b16 %v967, %v965
          %v1044 = vpack.c.b16 %v970, %v968
          %v1045 = vpack.c.b16 %v971, %v969
          %v1046 = vpack.c.b16 %v974, %v972
          %v1047 = vpack.c.b16 %v975, %v973
          %v1048 = vpack.c.b16 %v978, %v976
          %v1049 = vpack.c.b16 %v979, %v977
          %v1050 = vpack.c.b16 %v982, %v980
          %v1051 = vpack.c.b16 %v983, %v981
          %v1052 = vpack.c.b16 %v986, %v984
          %v1053 = vpack.c.b16 %v987, %v985
          %v1054 = vpack.c.b16 %v990, %v988
          %v1055 = vpack.c.b16 %v991, %v989
          %1120 = vmatpush.bf16.msra.mxu0 %v727
          %1121 = vmatpush.bf16.msra.mxu0 %v726
          %1122 = vmatpush.bf16.msra.mxu0 %v725
          %1123 = vmatpush.bf16.msra.mxu0 %v724
          %1124 = vmatpush.bf16.msra.mxu0 %v723
          %1125 = vmatpush.bf16.msra.mxu0 %v722
          %1126 = vmatpush.bf16.msra.mxu0 %v721
          %1127 = vmatpush.bf16.msra.mxu0 %v720
          %1128 = vmatmul.bf16.gmra.mxu0 %v992
          %v1129 = vpop.f32.mrf.mxu0
          %v1130 = vadd.f32 0.0, %v1129
          %v1131 = vpop.f32.mrf.mxu0
          %v1132 = vadd.f32 0.0, %v1131
          %1133 = vmatmul.bf16.gmra.mxu0 %v994
          %v1134 = vpop.f32.mrf.mxu0
          %v1135 = vadd.f32 0.0, %v1134
          %v1136 = vpop.f32.mrf.mxu0
          %v1137 = vadd.f32 0.0, %v1136
          %1138 = vmatmul.bf16.gmra.mxu0 %v996
          %v1139 = vpop.f32.mrf.mxu0
          %v1140 = vadd.f32 0.0, %v1139
          %v1141 = vpop.f32.mrf.mxu0
          %v1142 = vadd.f32 0.0, %v1141
          %1143 = vmatmul.bf16.gmra.mxu0 %v998
          %v1144 = vpop.f32.mrf.mxu0
          %v1145 = vadd.f32 0.0, %v1144
          %v1146 = vpop.f32.mrf.mxu0
          %v1147 = vadd.f32 0.0, %v1146
          %1148 = vmatmul.bf16.gmra.mxu0 %v1000
          %v1149 = vpop.f32.mrf.mxu0
          %v1150 = vadd.f32 0.0, %v1149
          %v1151 = vpop.f32.mrf.mxu0
          %v1152 = vadd.f32 0.0, %v1151
          %1153 = vmatmul.bf16.gmra.mxu0 %v1002
          %v1154 = vpop.f32.mrf.mxu0
          %v1155 = vadd.f32 0.0, %v1154
          %v1156 = vpop.f32.mrf.mxu0
          %v1157 = vadd.f32 0.0, %v1156
          %1158 = vmatmul.bf16.gmra.mxu0 %v1004
          %v1159 = vpop.f32.mrf.mxu0
          %v1160 = vadd.f32 0.0, %v1159
          %v1161 = vpop.f32.mrf.mxu0
          %v1162 = vadd.f32 0.0, %v1161
          %1163 = vmatmul.bf16.gmra.mxu0 %v1006
          %v1164 = vpop.f32.mrf.mxu0
          %v1165 = vadd.f32 0.0, %v1164
          %v1166 = vpop.f32.mrf.mxu0
          %v1167 = vadd.f32 0.0, %v1166
          %1168 = vmatmul.bf16.gmra.mxu0 %v1008
          %v1169 = vpop.f32.mrf.mxu0
          %v1170 = vadd.f32 0.0, %v1169
          %v1171 = vpop.f32.mrf.mxu0
          %v1172 = vadd.f32 0.0, %v1171
          %1173 = vmatmul.bf16.gmra.mxu0 %v1010
          %v1174 = vpop.f32.mrf.mxu0
          %v1175 = vadd.f32 0.0, %v1174
          %v1176 = vpop.f32.mrf.mxu0
          %v1177 = vadd.f32 0.0, %v1176
          %1178 = vmatmul.bf16.gmra.mxu0 %v1012
          %v1179 = vpop.f32.mrf.mxu0
          %v1180 = vadd.f32 0.0, %v1179
          %v1181 = vpop.f32.mrf.mxu0
          %v1182 = vadd.f32 0.0, %v1181
          %1183 = vmatmul.bf16.gmra.mxu0 %v1014
          %v1184 = vpop.f32.mrf.mxu0
          %v1185 = vadd.f32 0.0, %v1184
          %v1186 = vpop.f32.mrf.mxu0
          %v1187 = vadd.f32 0.0, %v1186
          %1188 = vmatmul.bf16.gmra.mxu0 %v1016
          %v1189 = vpop.f32.mrf.mxu0
          %v1190 = vadd.f32 0.0, %v1189
          %v1191 = vpop.f32.mrf.mxu0
          %v1192 = vadd.f32 0.0, %v1191
          %1193 = vmatmul.bf16.gmra.mxu0 %v1018
          %v1194 = vpop.f32.mrf.mxu0
          %v1195 = vadd.f32 0.0, %v1194
          %v1196 = vpop.f32.mrf.mxu0
          %v1197 = vadd.f32 0.0, %v1196
          %1198 = vmatmul.bf16.gmra.mxu0 %v1020
          %v1199 = vpop.f32.mrf.mxu0
          %v1200 = vadd.f32 0.0, %v1199
          %v1201 = vpop.f32.mrf.mxu0
          %v1202 = vadd.f32 0.0, %v1201
          %1203 = vmatmul.bf16.gmra.mxu0 %v1022
          %v1204 = vpop.f32.mrf.mxu0
          %v1205 = vadd.f32 0.0, %v1204
          %v1206 = vpop.f32.mrf.mxu0
          %v1207 = vadd.f32 0.0, %v1206
          %1208 = vmatmul.bf16.gmra.mxu0 %v1024
          %v1209 = vpop.f32.mrf.mxu0
          %v1210 = vadd.f32 0.0, %v1209
          %v1211 = vpop.f32.mrf.mxu0
          %v1212 = vadd.f32 0.0, %v1211
          %1213 = vmatmul.bf16.gmra.mxu0 %v1026
          %v1214 = vpop.f32.mrf.mxu0
          %v1215 = vadd.f32 0.0, %v1214
          %v1216 = vpop.f32.mrf.mxu0
          %v1217 = vadd.f32 0.0, %v1216
          %1218 = vmatmul.bf16.gmra.mxu0 %v1028
          %v1219 = vpop.f32.mrf.mxu0
          %v1220 = vadd.f32 0.0, %v1219
          %v1221 = vpop.f32.mrf.mxu0
          %v1222 = vadd.f32 0.0, %v1221
          %1223 = vmatmul.bf16.gmra.mxu0 %v1030
          %v1224 = vpop.f32.mrf.mxu0
          %v1225 = vadd.f32 0.0, %v1224
          %v1226 = vpop.f32.mrf.mxu0
          %v1227 = vadd.f32 0.0, %v1226
          %1228 = vmatmul.bf16.gmra.mxu0 %v1032
          %v1229 = vpop.f32.mrf.mxu0
          %v1230 = vadd.f32 0.0, %v1229
          %v1231 = vpop.f32.mrf.mxu0
          %v1232 = vadd.f32 0.0, %v1231
          %1233 = vmatmul.bf16.gmra.mxu0 %v1034
          %v1234 = vpop.f32.mrf.mxu0
          %v1235 = vadd.f32 0.0, %v1234
          %v1236 = vpop.f32.mrf.mxu0
          %v1237 = vadd.f32 0.0, %v1236
          %1238 = vmatmul.bf16.gmra.mxu0 %v1036
          %v1239 = vpop.f32.mrf.mxu0
          %v1240 = vadd.f32 0.0, %v1239
          %v1241 = vpop.f32.mrf.mxu0
          %v1242 = vadd.f32 0.0, %v1241
          %1243 = vmatmul.bf16.gmra.mxu0 %v1038
          %v1244 = vpop.f32.mrf.mxu0
          %v1245 = vadd.f32 0.0, %v1244
          %v1246 = vpop.f32.mrf.mxu0
          %v1247 = vadd.f32 0.0, %v1246
          %1248 = vmatmul.bf16.gmra.mxu0 %v1040
          %v1249 = vpop.f32.mrf.mxu0
          %v1250 = vadd.f32 0.0, %v1249
          %v1251 = vpop.f32.mrf.mxu0
          %v1252 = vadd.f32 0.0, %v1251
          %1253 = vmatmul.bf16.gmra.mxu0 %v1042
          %v1254 = vpop.f32.mrf.mxu0
          %v1255 = vadd.f32 0.0, %v1254
          %v1256 = vpop.f32.mrf.mxu0
          %v1257 = vadd.f32 0.0, %v1256
          %1258 = vmatmul.bf16.gmra.mxu0 %v1044
          %v1259 = vpop.f32.mrf.mxu0
          %v1260 = vadd.f32 0.0, %v1259
          %v1261 = vpop.f32.mrf.mxu0
          %v1262 = vadd.f32 0.0, %v1261
          %1263 = vmatmul.bf16.gmra.mxu0 %v1046
          %v1264 = vpop.f32.mrf.mxu0
          %v1265 = vadd.f32 0.0, %v1264
          %v1266 = vpop.f32.mrf.mxu0
          %v1267 = vadd.f32 0.0, %v1266
          %1268 = vmatmul.bf16.gmra.mxu0 %v1048
          %v1269 = vpop.f32.mrf.mxu0
          %v1270 = vadd.f32 0.0, %v1269
          %v1271 = vpop.f32.mrf.mxu0
          %v1272 = vadd.f32 0.0, %v1271
          %1273 = vmatmul.bf16.gmra.mxu0 %v1050
          %v1274 = vpop.f32.mrf.mxu0
          %v1275 = vadd.f32 0.0, %v1274
          %v1276 = vpop.f32.mrf.mxu0
          %v1277 = vadd.f32 0.0, %v1276
          %1278 = vmatmul.bf16.gmra.mxu0 %v1052
          %v1279 = vpop.f32.mrf.mxu0
          %v1280 = vadd.f32 0.0, %v1279
          %v1281 = vpop.f32.mrf.mxu0
          %v1282 = vadd.f32 0.0, %v1281
          %1283 = vmatmul.bf16.gmra.mxu0 %v1054
          %v1284 = vpop.f32.mrf.mxu0
          %v1285 = vadd.f32 0.0, %v1284
          %v1286 = vpop.f32.mrf.mxu0
          %v1287 = vadd.f32 0.0, %v1286
          %1288 = vdwg.mxu0
          %1289 = vmatpush.bf16.msra.mxu0 %v735
          %1290 = vmatpush.bf16.msra.mxu0 %v734
          %1291 = vmatpush.bf16.msra.mxu0 %v733
          %1292 = vmatpush.bf16.msra.mxu0 %v732
          %1293 = vmatpush.bf16.msra.mxu0 %v731
          %1294 = vmatpush.bf16.msra.mxu0 %v730
          %1295 = vmatpush.bf16.msra.mxu0 %v729
          %1296 = vmatpush.bf16.msra.mxu0 %v728
          %1297 = vmatmul.bf16.gmra.mxu0 %v993
          %v1298 = vpop.f32.mrf.mxu0
          %v1299 = vadd.f32 %v1130, %v1298
          %v1300 = vpop.f32.mrf.mxu0
          %v1301 = vadd.f32 %v1132, %v1300
          %1302 = vmatmul.bf16.gmra.mxu0 %v995
          %v1303 = vpop.f32.mrf.mxu0
          %v1304 = vadd.f32 %v1135, %v1303
          %v1305 = vpop.f32.mrf.mxu0
          %v1306 = vadd.f32 %v1137, %v1305
          %1307 = vmatmul.bf16.gmra.mxu0 %v997
          %v1308 = vpop.f32.mrf.mxu0
          %v1309 = vadd.f32 %v1140, %v1308
          %v1310 = vpop.f32.mrf.mxu0
          %v1311 = vadd.f32 %v1142, %v1310
          %1312 = vmatmul.bf16.gmra.mxu0 %v999
          %v1313 = vpop.f32.mrf.mxu0
          %v1314 = vadd.f32 %v1145, %v1313
          %v1315 = vpop.f32.mrf.mxu0
          %v1316 = vadd.f32 %v1147, %v1315
          %1317 = vmatmul.bf16.gmra.mxu0 %v1001
          %v1318 = vpop.f32.mrf.mxu0
          %v1319 = vadd.f32 %v1150, %v1318
          %v1320 = vpop.f32.mrf.mxu0
          %v1321 = vadd.f32 %v1152, %v1320
          %1322 = vmatmul.bf16.gmra.mxu0 %v1003
          %v1323 = vpop.f32.mrf.mxu0
          %v1324 = vadd.f32 %v1155, %v1323
          %v1325 = vpop.f32.mrf.mxu0
          %v1326 = vadd.f32 %v1157, %v1325
          %1327 = vmatmul.bf16.gmra.mxu0 %v1005
          %v1328 = vpop.f32.mrf.mxu0
          %v1329 = vadd.f32 %v1160, %v1328
          %v1330 = vpop.f32.mrf.mxu0
          %v1331 = vadd.f32 %v1162, %v1330
          %1332 = vmatmul.bf16.gmra.mxu0 %v1007
          %v1333 = vpop.f32.mrf.mxu0
          %v1334 = vadd.f32 %v1165, %v1333
          %v1335 = vpop.f32.mrf.mxu0
          %v1336 = vadd.f32 %v1167, %v1335
          %1337 = vmatmul.bf16.gmra.mxu0 %v1009
          %v1338 = vpop.f32.mrf.mxu0
          %v1339 = vadd.f32 %v1170, %v1338
          %v1340 = vpop.f32.mrf.mxu0
          %v1341 = vadd.f32 %v1172, %v1340
          %1342 = vmatmul.bf16.gmra.mxu0 %v1011
          %v1343 = vpop.f32.mrf.mxu0
          %v1344 = vadd.f32 %v1175, %v1343
          %v1345 = vpop.f32.mrf.mxu0
          %v1346 = vadd.f32 %v1177, %v1345
          %1347 = vmatmul.bf16.gmra.mxu0 %v1013
          %v1348 = vpop.f32.mrf.mxu0
          %v1349 = vadd.f32 %v1180, %v1348
          %v1350 = vpop.f32.mrf.mxu0
          %v1351 = vadd.f32 %v1182, %v1350
          %1352 = vmatmul.bf16.gmra.mxu0 %v1015
          %v1353 = vpop.f32.mrf.mxu0
          %v1354 = vadd.f32 %v1185, %v1353
          %v1355 = vpop.f32.mrf.mxu0
          %v1356 = vadd.f32 %v1187, %v1355
          %1357 = vmatmul.bf16.gmra.mxu0 %v1017
          %v1358 = vpop.f32.mrf.mxu0
          %v1359 = vadd.f32 %v1190, %v1358
          %v1360 = vpop.f32.mrf.mxu0
          %v1361 = vadd.f32 %v1192, %v1360
          %1362 = vmatmul.bf16.gmra.mxu0 %v1019
          %v1363 = vpop.f32.mrf.mxu0
          %v1364 = vadd.f32 %v1195, %v1363
          %v1365 = vpop.f32.mrf.mxu0
          %v1366 = vadd.f32 %v1197, %v1365
          %1367 = vmatmul.bf16.gmra.mxu0 %v1021
          %v1368 = vpop.f32.mrf.mxu0
          %v1369 = vadd.f32 %v1200, %v1368
          %v1370 = vpop.f32.mrf.mxu0
          %v1371 = vadd.f32 %v1202, %v1370
          %1372 = vmatmul.bf16.gmra.mxu0 %v1023
          %v1373 = vpop.f32.mrf.mxu0
          %v1374 = vadd.f32 %v1205, %v1373
          %v1375 = vpop.f32.mrf.mxu0
          %v1376 = vadd.f32 %v1207, %v1375
          %1377 = vmatmul.bf16.gmra.mxu0 %v1025
          %v1378 = vpop.f32.mrf.mxu0
          %v1379 = vadd.f32 %v1210, %v1378
          %v1380 = vpop.f32.mrf.mxu0
          %v1381 = vadd.f32 %v1212, %v1380
          %1382 = vmatmul.bf16.gmra.mxu0 %v1027
          %v1383 = vpop.f32.mrf.mxu0
          %v1384 = vadd.f32 %v1215, %v1383
          %v1385 = vpop.f32.mrf.mxu0
          %v1386 = vadd.f32 %v1217, %v1385
          %1387 = vmatmul.bf16.gmra.mxu0 %v1029
          %v1388 = vpop.f32.mrf.mxu0
          %v1389 = vadd.f32 %v1220, %v1388
          %v1390 = vpop.f32.mrf.mxu0
          %v1391 = vadd.f32 %v1222, %v1390
          %1392 = vmatmul.bf16.gmra.mxu0 %v1031
          %v1393 = vpop.f32.mrf.mxu0
          %v1394 = vadd.f32 %v1225, %v1393
          %v1395 = vpop.f32.mrf.mxu0
          %v1396 = vadd.f32 %v1227, %v1395
          %1397 = vmatmul.bf16.gmra.mxu0 %v1033
          %v1398 = vpop.f32.mrf.mxu0
          %v1399 = vadd.f32 %v1230, %v1398
          %v1400 = vpop.f32.mrf.mxu0
          %v1401 = vadd.f32 %v1232, %v1400
          %1402 = vmatmul.bf16.gmra.mxu0 %v1035
          %v1403 = vpop.f32.mrf.mxu0
          %v1404 = vadd.f32 %v1235, %v1403
          %v1405 = vpop.f32.mrf.mxu0
          %v1406 = vadd.f32 %v1237, %v1405
          %1407 = vmatmul.bf16.gmra.mxu0 %v1037
          %v1408 = vpop.f32.mrf.mxu0
          %v1409 = vadd.f32 %v1240, %v1408
          %v1410 = vpop.f32.mrf.mxu0
          %v1411 = vadd.f32 %v1242, %v1410
          %1412 = vmatmul.bf16.gmra.mxu0 %v1039
          %v1413 = vpop.f32.mrf.mxu0
          %v1414 = vadd.f32 %v1245, %v1413
          %v1415 = vpop.f32.mrf.mxu0
          %v1416 = vadd.f32 %v1247, %v1415
          %1417 = vmatmul.bf16.gmra.mxu0 %v1041
          %v1418 = vpop.f32.mrf.mxu0
          %v1419 = vadd.f32 %v1250, %v1418
          %v1420 = vpop.f32.mrf.mxu0
          %v1421 = vadd.f32 %v1252, %v1420
          %1422 = vmatmul.bf16.gmra.mxu0 %v1043
          %v1423 = vpop.f32.mrf.mxu0
          %v1424 = vadd.f32 %v1255, %v1423
          %v1425 = vpop.f32.mrf.mxu0
          %v1426 = vadd.f32 %v1257, %v1425
          %1427 = vmatmul.bf16.gmra.mxu0 %v1045
          %v1428 = vpop.f32.mrf.mxu0
          %v1429 = vadd.f32 %v1260, %v1428
          %v1430 = vpop.f32.mrf.mxu0
          %v1431 = vadd.f32 %v1262, %v1430
          %1432 = vmatmul.bf16.gmra.mxu0 %v1047
          %v1433 = vpop.f32.mrf.mxu0
          %v1434 = vadd.f32 %v1265, %v1433
          %v1435 = vpop.f32.mrf.mxu0
          %v1436 = vadd.f32 %v1267, %v1435
          %1437 = vmatmul.bf16.gmra.mxu0 %v1049
          %v1438 = vpop.f32.mrf.mxu0
          %v1439 = vadd.f32 %v1270, %v1438
          %v1440 = vpop.f32.mrf.mxu0
          %v1441 = vadd.f32 %v1272, %v1440
          %1442 = vmatmul.bf16.gmra.mxu0 %v1051
          %v1443 = vpop.f32.mrf.mxu0
          %v1444 = vadd.f32 %v1275, %v1443
          %v1445 = vpop.f32.mrf.mxu0
          %v1446 = vadd.f32 %v1277, %v1445
          %1447 = vmatmul.bf16.gmra.mxu0 %v1053
          %v1448 = vpop.f32.mrf.mxu0
          %v1449 = vadd.f32 %v1280, %v1448
          %v1450 = vpop.f32.mrf.mxu0
          %v1451 = vadd.f32 %v1282, %v1450
          %1452 = vmatmul.bf16.gmra.mxu0 %v1055
          %v1453 = vpop.f32.mrf.mxu0
          %v1454 = vadd.f32 %v1285, %v1453
          %v1455 = vpop.f32.mrf.mxu0
          %v1456 = vadd.f32 %v1287, %v1455
          %1457 = vdwg.mxu0
          %1458 = vst [vmem:[#allocation2] sm:$0xff] %v1299
          %1459 = vst [vmem:[#allocation2 + $0x8] sm:$0xff] %v1301
          %1460 = vst [vmem:[#allocation2 + $0x10] sm:$0xff] %v1304
          %1461 = vst [vmem:[#allocation2 + $0x18] sm:$0xff] %v1306
          %1462 = vst [vmem:[#allocation2 + $0x20] sm:$0xff] %v1309
          %1463 = vst [vmem:[#allocation2 + $0x28] sm:$0xff] %v1311
          %1464 = vst [vmem:[#allocation2 + $0x30] sm:$0xff] %v1314
          %1465 = vst [vmem:[#allocation2 + $0x38] sm:$0xff] %v1316
          %1466 = vst [vmem:[#allocation2 + $0x40] sm:$0xff] %v1319
          %1467 = vst [vmem:[#allocation2 + $0x48] sm:$0xff] %v1321
          %1468 = vst [vmem:[#allocation2 + $0x50] sm:$0xff] %v1324
          %1469 = vst [vmem:[#allocation2 + $0x58] sm:$0xff] %v1326
          %1470 = vst [vmem:[#allocation2 + $0x60] sm:$0xff] %v1329
          %1471 = vst [vmem:[#allocation2 + $0x68] sm:$0xff] %v1331
          %1472 = vst [vmem:[#allocation2 + $0x70] sm:$0xff] %v1334
          %1473 = vst [vmem:[#allocation2 + $0x78] sm:$0xff] %v1336
          %1474 = vst [vmem:[#allocation2 + $0x80] sm:$0xff] %v1339
          %1475 = vst [vmem:[#allocation2 + $0x88] sm:$0xff] %v1341
          %1476 = vst [vmem:[#allocation2 + $0x90] sm:$0xff] %v1344
          %1477 = vst [vmem:[#allocation2 + $0x98] sm:$0xff] %v1346
          %1478 = vst [vmem:[#allocation2 + $0xa0] sm:$0xff] %v1349
          %1479 = vst [vmem:[#allocation2 + $0xa8] sm:$0xff] %v1351
          %1480 = vst [vmem:[#allocation2 + $0xb0] sm:$0xff] %v1354
          %1481 = vst [vmem:[#allocation2 + $0xb8] sm:$0xff] %v1356
          %1482 = vst [vmem:[#allocation2 + $0xc0] sm:$0xff] %v1359
          %1483 = vst [vmem:[#allocation2 + $0xc8] sm:$0xff] %v1361
          %1484 = vst [vmem:[#allocation2 + $0xd0] sm:$0xff] %v1364
          %1485 = vst [vmem:[#allocation2 + $0xd8] sm:$0xff] %v1366
          %1486 = vst [vmem:[#allocation2 + $0xe0] sm:$0xff] %v1369
          %1487 = vst [vmem:[#allocation2 + $0xe8] sm:$0xff] %v1371
          %1488 = vst [vmem:[#allocation2 + $0xf0] sm:$0xff] %v1374
          %1489 = vst [vmem:[#allocation2 + $0xf8] sm:$0xff] %v1376
          %1490 = vst [vmem:[#allocation2 + $0x100] sm:$0xff] %v1379
          %1491 = vst [vmem:[#allocation2 + $0x108] sm:$0xff] %v1381
          %1492 = vst [vmem:[#allocation2 + $0x110] sm:$0xff] %v1384
          %1493 = vst [vmem:[#allocation2 + $0x118] sm:$0xff] %v1386
          %1494 = vst [vmem:[#allocation2 + $0x120] sm:$0xff] %v1389
          %1495 = vst [vmem:[#allocation2 + $0x128] sm:$0xff] %v1391
          %1496 = vst [vmem:[#allocation2 + $0x130] sm:$0xff] %v1394
          %1497 = vst [vmem:[#allocation2 + $0x138] sm:$0xff] %v1396
          %1498 = vst [vmem:[#allocation2 + $0x140] sm:$0xff] %v1399
          %1499 = vst [vmem:[#allocation2 + $0x148] sm:$0xff] %v1401
          %1500 = vst [vmem:[#allocation2 + $0x150] sm:$0xff] %v1404
          %1501 = vst [vmem:[#allocation2 + $0x158] sm:$0xff] %v1406
          %1502 = vst [vmem:[#allocation2 + $0x160] sm:$0xff] %v1409
          %1503 = vst [vmem:[#allocation2 + $0x168] sm:$0xff] %v1411
          %1504 = vst [vmem:[#allocation2 + $0x170] sm:$0xff] %v1414
          %1505 = vst [vmem:[#allocation2 + $0x178] sm:$0xff] %v1416
          %1506 = vst [vmem:[#allocation2 + $0x180] sm:$0xff] %v1419
          %1507 = vst [vmem:[#allocation2 + $0x188] sm:$0xff] %v1421
          %1508 = vst [vmem:[#allocation2 + $0x190] sm:$0xff] %v1424
          %1509 = vst [vmem:[#allocation2 + $0x198] sm:$0xff] %v1426
          %1510 = vst [vmem:[#allocation2 + $0x1a0] sm:$0xff] %v1429
          %1511 = vst [vmem:[#allocation2 + $0x1a8] sm:$0xff] %v1431
          %1512 = vst [vmem:[#allocation2 + $0x1b0] sm:$0xff] %v1434
          %1513 = vst [vmem:[#allocation2 + $0x1b8] sm:$0xff] %v1436
          %1514 = vst [vmem:[#allocation2 + $0x1c0] sm:$0xff] %v1439
          %1515 = vst [vmem:[#allocation2 + $0x1c8] sm:$0xff] %v1441
          %1516 = vst [vmem:[#allocation2 + $0x1d0] sm:$0xff] %v1444
          %1517 = vst [vmem:[#allocation2 + $0x1d8] sm:$0xff] %v1446
          %1518 = vst [vmem:[#allocation2 + $0x1e0] sm:$0xff] %v1449
          %1519 = vst [vmem:[#allocation2 + $0x1e8] sm:$0xff] %v1451
          %1520 = vst [vmem:[#allocation2 + $0x1f0] sm:$0xff] %v1454
          %1521 = vst [vmem:[#allocation2 + $0x1f8] sm:$0xff] %v1456
        $region64: #{tpu_custom_call.1} parent=39 // pred_fallthru
          _
        %p1522 = scmp.gt.s32.totalorder %s46, 0
        %p1523 = scmp.lt.s32.totalorder %s46, %s434
        %p1524 = pnand %p1522, %p1523
        %p1525 = pneg %p1524
        // Predicated region
        $region65: #{tpu_custom_call.1} parent=39 // pred_check
          _
        $region66: #{tpu_custom_call.1} parent=39 // pred_check_branch
          %1527 = sbr.rel (%p1524) target = $region68
        $region67: #{tpu_custom_call.1} parent=39 // pred_region
          %v1528 = vld [vmem:[#allocation2] sm:$0xff]
          %v1529 = vld [vmem:[#allocation2 + $0x8] sm:$0xff]
          %v1530 = vld [vmem:[#allocation2 + $0x10] sm:$0xff]
          %v1531 = vld [vmem:[#allocation2 + $0x18] sm:$0xff]
          %v1532 = vld [vmem:[#allocation2 + $0x20] sm:$0xff]
          %v1533 = vld [vmem:[#allocation2 + $0x28] sm:$0xff]
          %v1534 = vld [vmem:[#allocation2 + $0x30] sm:$0xff]
          %v1535 = vld [vmem:[#allocation2 + $0x38] sm:$0xff]
          %v1536 = vld [vmem:[#allocation2 + $0x40] sm:$0xff]
          %v1537 = vld [vmem:[#allocation2 + $0x48] sm:$0xff]
          %v1538 = vld [vmem:[#allocation2 + $0x50] sm:$0xff]
          %v1539 = vld [vmem:[#allocation2 + $0x58] sm:$0xff]
          %v1540 = vld [vmem:[#allocation2 + $0x60] sm:$0xff]
          %v1541 = vld [vmem:[#allocation2 + $0x68] sm:$0xff]
          %v1542 = vld [vmem:[#allocation2 + $0x70] sm:$0xff]
          %v1543 = vld [vmem:[#allocation2 + $0x78] sm:$0xff]
          %v1544 = vld [vmem:[#allocation2 + $0x80] sm:$0xff]
          %v1545 = vld [vmem:[#allocation2 + $0x88] sm:$0xff]
          %v1546 = vld [vmem:[#allocation2 + $0x90] sm:$0xff]
          %v1547 = vld [vmem:[#allocation2 + $0x98] sm:$0xff]
          %v1548 = vld [vmem:[#allocation2 + $0xa0] sm:$0xff]
          %v1549 = vld [vmem:[#allocation2 + $0xa8] sm:$0xff]
          %v1550 = vld [vmem:[#allocation2 + $0xb0] sm:$0xff]
          %v1551 = vld [vmem:[#allocation2 + $0xb8] sm:$0xff]
          %v1552 = vld [vmem:[#allocation2 + $0xc0] sm:$0xff]
          %v1553 = vld [vmem:[#allocation2 + $0xc8] sm:$0xff]
          %v1554 = vld [vmem:[#allocation2 + $0xd0] sm:$0xff]
          %v1555 = vld [vmem:[#allocation2 + $0xd8] sm:$0xff]
          %v1556 = vld [vmem:[#allocation2 + $0xe0] sm:$0xff]
          %v1557 = vld [vmem:[#allocation2 + $0xe8] sm:$0xff]
          %v1558 = vld [vmem:[#allocation2 + $0xf0] sm:$0xff]
          %v1559 = vld [vmem:[#allocation2 + $0xf8] sm:$0xff]
          %v1560 = vld [vmem:[#allocation2 + $0x100] sm:$0xff]
          %v1561 = vld [vmem:[#allocation2 + $0x108] sm:$0xff]
          %v1562 = vld [vmem:[#allocation2 + $0x110] sm:$0xff]
          %v1563 = vld [vmem:[#allocation2 + $0x118] sm:$0xff]
          %v1564 = vld [vmem:[#allocation2 + $0x120] sm:$0xff]
          %v1565 = vld [vmem:[#allocation2 + $0x128] sm:$0xff]
          %v1566 = vld [vmem:[#allocation2 + $0x130] sm:$0xff]
          %v1567 = vld [vmem:[#allocation2 + $0x138] sm:$0xff]
          %v1568 = vld [vmem:[#allocation2 + $0x140] sm:$0xff]
          %v1569 = vld [vmem:[#allocation2 + $0x148] sm:$0xff]
          %v1570 = vld [vmem:[#allocation2 + $0x150] sm:$0xff]
          %v1571 = vld [vmem:[#allocation2 + $0x158] sm:$0xff]
          %v1572 = vld [vmem:[#allocation2 + $0x160] sm:$0xff]
          %v1573 = vld [vmem:[#allocation2 + $0x168] sm:$0xff]
          %v1574 = vld [vmem:[#allocation2 + $0x170] sm:$0xff]
          %v1575 = vld [vmem:[#allocation2 + $0x178] sm:$0xff]
          %v1576 = vld [vmem:[#allocation2 + $0x180] sm:$0xff]
          %v1577 = vld [vmem:[#allocation2 + $0x188] sm:$0xff]
          %v1578 = vld [vmem:[#allocation2 + $0x190] sm:$0xff]
          %v1579 = vld [vmem:[#allocation2 + $0x198] sm:$0xff]
          %v1580 = vld [vmem:[#allocation2 + $0x1a0] sm:$0xff]
          %v1581 = vld [vmem:[#allocation2 + $0x1a8] sm:$0xff]
          %v1582 = vld [vmem:[#allocation2 + $0x1b0] sm:$0xff]
          %v1583 = vld [vmem:[#allocation2 + $0x1b8] sm:$0xff]
          %v1584 = vld [vmem:[#allocation2 + $0x1c0] sm:$0xff]
          %v1585 = vld [vmem:[#allocation2 + $0x1c8] sm:$0xff]
          %v1586 = vld [vmem:[#allocation2 + $0x1d0] sm:$0xff]
          %v1587 = vld [vmem:[#allocation2 + $0x1d8] sm:$0xff]
          %v1588 = vld [vmem:[#allocation2 + $0x1e0] sm:$0xff]
          %v1589 = vld [vmem:[#allocation2 + $0x1e8] sm:$0xff]
          %v1590 = vld [vmem:[#allocation2 + $0x1f0] sm:$0xff]
          %v1591 = vld [vmem:[#allocation2 + $0x1f8] sm:$0xff]
          %v1592 = vld [vmem:[%s366] sm:$0xf]
          %v1593 = vld [vmem:[%s366 + $0x4] sm:$0xf]
          %v1594 = vld [vmem:[%s366 + $0x8] sm:$0xf]
          %v1595 = vld [vmem:[%s366 + $0xc] sm:$0xf]
          %v1596 = vld [vmem:[%s366 + $0x10] sm:$0xf]
          %v1597 = vld [vmem:[%s366 + $0x14] sm:$0xf]
          %v1598 = vld [vmem:[%s366 + $0x18] sm:$0xf]
          %v1599 = vld [vmem:[%s366 + $0x1c] sm:$0xf]
          %v1600 = vld [vmem:[%s366 + $0x20] sm:$0xf]
          %v1601 = vld [vmem:[%s366 + $0x24] sm:$0xf]
          %v1602 = vld [vmem:[%s366 + $0x28] sm:$0xf]
          %v1603 = vld [vmem:[%s366 + $0x2c] sm:$0xf]
          %v1604 = vld [vmem:[%s366 + $0x30] sm:$0xf]
          %v1605 = vld [vmem:[%s366 + $0x34] sm:$0xf]
          %v1606 = vld [vmem:[%s366 + $0x38] sm:$0xf]
          %v1607 = vld [vmem:[%s366 + $0x3c] sm:$0xf]
          %v1608 = vld [vmem:[%s366 + $0x40] sm:$0xf]
          %v1609 = vld [vmem:[%s366 + $0x44] sm:$0xf]
          %v1610 = vld [vmem:[%s366 + $0x48] sm:$0xf]
          %v1611 = vld [vmem:[%s366 + $0x4c] sm:$0xf]
          %v1612 = vld [vmem:[%s366 + $0x50] sm:$0xf]
          %v1613 = vld [vmem:[%s366 + $0x54] sm:$0xf]
          %v1614 = vld [vmem:[%s366 + $0x58] sm:$0xf]
          %v1615 = vld [vmem:[%s366 + $0x5c] sm:$0xf]
          %v1616 = vld [vmem:[%s366 + $0x60] sm:$0xf]
          %v1617 = vld [vmem:[%s366 + $0x64] sm:$0xf]
          %v1618 = vld [vmem:[%s366 + $0x68] sm:$0xf]
          %v1619 = vld [vmem:[%s366 + $0x6c] sm:$0xf]
          %v1620 = vld [vmem:[%s366 + $0x70] sm:$0xf]
          %v1621 = vld [vmem:[%s366 + $0x74] sm:$0xf]
          %v1622 = vld [vmem:[%s366 + $0x78] sm:$0xf]
          %v1623 = vld [vmem:[%s366 + $0x7c] sm:$0xf]
          %v1624 = vld [vmem:[#allocation11] sm:$0xf]
          %v1625 = vld [vmem:[#allocation11 + $0x4] sm:$0xf]
          %v1626 = vld [vmem:[#allocation11 + $0x8] sm:$0xf]
          %v1627 = vld [vmem:[#allocation11 + $0xc] sm:$0xf]
          %v1628 = vld [vmem:[#allocation11 + $0x10] sm:$0xf]
          %v1629 = vld [vmem:[#allocation11 + $0x14] sm:$0xf]
          %v1630 = vld [vmem:[#allocation11 + $0x18] sm:$0xf]
          %v1631 = vld [vmem:[#allocation11 + $0x1c] sm:$0xf]
          %v1632 = vld [vmem:[#allocation11 + $0x20] sm:$0xf]
          %v1633 = vld [vmem:[#allocation11 + $0x24] sm:$0xf]
          %v1634 = vld [vmem:[#allocation11 + $0x28] sm:$0xf]
          %v1635 = vld [vmem:[#allocation11 + $0x2c] sm:$0xf]
          %v1636 = vld [vmem:[#allocation11 + $0x30] sm:$0xf]
          %v1637 = vld [vmem:[#allocation11 + $0x34] sm:$0xf]
          %v1638 = vld [vmem:[#allocation11 + $0x38] sm:$0xf]
          %v1639 = vld [vmem:[#allocation11 + $0x3c] sm:$0xf]
          %v1672 = vunpack.c.l.b16 %v1592
          %v1673 = vunpack.c.l.b16 %v1593
          %v1674 = vunpack.c.l.b16 %v1594
          %v1675 = vunpack.c.l.b16 %v1595
          %v1676 = vunpack.c.l.b16 %v1596
          %v1677 = vunpack.c.l.b16 %v1597
          %v1678 = vunpack.c.l.b16 %v1598
          %v1679 = vunpack.c.l.b16 %v1599
          %v1680 = vunpack.c.l.b16 %v1600
          %v1681 = vunpack.c.l.b16 %v1601
          %v1682 = vunpack.c.l.b16 %v1602
          %v1683 = vunpack.c.l.b16 %v1603
          %v1684 = vunpack.c.l.b16 %v1604
          %v1685 = vunpack.c.l.b16 %v1605
          %v1686 = vunpack.c.l.b16 %v1606
          %v1687 = vunpack.c.l.b16 %v1607
          %v1688 = vunpack.c.l.b16 %v1608
          %v1689 = vunpack.c.l.b16 %v1609
          %v1690 = vunpack.c.l.b16 %v1610
          %v1691 = vunpack.c.l.b16 %v1611
          %v1692 = vunpack.c.l.b16 %v1612
          %v1693 = vunpack.c.l.b16 %v1613
          %v1694 = vunpack.c.l.b16 %v1614
          %v1695 = vunpack.c.l.b16 %v1615
          %v1696 = vunpack.c.l.b16 %v1616
          %v1697 = vunpack.c.l.b16 %v1617
          %v1698 = vunpack.c.l.b16 %v1618
          %v1699 = vunpack.c.l.b16 %v1619
          %v1700 = vunpack.c.l.b16 %v1620
          %v1701 = vunpack.c.l.b16 %v1621
          %v1702 = vunpack.c.l.b16 %v1622
          %v1703 = vunpack.c.l.b16 %v1623
          %v1704 = vpack.c.b16 %v1673, %v1672
          %v1705 = vpack.c.b16 %v1675, %v1674
          %v1706 = vpack.c.b16 %v1677, %v1676
          %v1707 = vpack.c.b16 %v1679, %v1678
          %v1708 = vpack.c.b16 %v1681, %v1680
          %v1709 = vpack.c.b16 %v1683, %v1682
          %v1710 = vpack.c.b16 %v1685, %v1684
          %v1711 = vpack.c.b16 %v1687, %v1686
          %v1712 = vpack.c.b16 %v1689, %v1688
          %v1713 = vpack.c.b16 %v1691, %v1690
          %v1714 = vpack.c.b16 %v1693, %v1692
          %v1715 = vpack.c.b16 %v1695, %v1694
          %v1716 = vpack.c.b16 %v1697, %v1696
          %v1717 = vpack.c.b16 %v1699, %v1698
          %v1718 = vpack.c.b16 %v1701, %v1700
          %v1719 = vpack.c.b16 %v1703, %v1702
          %v1752 = vunpack.c.l.b16 %v1624
          %v1753 = vunpack.c.l.b16 %v1625
          %v1754 = vunpack.c.l.b16 %v1626
          %v1755 = vunpack.c.l.b16 %v1627
          %v1756 = vunpack.c.l.b16 %v1628
          %v1757 = vunpack.c.l.b16 %v1629
          %v1758 = vunpack.c.l.b16 %v1630
          %v1759 = vunpack.c.l.b16 %v1631
          %v1760 = vunpack.c.l.b16 %v1632
          %v1761 = vunpack.c.l.b16 %v1633
          %v1762 = vunpack.c.l.b16 %v1634
          %v1763 = vunpack.c.l.b16 %v1635
          %v1764 = vunpack.c.l.b16 %v1636
          %v1765 = vunpack.c.l.b16 %v1637
          %v1766 = vunpack.c.l.b16 %v1638
          %v1767 = vunpack.c.l.b16 %v1639
          %v1768 = vpack.c.b16 %v1753, %v1752
          %v1769 = vpack.c.b16 %v1755, %v1754
          %v1770 = vpack.c.b16 %v1757, %v1756
          %v1771 = vpack.c.b16 %v1759, %v1758
          %v1772 = vpack.c.b16 %v1761, %v1760
          %v1773 = vpack.c.b16 %v1763, %v1762
          %v1774 = vpack.c.b16 %v1765, %v1764
          %v1775 = vpack.c.b16 %v1767, %v1766
          %1784 = vmatpush.bf16.msra.mxu0 %v1775
          %1785 = vmatpush.bf16.msra.mxu0 %v1774
          %1786 = vmatpush.bf16.msra.mxu0 %v1773
          %1787 = vmatpush.bf16.msra.mxu0 %v1772
          %1788 = vmatpush.bf16.msra.mxu0 %v1771
          %1789 = vmatpush.bf16.msra.mxu0 %v1770
          %1790 = vmatpush.bf16.msra.mxu0 %v1769
          %1791 = vmatpush.bf16.msra.mxu0 %v1768
          %1792 = vmatmul.bf16.gmra.mxu0 %v1704
          %v1793 = vpop.f32.mrf.mxu0
          %v1794 = vadd.f32 0.0, %v1793
          %v1795 = vpop.f32.mrf.mxu0
          %v1796 = vadd.f32 0.0, %v1795
          %1797 = vmatmul.bf16.gmra.mxu0 %v1705
          %v1798 = vpop.f32.mrf.mxu0
          %v1799 = vadd.f32 0.0, %v1798
          %v1800 = vpop.f32.mrf.mxu0
          %v1801 = vadd.f32 0.0, %v1800
          %1802 = vmatmul.bf16.gmra.mxu0 %v1706
          %v1803 = vpop.f32.mrf.mxu0
          %v1804 = vadd.f32 0.0, %v1803
          %v1805 = vpop.f32.mrf.mxu0
          %v1806 = vadd.f32 0.0, %v1805
          %1807 = vmatmul.bf16.gmra.mxu0 %v1707
          %v1808 = vpop.f32.mrf.mxu0
          %v1809 = vadd.f32 0.0, %v1808
          %v1810 = vpop.f32.mrf.mxu0
          %v1811 = vadd.f32 0.0, %v1810
          %1812 = vmatmul.bf16.gmra.mxu0 %v1708
          %v1813 = vpop.f32.mrf.mxu0
          %v1814 = vadd.f32 0.0, %v1813
          %v1815 = vpop.f32.mrf.mxu0
          %v1816 = vadd.f32 0.0, %v1815
          %1817 = vmatmul.bf16.gmra.mxu0 %v1709
          %v1818 = vpop.f32.mrf.mxu0
          %v1819 = vadd.f32 0.0, %v1818
          %v1820 = vpop.f32.mrf.mxu0
          %v1821 = vadd.f32 0.0, %v1820
          %1822 = vmatmul.bf16.gmra.mxu0 %v1710
          %v1823 = vpop.f32.mrf.mxu0
          %v1824 = vadd.f32 0.0, %v1823
          %v1825 = vpop.f32.mrf.mxu0
          %v1826 = vadd.f32 0.0, %v1825
          %1827 = vmatmul.bf16.gmra.mxu0 %v1711
          %v1828 = vpop.f32.mrf.mxu0
          %v1829 = vadd.f32 0.0, %v1828
          %v1830 = vpop.f32.mrf.mxu0
          %v1831 = vadd.f32 0.0, %v1830
          %1832 = vmatmul.bf16.gmra.mxu0 %v1712
          %v1833 = vpop.f32.mrf.mxu0
          %v1834 = vadd.f32 0.0, %v1833
          %v1835 = vpop.f32.mrf.mxu0
          %v1836 = vadd.f32 0.0, %v1835
          %1837 = vmatmul.bf16.gmra.mxu0 %v1713
          %v1838 = vpop.f32.mrf.mxu0
          %v1839 = vadd.f32 0.0, %v1838
          %v1840 = vpop.f32.mrf.mxu0
          %v1841 = vadd.f32 0.0, %v1840
          %1842 = vmatmul.bf16.gmra.mxu0 %v1714
          %v1843 = vpop.f32.mrf.mxu0
          %v1844 = vadd.f32 0.0, %v1843
          %v1845 = vpop.f32.mrf.mxu0
          %v1846 = vadd.f32 0.0, %v1845
          %1847 = vmatmul.bf16.gmra.mxu0 %v1715
          %v1848 = vpop.f32.mrf.mxu0
          %v1849 = vadd.f32 0.0, %v1848
          %v1850 = vpop.f32.mrf.mxu0
          %v1851 = vadd.f32 0.0, %v1850
          %1852 = vmatmul.bf16.gmra.mxu0 %v1716
          %v1853 = vpop.f32.mrf.mxu0
          %v1854 = vadd.f32 0.0, %v1853
          %v1855 = vpop.f32.mrf.mxu0
          %v1856 = vadd.f32 0.0, %v1855
          %1857 = vmatmul.bf16.gmra.mxu0 %v1717
          %v1858 = vpop.f32.mrf.mxu0
          %v1859 = vadd.f32 0.0, %v1858
          %v1860 = vpop.f32.mrf.mxu0
          %v1861 = vadd.f32 0.0, %v1860
          %1862 = vmatmul.bf16.gmra.mxu0 %v1718
          %v1863 = vpop.f32.mrf.mxu0
          %v1864 = vadd.f32 0.0, %v1863
          %v1865 = vpop.f32.mrf.mxu0
          %v1866 = vadd.f32 0.0, %v1865
          %1867 = vmatmul.bf16.gmra.mxu0 %v1719
          %v1868 = vpop.f32.mrf.mxu0
          %v1869 = vadd.f32 0.0, %v1868
          %v1870 = vpop.f32.mrf.mxu0
          %v1871 = vadd.f32 0.0, %v1870
          %1872 = vdwg.mxu0
          %v1873 = vpack.c.bf16 %v1796, %v1794
          %v1874 = vpack.c.bf16 %v1801, %v1799
          %v1875 = vpack.c.bf16 %v1806, %v1804
          %v1876 = vpack.c.bf16 %v1811, %v1809
          %v1877 = vpack.c.bf16 %v1816, %v1814
          %v1878 = vpack.c.bf16 %v1821, %v1819
          %v1879 = vpack.c.bf16 %v1826, %v1824
          %v1880 = vpack.c.bf16 %v1831, %v1829
          %v1881 = vpack.c.bf16 %v1836, %v1834
          %v1882 = vpack.c.bf16 %v1841, %v1839
          %v1883 = vpack.c.bf16 %v1846, %v1844
          %v1884 = vpack.c.bf16 %v1851, %v1849
          %v1885 = vpack.c.bf16 %v1856, %v1854
          %v1886 = vpack.c.bf16 %v1861, %v1859
          %v1887 = vpack.c.bf16 %v1866, %v1864
          %v1888 = vpack.c.bf16 %v1871, %v1869
          %v1889 = vld [vmem:[%s356] sm:$0xff]
          %v1890 = vld [vmem:[%s356 + $0x8] sm:$0xff]
          %v1891 = vld [vmem:[%s356 + $0x10] sm:$0xff]
          %v1892 = vld [vmem:[%s356 + $0x18] sm:$0xff]
          %v1893 = vld [vmem:[%s356 + $0x20] sm:$0xff]
          %v1894 = vld [vmem:[%s356 + $0x28] sm:$0xff]
          %v1895 = vld [vmem:[%s356 + $0x30] sm:$0xff]
          %v1896 = vld [vmem:[%s356 + $0x38] sm:$0xff]
          %v1897 = vld [vmem:[%s356 + $0x40] sm:$0xff]
          %v1898 = vld [vmem:[%s356 + $0x48] sm:$0xff]
          %v1899 = vld [vmem:[%s356 + $0x50] sm:$0xff]
          %v1900 = vld [vmem:[%s356 + $0x58] sm:$0xff]
          %v1901 = vld [vmem:[%s356 + $0x60] sm:$0xff]
          %v1902 = vld [vmem:[%s356 + $0x68] sm:$0xff]
          %v1903 = vld [vmem:[%s356 + $0x70] sm:$0xff]
          %v1904 = vld [vmem:[%s356 + $0x78] sm:$0xff]
          %v1905 = vld [vmem:[%s356 + $0x80] sm:$0xff]
          %v1906 = vld [vmem:[%s356 + $0x88] sm:$0xff]
          %v1907 = vld [vmem:[%s356 + $0x90] sm:$0xff]
          %v1908 = vld [vmem:[%s356 + $0x98] sm:$0xff]
          %v1909 = vld [vmem:[%s356 + $0xa0] sm:$0xff]
          %v1910 = vld [vmem:[%s356 + $0xa8] sm:$0xff]
          %v1911 = vld [vmem:[%s356 + $0xb0] sm:$0xff]
          %v1912 = vld [vmem:[%s356 + $0xb8] sm:$0xff]
          %v1913 = vld [vmem:[%s356 + $0xc0] sm:$0xff]
          %v1914 = vld [vmem:[%s356 + $0xc8] sm:$0xff]
          %v1915 = vld [vmem:[%s356 + $0xd0] sm:$0xff]
          %v1916 = vld [vmem:[%s356 + $0xd8] sm:$0xff]
          %v1917 = vld [vmem:[%s356 + $0xe0] sm:$0xff]
          %v1918 = vld [vmem:[%s356 + $0xe8] sm:$0xff]
          %v1919 = vld [vmem:[%s356 + $0xf0] sm:$0xff]
          %v1920 = vld [vmem:[%s356 + $0xf8] sm:$0xff]
          %v1921 = vld [vmem:[%s356 + $0x100] sm:$0xff]
          %v1922 = vld [vmem:[%s356 + $0x108] sm:$0xff]
          %v1923 = vld [vmem:[%s356 + $0x110] sm:$0xff]
          %v1924 = vld [vmem:[%s356 + $0x118] sm:$0xff]
          %v1925 = vld [vmem:[%s356 + $0x120] sm:$0xff]
          %v1926 = vld [vmem:[%s356 + $0x128] sm:$0xff]
          %v1927 = vld [vmem:[%s356 + $0x130] sm:$0xff]
          %v1928 = vld [vmem:[%s356 + $0x138] sm:$0xff]
          %v1929 = vld [vmem:[%s356 + $0x140] sm:$0xff]
          %v1930 = vld [vmem:[%s356 + $0x148] sm:$0xff]
          %v1931 = vld [vmem:[%s356 + $0x150] sm:$0xff]
          %v1932 = vld [vmem:[%s356 + $0x158] sm:$0xff]
          %v1933 = vld [vmem:[%s356 + $0x160] sm:$0xff]
          %v1934 = vld [vmem:[%s356 + $0x168] sm:$0xff]
          %v1935 = vld [vmem:[%s356 + $0x170] sm:$0xff]
          %v1936 = vld [vmem:[%s356 + $0x178] sm:$0xff]
          %v1937 = vld [vmem:[%s356 + $0x180] sm:$0xff]
          %v1938 = vld [vmem:[%s356 + $0x188] sm:$0xff]
          %v1939 = vld [vmem:[%s356 + $0x190] sm:$0xff]
          %v1940 = vld [vmem:[%s356 + $0x198] sm:$0xff]
          %v1941 = vld [vmem:[%s356 + $0x1a0] sm:$0xff]
          %v1942 = vld [vmem:[%s356 + $0x1a8] sm:$0xff]
          %v1943 = vld [vmem:[%s356 + $0x1b0] sm:$0xff]
          %v1944 = vld [vmem:[%s356 + $0x1b8] sm:$0xff]
          %v1945 = vld [vmem:[%s356 + $0x1c0] sm:$0xff]
          %v1946 = vld [vmem:[%s356 + $0x1c8] sm:$0xff]
          %v1947 = vld [vmem:[%s356 + $0x1d0] sm:$0xff]
          %v1948 = vld [vmem:[%s356 + $0x1d8] sm:$0xff]
          %v1949 = vld [vmem:[%s356 + $0x1e0] sm:$0xff]
          %v1950 = vld [vmem:[%s356 + $0x1e8] sm:$0xff]
          %v1951 = vld [vmem:[%s356 + $0x1f0] sm:$0xff]
          %v1952 = vld [vmem:[%s356 + $0x1f8] sm:$0xff]
          %v2017 = vunpack.c.l.b16 %v1889
          %v2018 = vunpack.c.h.b16 %v1889
          %v2019 = vunpack.c.l.b16 %v1890
          %v2020 = vunpack.c.h.b16 %v1890
          %v2021 = vunpack.c.l.b16 %v1891
          %v2022 = vunpack.c.h.b16 %v1891
          %v2023 = vunpack.c.l.b16 %v1892
          %v2024 = vunpack.c.h.b16 %v1892
          %v2025 = vunpack.c.l.b16 %v1893
          %v2026 = vunpack.c.h.b16 %v1893
          %v2027 = vunpack.c.l.b16 %v1894
          %v2028 = vunpack.c.h.b16 %v1894
          %v2029 = vunpack.c.l.b16 %v1895
          %v2030 = vunpack.c.h.b16 %v1895
          %v2031 = vunpack.c.l.b16 %v1896
          %v2032 = vunpack.c.h.b16 %v1896
          %v2033 = vunpack.c.l.b16 %v1897
          %v2034 = vunpack.c.h.b16 %v1897
          %v2035 = vunpack.c.l.b16 %v1898
          %v2036 = vunpack.c.h.b16 %v1898
          %v2037 = vunpack.c.l.b16 %v1899
          %v2038 = vunpack.c.h.b16 %v1899
          %v2039 = vunpack.c.l.b16 %v1900
          %v2040 = vunpack.c.h.b16 %v1900
          %v2041 = vunpack.c.l.b16 %v1901
          %v2042 = vunpack.c.h.b16 %v1901
          %v2043 = vunpack.c.l.b16 %v1902
          %v2044 = vunpack.c.h.b16 %v1902
          %v2045 = vunpack.c.l.b16 %v1903
          %v2046 = vunpack.c.h.b16 %v1903
          %v2047 = vunpack.c.l.b16 %v1904
          %v2048 = vunpack.c.h.b16 %v1904
          %v2049 = vunpack.c.l.b16 %v1905
          %v2050 = vunpack.c.h.b16 %v1905
          %v2051 = vunpack.c.l.b16 %v1906
          %v2052 = vunpack.c.h.b16 %v1906
          %v2053 = vunpack.c.l.b16 %v1907
          %v2054 = vunpack.c.h.b16 %v1907
          %v2055 = vunpack.c.l.b16 %v1908
          %v2056 = vunpack.c.h.b16 %v1908
          %v2057 = vunpack.c.l.b16 %v1909
          %v2058 = vunpack.c.h.b16 %v1909
          %v2059 = vunpack.c.l.b16 %v1910
          %v2060 = vunpack.c.h.b16 %v1910
          %v2061 = vunpack.c.l.b16 %v1911
          %v2062 = vunpack.c.h.b16 %v1911
          %v2063 = vunpack.c.l.b16 %v1912
          %v2064 = vunpack.c.h.b16 %v1912
          %v2065 = vunpack.c.l.b16 %v1913
          %v2066 = vunpack.c.h.b16 %v1913
          %v2067 = vunpack.c.l.b16 %v1914
          %v2068 = vunpack.c.h.b16 %v1914
          %v2069 = vunpack.c.l.b16 %v1915
          %v2070 = vunpack.c.h.b16 %v1915
          %v2071 = vunpack.c.l.b16 %v1916
          %v2072 = vunpack.c.h.b16 %v1916
          %v2073 = vunpack.c.l.b16 %v1917
          %v2074 = vunpack.c.h.b16 %v1917
          %v2075 = vunpack.c.l.b16 %v1918
          %v2076 = vunpack.c.h.b16 %v1918
          %v2077 = vunpack.c.l.b16 %v1919
          %v2078 = vunpack.c.h.b16 %v1919
          %v2079 = vunpack.c.l.b16 %v1920
          %v2080 = vunpack.c.h.b16 %v1920
          %v2081 = vunpack.c.l.b16 %v1921
          %v2082 = vunpack.c.h.b16 %v1921
          %v2083 = vunpack.c.l.b16 %v1922
          %v2084 = vunpack.c.h.b16 %v1922
          %v2085 = vunpack.c.l.b16 %v1923
          %v2086 = vunpack.c.h.b16 %v1923
          %v2087 = vunpack.c.l.b16 %v1924
          %v2088 = vunpack.c.h.b16 %v1924
          %v2089 = vunpack.c.l.b16 %v1925
          %v2090 = vunpack.c.h.b16 %v1925
          %v2091 = vunpack.c.l.b16 %v1926
          %v2092 = vunpack.c.h.b16 %v1926
          %v2093 = vunpack.c.l.b16 %v1927
          %v2094 = vunpack.c.h.b16 %v1927
          %v2095 = vunpack.c.l.b16 %v1928
          %v2096 = vunpack.c.h.b16 %v1928
          %v2097 = vunpack.c.l.b16 %v1929
          %v2098 = vunpack.c.h.b16 %v1929
          %v2099 = vunpack.c.l.b16 %v1930
          %v2100 = vunpack.c.h.b16 %v1930
          %v2101 = vunpack.c.l.b16 %v1931
          %v2102 = vunpack.c.h.b16 %v1931
          %v2103 = vunpack.c.l.b16 %v1932
          %v2104 = vunpack.c.h.b16 %v1932
          %v2105 = vunpack.c.l.b16 %v1933
          %v2106 = vunpack.c.h.b16 %v1933
          %v2107 = vunpack.c.l.b16 %v1934
          %v2108 = vunpack.c.h.b16 %v1934
          %v2109 = vunpack.c.l.b16 %v1935
          %v2110 = vunpack.c.h.b16 %v1935
          %v2111 = vunpack.c.l.b16 %v1936
          %v2112 = vunpack.c.h.b16 %v1936
          %v2113 = vunpack.c.l.b16 %v1937
          %v2114 = vunpack.c.h.b16 %v1937
          %v2115 = vunpack.c.l.b16 %v1938
          %v2116 = vunpack.c.h.b16 %v1938
          %v2117 = vunpack.c.l.b16 %v1939
          %v2118 = vunpack.c.h.b16 %v1939
          %v2119 = vunpack.c.l.b16 %v1940
          %v2120 = vunpack.c.h.b16 %v1940
          %v2121 = vunpack.c.l.b16 %v1941
          %v2122 = vunpack.c.h.b16 %v1941
          %v2123 = vunpack.c.l.b16 %v1942
          %v2124 = vunpack.c.h.b16 %v1942
          %v2125 = vunpack.c.l.b16 %v1943
          %v2126 = vunpack.c.h.b16 %v1943
          %v2127 = vunpack.c.l.b16 %v1944
          %v2128 = vunpack.c.h.b16 %v1944
          %v2129 = vunpack.c.l.b16 %v1945
          %v2130 = vunpack.c.h.b16 %v1945
          %v2131 = vunpack.c.l.b16 %v1946
          %v2132 = vunpack.c.h.b16 %v1946
          %v2133 = vunpack.c.l.b16 %v1947
          %v2134 = vunpack.c.h.b16 %v1947
          %v2135 = vunpack.c.l.b16 %v1948
          %v2136 = vunpack.c.h.b16 %v1948
          %v2137 = vunpack.c.l.b16 %v1949
          %v2138 = vunpack.c.h.b16 %v1949
          %v2139 = vunpack.c.l.b16 %v1950
          %v2140 = vunpack.c.h.b16 %v1950
          %v2141 = vunpack.c.l.b16 %v1951
          %v2142 = vunpack.c.h.b16 %v1951
          %v2143 = vunpack.c.l.b16 %v1952
          %v2144 = vunpack.c.h.b16 %v1952
          %v2145 = vpack.c.b16 %v2019, %v2017
          %v2146 = vpack.c.b16 %v2020, %v2018
          %v2147 = vpack.c.b16 %v2023, %v2021
          %v2148 = vpack.c.b16 %v2024, %v2022
          %v2149 = vpack.c.b16 %v2027, %v2025
          %v2150 = vpack.c.b16 %v2028, %v2026
          %v2151 = vpack.c.b16 %v2031, %v2029
          %v2152 = vpack.c.b16 %v2032, %v2030
          %v2153 = vpack.c.b16 %v2035, %v2033
          %v2154 = vpack.c.b16 %v2036, %v2034
          %v2155 = vpack.c.b16 %v2039, %v2037
          %v2156 = vpack.c.b16 %v2040, %v2038
          %v2157 = vpack.c.b16 %v2043, %v2041
          %v2158 = vpack.c.b16 %v2044, %v2042
          %v2159 = vpack.c.b16 %v2047, %v2045
          %v2160 = vpack.c.b16 %v2048, %v2046
          %v2161 = vpack.c.b16 %v2051, %v2049
          %v2162 = vpack.c.b16 %v2052, %v2050
          %v2163 = vpack.c.b16 %v2055, %v2053
          %v2164 = vpack.c.b16 %v2056, %v2054
          %v2165 = vpack.c.b16 %v2059, %v2057
          %v2166 = vpack.c.b16 %v2060, %v2058
          %v2167 = vpack.c.b16 %v2063, %v2061
          %v2168 = vpack.c.b16 %v2064, %v2062
          %v2169 = vpack.c.b16 %v2067, %v2065
          %v2170 = vpack.c.b16 %v2068, %v2066
          %v2171 = vpack.c.b16 %v2071, %v2069
          %v2172 = vpack.c.b16 %v2072, %v2070
          %v2173 = vpack.c.b16 %v2075, %v2073
          %v2174 = vpack.c.b16 %v2076, %v2074
          %v2175 = vpack.c.b16 %v2079, %v2077
          %v2176 = vpack.c.b16 %v2080, %v2078
          %v2177 = vpack.c.b16 %v2083, %v2081
          %v2178 = vpack.c.b16 %v2084, %v2082
          %v2179 = vpack.c.b16 %v2087, %v2085
          %v2180 = vpack.c.b16 %v2088, %v2086
          %v2181 = vpack.c.b16 %v2091, %v2089
          %v2182 = vpack.c.b16 %v2092, %v2090
          %v2183 = vpack.c.b16 %v2095, %v2093
          %v2184 = vpack.c.b16 %v2096, %v2094
          %v2185 = vpack.c.b16 %v2099, %v2097
          %v2186 = vpack.c.b16 %v2100, %v2098
          %v2187 = vpack.c.b16 %v2103, %v2101
          %v2188 = vpack.c.b16 %v2104, %v2102
          %v2189 = vpack.c.b16 %v2107, %v2105
          %v2190 = vpack.c.b16 %v2108, %v2106
          %v2191 = vpack.c.b16 %v2111, %v2109
          %v2192 = vpack.c.b16 %v2112, %v2110
          %v2193 = vpack.c.b16 %v2115, %v2113
          %v2194 = vpack.c.b16 %v2116, %v2114
          %v2195 = vpack.c.b16 %v2119, %v2117
          %v2196 = vpack.c.b16 %v2120, %v2118
          %v2197 = vpack.c.b16 %v2123, %v2121
          %v2198 = vpack.c.b16 %v2124, %v2122
          %v2199 = vpack.c.b16 %v2127, %v2125
          %v2200 = vpack.c.b16 %v2128, %v2126
          %v2201 = vpack.c.b16 %v2131, %v2129
          %v2202 = vpack.c.b16 %v2132, %v2130
          %v2203 = vpack.c.b16 %v2135, %v2133
          %v2204 = vpack.c.b16 %v2136, %v2134
          %v2205 = vpack.c.b16 %v2139, %v2137
          %v2206 = vpack.c.b16 %v2140, %v2138
          %v2207 = vpack.c.b16 %v2143, %v2141
          %v2208 = vpack.c.b16 %v2144, %v2142
          %2273 = vmatpush.bf16.msra.mxu0 %v1880
          %2274 = vmatpush.bf16.msra.mxu0 %v1879
          %2275 = vmatpush.bf16.msra.mxu0 %v1878
          %2276 = vmatpush.bf16.msra.mxu0 %v1877
          %2277 = vmatpush.bf16.msra.mxu0 %v1876
          %2278 = vmatpush.bf16.msra.mxu0 %v1875
          %2279 = vmatpush.bf16.msra.mxu0 %v1874
          %2280 = vmatpush.bf16.msra.mxu0 %v1873
          %2281 = vmatmul.bf16.gmra.mxu0 %v2145
          %v2282 = vpop.f32.mrf.mxu0
          %v2283 = vadd.f32 0.0, %v2282
          %v2284 = vpop.f32.mrf.mxu0
          %v2285 = vadd.f32 0.0, %v2284
          %2286 = vmatmul.bf16.gmra.mxu0 %v2147
          %v2287 = vpop.f32.mrf.mxu0
          %v2288 = vadd.f32 0.0, %v2287
          %v2289 = vpop.f32.mrf.mxu0
          %v2290 = vadd.f32 0.0, %v2289
          %2291 = vmatmul.bf16.gmra.mxu0 %v2149
          %v2292 = vpop.f32.mrf.mxu0
          %v2293 = vadd.f32 0.0, %v2292
          %v2294 = vpop.f32.mrf.mxu0
          %v2295 = vadd.f32 0.0, %v2294
          %2296 = vmatmul.bf16.gmra.mxu0 %v2151
          %v2297 = vpop.f32.mrf.mxu0
          %v2298 = vadd.f32 0.0, %v2297
          %v2299 = vpop.f32.mrf.mxu0
          %v2300 = vadd.f32 0.0, %v2299
          %2301 = vmatmul.bf16.gmra.mxu0 %v2153
          %v2302 = vpop.f32.mrf.mxu0
          %v2303 = vadd.f32 0.0, %v2302
          %v2304 = vpop.f32.mrf.mxu0
          %v2305 = vadd.f32 0.0, %v2304
          %2306 = vmatmul.bf16.gmra.mxu0 %v2155
          %v2307 = vpop.f32.mrf.mxu0
          %v2308 = vadd.f32 0.0, %v2307
          %v2309 = vpop.f32.mrf.mxu0
          %v2310 = vadd.f32 0.0, %v2309
          %2311 = vmatmul.bf16.gmra.mxu0 %v2157
          %v2312 = vpop.f32.mrf.mxu0
          %v2313 = vadd.f32 0.0, %v2312
          %v2314 = vpop.f32.mrf.mxu0
          %v2315 = vadd.f32 0.0, %v2314
          %2316 = vmatmul.bf16.gmra.mxu0 %v2159
          %v2317 = vpop.f32.mrf.mxu0
          %v2318 = vadd.f32 0.0, %v2317
          %v2319 = vpop.f32.mrf.mxu0
          %v2320 = vadd.f32 0.0, %v2319
          %2321 = vmatmul.bf16.gmra.mxu0 %v2161
          %v2322 = vpop.f32.mrf.mxu0
          %v2323 = vadd.f32 0.0, %v2322
          %v2324 = vpop.f32.mrf.mxu0
          %v2325 = vadd.f32 0.0, %v2324
          %2326 = vmatmul.bf16.gmra.mxu0 %v2163
          %v2327 = vpop.f32.mrf.mxu0
          %v2328 = vadd.f32 0.0, %v2327
          %v2329 = vpop.f32.mrf.mxu0
          %v2330 = vadd.f32 0.0, %v2329
          %2331 = vmatmul.bf16.gmra.mxu0 %v2165
          %v2332 = vpop.f32.mrf.mxu0
          %v2333 = vadd.f32 0.0, %v2332
          %v2334 = vpop.f32.mrf.mxu0
          %v2335 = vadd.f32 0.0, %v2334
          %2336 = vmatmul.bf16.gmra.mxu0 %v2167
          %v2337 = vpop.f32.mrf.mxu0
          %v2338 = vadd.f32 0.0, %v2337
          %v2339 = vpop.f32.mrf.mxu0
          %v2340 = vadd.f32 0.0, %v2339
          %2341 = vmatmul.bf16.gmra.mxu0 %v2169
          %v2342 = vpop.f32.mrf.mxu0
          %v2343 = vadd.f32 0.0, %v2342
          %v2344 = vpop.f32.mrf.mxu0
          %v2345 = vadd.f32 0.0, %v2344
          %2346 = vmatmul.bf16.gmra.mxu0 %v2171
          %v2347 = vpop.f32.mrf.mxu0
          %v2348 = vadd.f32 0.0, %v2347
          %v2349 = vpop.f32.mrf.mxu0
          %v2350 = vadd.f32 0.0, %v2349
          %2351 = vmatmul.bf16.gmra.mxu0 %v2173
          %v2352 = vpop.f32.mrf.mxu0
          %v2353 = vadd.f32 0.0, %v2352
          %v2354 = vpop.f32.mrf.mxu0
          %v2355 = vadd.f32 0.0, %v2354
          %2356 = vmatmul.bf16.gmra.mxu0 %v2175
          %v2357 = vpop.f32.mrf.mxu0
          %v2358 = vadd.f32 0.0, %v2357
          %v2359 = vpop.f32.mrf.mxu0
          %v2360 = vadd.f32 0.0, %v2359
          %2361 = vmatmul.bf16.gmra.mxu0 %v2177
          %v2362 = vpop.f32.mrf.mxu0
          %v2363 = vadd.f32 0.0, %v2362
          %v2364 = vpop.f32.mrf.mxu0
          %v2365 = vadd.f32 0.0, %v2364
          %2366 = vmatmul.bf16.gmra.mxu0 %v2179
          %v2367 = vpop.f32.mrf.mxu0
          %v2368 = vadd.f32 0.0, %v2367
          %v2369 = vpop.f32.mrf.mxu0
          %v2370 = vadd.f32 0.0, %v2369
          %2371 = vmatmul.bf16.gmra.mxu0 %v2181
          %v2372 = vpop.f32.mrf.mxu0
          %v2373 = vadd.f32 0.0, %v2372
          %v2374 = vpop.f32.mrf.mxu0
          %v2375 = vadd.f32 0.0, %v2374
          %2376 = vmatmul.bf16.gmra.mxu0 %v2183
          %v2377 = vpop.f32.mrf.mxu0
          %v2378 = vadd.f32 0.0, %v2377
          %v2379 = vpop.f32.mrf.mxu0
          %v2380 = vadd.f32 0.0, %v2379
          %2381 = vmatmul.bf16.gmra.mxu0 %v2185
          %v2382 = vpop.f32.mrf.mxu0
          %v2383 = vadd.f32 0.0, %v2382
          %v2384 = vpop.f32.mrf.mxu0
          %v2385 = vadd.f32 0.0, %v2384
          %2386 = vmatmul.bf16.gmra.mxu0 %v2187
          %v2387 = vpop.f32.mrf.mxu0
          %v2388 = vadd.f32 0.0, %v2387
          %v2389 = vpop.f32.mrf.mxu0
          %v2390 = vadd.f32 0.0, %v2389
          %2391 = vmatmul.bf16.gmra.mxu0 %v2189
          %v2392 = vpop.f32.mrf.mxu0
          %v2393 = vadd.f32 0.0, %v2392
          %v2394 = vpop.f32.mrf.mxu0
          %v2395 = vadd.f32 0.0, %v2394
          %2396 = vmatmul.bf16.gmra.mxu0 %v2191
          %v2397 = vpop.f32.mrf.mxu0
          %v2398 = vadd.f32 0.0, %v2397
          %v2399 = vpop.f32.mrf.mxu0
          %v2400 = vadd.f32 0.0, %v2399
          %2401 = vmatmul.bf16.gmra.mxu0 %v2193
          %v2402 = vpop.f32.mrf.mxu0
          %v2403 = vadd.f32 0.0, %v2402
          %v2404 = vpop.f32.mrf.mxu0
          %v2405 = vadd.f32 0.0, %v2404
          %2406 = vmatmul.bf16.gmra.mxu0 %v2195
          %v2407 = vpop.f32.mrf.mxu0
          %v2408 = vadd.f32 0.0, %v2407
          %v2409 = vpop.f32.mrf.mxu0
          %v2410 = vadd.f32 0.0, %v2409
          %2411 = vmatmul.bf16.gmra.mxu0 %v2197
          %v2412 = vpop.f32.mrf.mxu0
          %v2413 = vadd.f32 0.0, %v2412
          %v2414 = vpop.f32.mrf.mxu0
          %v2415 = vadd.f32 0.0, %v2414
          %2416 = vmatmul.bf16.gmra.mxu0 %v2199
          %v2417 = vpop.f32.mrf.mxu0
          %v2418 = vadd.f32 0.0, %v2417
          %v2419 = vpop.f32.mrf.mxu0
          %v2420 = vadd.f32 0.0, %v2419
          %2421 = vmatmul.bf16.gmra.mxu0 %v2201
          %v2422 = vpop.f32.mrf.mxu0
          %v2423 = vadd.f32 0.0, %v2422
          %v2424 = vpop.f32.mrf.mxu0
          %v2425 = vadd.f32 0.0, %v2424
          %2426 = vmatmul.bf16.gmra.mxu0 %v2203
          %v2427 = vpop.f32.mrf.mxu0
          %v2428 = vadd.f32 0.0, %v2427
          %v2429 = vpop.f32.mrf.mxu0
          %v2430 = vadd.f32 0.0, %v2429
          %2431 = vmatmul.bf16.gmra.mxu0 %v2205
          %v2432 = vpop.f32.mrf.mxu0
          %v2433 = vadd.f32 0.0, %v2432
          %v2434 = vpop.f32.mrf.mxu0
          %v2435 = vadd.f32 0.0, %v2434
          %2436 = vmatmul.bf16.gmra.mxu0 %v2207
          %v2437 = vpop.f32.mrf.mxu0
          %v2438 = vadd.f32 0.0, %v2437
          %v2439 = vpop.f32.mrf.mxu0
          %v2440 = vadd.f32 0.0, %v2439
          %2441 = vdwg.mxu0
          %2442 = vmatpush.bf16.msra.mxu0 %v1888
          %2443 = vmatpush.bf16.msra.mxu0 %v1887
          %2444 = vmatpush.bf16.msra.mxu0 %v1886
          %2445 = vmatpush.bf16.msra.mxu0 %v1885
          %2446 = vmatpush.bf16.msra.mxu0 %v1884
          %2447 = vmatpush.bf16.msra.mxu0 %v1883
          %2448 = vmatpush.bf16.msra.mxu0 %v1882
          %2449 = vmatpush.bf16.msra.mxu0 %v1881
          %2450 = vmatmul.bf16.gmra.mxu0 %v2146
          %v2451 = vpop.f32.mrf.mxu0
          %v2452 = vadd.f32 %v2283, %v2451
          %v2453 = vpop.f32.mrf.mxu0
          %v2454 = vadd.f32 %v2285, %v2453
          %2455 = vmatmul.bf16.gmra.mxu0 %v2148
          %v2456 = vpop.f32.mrf.mxu0
          %v2457 = vadd.f32 %v2288, %v2456
          %v2458 = vpop.f32.mrf.mxu0
          %v2459 = vadd.f32 %v2290, %v2458
          %2460 = vmatmul.bf16.gmra.mxu0 %v2150
          %v2461 = vpop.f32.mrf.mxu0
          %v2462 = vadd.f32 %v2293, %v2461
          %v2463 = vpop.f32.mrf.mxu0
          %v2464 = vadd.f32 %v2295, %v2463
          %2465 = vmatmul.bf16.gmra.mxu0 %v2152
          %v2466 = vpop.f32.mrf.mxu0
          %v2467 = vadd.f32 %v2298, %v2466
          %v2468 = vpop.f32.mrf.mxu0
          %v2469 = vadd.f32 %v2300, %v2468
          %2470 = vmatmul.bf16.gmra.mxu0 %v2154
          %v2471 = vpop.f32.mrf.mxu0
          %v2472 = vadd.f32 %v2303, %v2471
          %v2473 = vpop.f32.mrf.mxu0
          %v2474 = vadd.f32 %v2305, %v2473
          %2475 = vmatmul.bf16.gmra.mxu0 %v2156
          %v2476 = vpop.f32.mrf.mxu0
          %v2477 = vadd.f32 %v2308, %v2476
          %v2478 = vpop.f32.mrf.mxu0
          %v2479 = vadd.f32 %v2310, %v2478
          %2480 = vmatmul.bf16.gmra.mxu0 %v2158
          %v2481 = vpop.f32.mrf.mxu0
          %v2482 = vadd.f32 %v2313, %v2481
          %v2483 = vpop.f32.mrf.mxu0
          %v2484 = vadd.f32 %v2315, %v2483
          %2485 = vmatmul.bf16.gmra.mxu0 %v2160
          %v2486 = vpop.f32.mrf.mxu0
          %v2487 = vadd.f32 %v2318, %v2486
          %v2488 = vpop.f32.mrf.mxu0
          %v2489 = vadd.f32 %v2320, %v2488
          %2490 = vmatmul.bf16.gmra.mxu0 %v2162
          %v2491 = vpop.f32.mrf.mxu0
          %v2492 = vadd.f32 %v2323, %v2491
          %v2493 = vpop.f32.mrf.mxu0
          %v2494 = vadd.f32 %v2325, %v2493
          %2495 = vmatmul.bf16.gmra.mxu0 %v2164
          %v2496 = vpop.f32.mrf.mxu0
          %v2497 = vadd.f32 %v2328, %v2496
          %v2498 = vpop.f32.mrf.mxu0
          %v2499 = vadd.f32 %v2330, %v2498
          %2500 = vmatmul.bf16.gmra.mxu0 %v2166
          %v2501 = vpop.f32.mrf.mxu0
          %v2502 = vadd.f32 %v2333, %v2501
          %v2503 = vpop.f32.mrf.mxu0
          %v2504 = vadd.f32 %v2335, %v2503
          %2505 = vmatmul.bf16.gmra.mxu0 %v2168
          %v2506 = vpop.f32.mrf.mxu0
          %v2507 = vadd.f32 %v2338, %v2506
          %v2508 = vpop.f32.mrf.mxu0
          %v2509 = vadd.f32 %v2340, %v2508
          %2510 = vmatmul.bf16.gmra.mxu0 %v2170
          %v2511 = vpop.f32.mrf.mxu0
          %v2512 = vadd.f32 %v2343, %v2511
          %v2513 = vpop.f32.mrf.mxu0
          %v2514 = vadd.f32 %v2345, %v2513
          %2515 = vmatmul.bf16.gmra.mxu0 %v2172
          %v2516 = vpop.f32.mrf.mxu0
          %v2517 = vadd.f32 %v2348, %v2516
          %v2518 = vpop.f32.mrf.mxu0
          %v2519 = vadd.f32 %v2350, %v2518
          %2520 = vmatmul.bf16.gmra.mxu0 %v2174
          %v2521 = vpop.f32.mrf.mxu0
          %v2522 = vadd.f32 %v2353, %v2521
          %v2523 = vpop.f32.mrf.mxu0
          %v2524 = vadd.f32 %v2355, %v2523
          %2525 = vmatmul.bf16.gmra.mxu0 %v2176
          %v2526 = vpop.f32.mrf.mxu0
          %v2527 = vadd.f32 %v2358, %v2526
          %v2528 = vpop.f32.mrf.mxu0
          %v2529 = vadd.f32 %v2360, %v2528
          %2530 = vmatmul.bf16.gmra.mxu0 %v2178
          %v2531 = vpop.f32.mrf.mxu0
          %v2532 = vadd.f32 %v2363, %v2531
          %v2533 = vpop.f32.mrf.mxu0
          %v2534 = vadd.f32 %v2365, %v2533
          %2535 = vmatmul.bf16.gmra.mxu0 %v2180
          %v2536 = vpop.f32.mrf.mxu0
          %v2537 = vadd.f32 %v2368, %v2536
          %v2538 = vpop.f32.mrf.mxu0
          %v2539 = vadd.f32 %v2370, %v2538
          %2540 = vmatmul.bf16.gmra.mxu0 %v2182
          %v2541 = vpop.f32.mrf.mxu0
          %v2542 = vadd.f32 %v2373, %v2541
          %v2543 = vpop.f32.mrf.mxu0
          %v2544 = vadd.f32 %v2375, %v2543
          %2545 = vmatmul.bf16.gmra.mxu0 %v2184
          %v2546 = vpop.f32.mrf.mxu0
          %v2547 = vadd.f32 %v2378, %v2546
          %v2548 = vpop.f32.mrf.mxu0
          %v2549 = vadd.f32 %v2380, %v2548
          %2550 = vmatmul.bf16.gmra.mxu0 %v2186
          %v2551 = vpop.f32.mrf.mxu0
          %v2552 = vadd.f32 %v2383, %v2551
          %v2553 = vpop.f32.mrf.mxu0
          %v2554 = vadd.f32 %v2385, %v2553
          %2555 = vmatmul.bf16.gmra.mxu0 %v2188
          %v2556 = vpop.f32.mrf.mxu0
          %v2557 = vadd.f32 %v2388, %v2556
          %v2558 = vpop.f32.mrf.mxu0
          %v2559 = vadd.f32 %v2390, %v2558
          %2560 = vmatmul.bf16.gmra.mxu0 %v2190
          %v2561 = vpop.f32.mrf.mxu0
          %v2562 = vadd.f32 %v2393, %v2561
          %v2563 = vpop.f32.mrf.mxu0
          %v2564 = vadd.f32 %v2395, %v2563
          %2565 = vmatmul.bf16.gmra.mxu0 %v2192
          %v2566 = vpop.f32.mrf.mxu0
          %v2567 = vadd.f32 %v2398, %v2566
          %v2568 = vpop.f32.mrf.mxu0
          %v2569 = vadd.f32 %v2400, %v2568
          %2570 = vmatmul.bf16.gmra.mxu0 %v2194
          %v2571 = vpop.f32.mrf.mxu0
          %v2572 = vadd.f32 %v2403, %v2571
          %v2573 = vpop.f32.mrf.mxu0
          %v2574 = vadd.f32 %v2405, %v2573
          %2575 = vmatmul.bf16.gmra.mxu0 %v2196
          %v2576 = vpop.f32.mrf.mxu0
          %v2577 = vadd.f32 %v2408, %v2576
          %v2578 = vpop.f32.mrf.mxu0
          %v2579 = vadd.f32 %v2410, %v2578
          %2580 = vmatmul.bf16.gmra.mxu0 %v2198
          %v2581 = vpop.f32.mrf.mxu0
          %v2582 = vadd.f32 %v2413, %v2581
          %v2583 = vpop.f32.mrf.mxu0
          %v2584 = vadd.f32 %v2415, %v2583
          %2585 = vmatmul.bf16.gmra.mxu0 %v2200
          %v2586 = vpop.f32.mrf.mxu0
          %v2587 = vadd.f32 %v2418, %v2586
          %v2588 = vpop.f32.mrf.mxu0
          %v2589 = vadd.f32 %v2420, %v2588
          %2590 = vmatmul.bf16.gmra.mxu0 %v2202
          %v2591 = vpop.f32.mrf.mxu0
          %v2592 = vadd.f32 %v2423, %v2591
          %v2593 = vpop.f32.mrf.mxu0
          %v2594 = vadd.f32 %v2425, %v2593
          %2595 = vmatmul.bf16.gmra.mxu0 %v2204
          %v2596 = vpop.f32.mrf.mxu0
          %v2597 = vadd.f32 %v2428, %v2596
          %v2598 = vpop.f32.mrf.mxu0
          %v2599 = vadd.f32 %v2430, %v2598
          %2600 = vmatmul.bf16.gmra.mxu0 %v2206
          %v2601 = vpop.f32.mrf.mxu0
          %v2602 = vadd.f32 %v2433, %v2601
          %v2603 = vpop.f32.mrf.mxu0
          %v2604 = vadd.f32 %v2435, %v2603
          %2605 = vmatmul.bf16.gmra.mxu0 %v2208
          %v2606 = vpop.f32.mrf.mxu0
          %v2607 = vadd.f32 %v2438, %v2606
          %v2608 = vpop.f32.mrf.mxu0
          %v2609 = vadd.f32 %v2440, %v2608
          %2610 = vdwg.mxu0
          %v2611 = vadd.f32 %v1528, %v2452
          %v2612 = vadd.f32 %v1529, %v2454
          %v2613 = vadd.f32 %v1530, %v2457
          %v2614 = vadd.f32 %v1531, %v2459
          %v2615 = vadd.f32 %v1532, %v2462
          %v2616 = vadd.f32 %v1533, %v2464
          %v2617 = vadd.f32 %v1534, %v2467
          %v2618 = vadd.f32 %v1535, %v2469
          %v2619 = vadd.f32 %v1536, %v2472
          %v2620 = vadd.f32 %v1537, %v2474
          %v2621 = vadd.f32 %v1538, %v2477
          %v2622 = vadd.f32 %v1539, %v2479
          %v2623 = vadd.f32 %v1540, %v2482
          %v2624 = vadd.f32 %v1541, %v2484
          %v2625 = vadd.f32 %v1542, %v2487
          %v2626 = vadd.f32 %v1543, %v2489
          %v2627 = vadd.f32 %v1544, %v2492
          %v2628 = vadd.f32 %v1545, %v2494
          %v2629 = vadd.f32 %v1546, %v2497
          %v2630 = vadd.f32 %v1547, %v2499
          %v2631 = vadd.f32 %v1548, %v2502
          %v2632 = vadd.f32 %v1549, %v2504
          %v2633 = vadd.f32 %v1550, %v2507
          %v2634 = vadd.f32 %v1551, %v2509
          %v2635 = vadd.f32 %v1552, %v2512
          %v2636 = vadd.f32 %v1553, %v2514
          %v2637 = vadd.f32 %v1554, %v2517
          %v2638 = vadd.f32 %v1555, %v2519
          %v2639 = vadd.f32 %v1556, %v2522
          %v2640 = vadd.f32 %v1557, %v2524
          %v2641 = vadd.f32 %v1558, %v2527
          %v2642 = vadd.f32 %v1559, %v2529
          %v2643 = vadd.f32 %v1560, %v2532
          %v2644 = vadd.f32 %v1561, %v2534
          %v2645 = vadd.f32 %v1562, %v2537
          %v2646 = vadd.f32 %v1563, %v2539
          %v2647 = vadd.f32 %v1564, %v2542
          %v2648 = vadd.f32 %v1565, %v2544
          %v2649 = vadd.f32 %v1566, %v2547
          %v2650 = vadd.f32 %v1567, %v2549
          %v2651 = vadd.f32 %v1568, %v2552
          %v2652 = vadd.f32 %v1569, %v2554
          %v2653 = vadd.f32 %v1570, %v2557
          %v2654 = vadd.f32 %v1571, %v2559
          %v2655 = vadd.f32 %v1572, %v2562
          %v2656 = vadd.f32 %v1573, %v2564
          %v2657 = vadd.f32 %v1574, %v2567
          %v2658 = vadd.f32 %v1575, %v2569
          %v2659 = vadd.f32 %v1576, %v2572
          %v2660 = vadd.f32 %v1577, %v2574
          %v2661 = vadd.f32 %v1578, %v2577
          %v2662 = vadd.f32 %v1579, %v2579
          %v2663 = vadd.f32 %v1580, %v2582
          %v2664 = vadd.f32 %v1581, %v2584
          %v2665 = vadd.f32 %v1582, %v2587
          %v2666 = vadd.f32 %v1583, %v2589
          %v2667 = vadd.f32 %v1584, %v2592
          %v2668 = vadd.f32 %v1585, %v2594
          %v2669 = vadd.f32 %v1586, %v2597
          %v2670 = vadd.f32 %v1587, %v2599
          %v2671 = vadd.f32 %v1588, %v2602
          %v2672 = vadd.f32 %v1589, %v2604
          %v2673 = vadd.f32 %v1590, %v2607
          %v2674 = vadd.f32 %v1591, %v2609
          %2675 = vst [vmem:[#allocation2] sm:$0xff] %v2611
          %2676 = vst [vmem:[#allocation2 + $0x8] sm:$0xff] %v2612
          %2677 = vst [vmem:[#allocation2 + $0x10] sm:$0xff] %v2613
          %2678 = vst [vmem:[#allocation2 + $0x18] sm:$0xff] %v2614
          %2679 = vst [vmem:[#allocation2 + $0x20] sm:$0xff] %v2615
          %2680 = vst [vmem:[#allocation2 + $0x28] sm:$0xff] %v2616
          %2681 = vst [vmem:[#allocation2 + $0x30] sm:$0xff] %v2617
          %2682 = vst [vmem:[#allocation2 + $0x38] sm:$0xff] %v2618
          %2683 = vst [vmem:[#allocation2 + $0x40] sm:$0xff] %v2619
          %2684 = vst [vmem:[#allocation2 + $0x48] sm:$0xff] %v2620
          %2685 = vst [vmem:[#allocation2 + $0x50] sm:$0xff] %v2621
          %2686 = vst [vmem:[#allocation2 + $0x58] sm:$0xff] %v2622
          %2687 = vst [vmem:[#allocation2 + $0x60] sm:$0xff] %v2623
          %2688 = vst [vmem:[#allocation2 + $0x68] sm:$0xff] %v2624
          %2689 = vst [vmem:[#allocation2 + $0x70] sm:$0xff] %v2625
          %2690 = vst [vmem:[#allocation2 + $0x78] sm:$0xff] %v2626
          %2691 = vst [vmem:[#allocation2 + $0x80] sm:$0xff] %v2627
          %2692 = vst [vmem:[#allocation2 + $0x88] sm:$0xff] %v2628
          %2693 = vst [vmem:[#allocation2 + $0x90] sm:$0xff] %v2629
          %2694 = vst [vmem:[#allocation2 + $0x98] sm:$0xff] %v2630
          %2695 = vst [vmem:[#allocation2 + $0xa0] sm:$0xff] %v2631
          %2696 = vst [vmem:[#allocation2 + $0xa8] sm:$0xff] %v2632
          %2697 = vst [vmem:[#allocation2 + $0xb0] sm:$0xff] %v2633
          %2698 = vst [vmem:[#allocation2 + $0xb8] sm:$0xff] %v2634
          %2699 = vst [vmem:[#allocation2 + $0xc0] sm:$0xff] %v2635
          %2700 = vst [vmem:[#allocation2 + $0xc8] sm:$0xff] %v2636
          %2701 = vst [vmem:[#allocation2 + $0xd0] sm:$0xff] %v2637
          %2702 = vst [vmem:[#allocation2 + $0xd8] sm:$0xff] %v2638
          %2703 = vst [vmem:[#allocation2 + $0xe0] sm:$0xff] %v2639
          %2704 = vst [vmem:[#allocation2 + $0xe8] sm:$0xff] %v2640
          %2705 = vst [vmem:[#allocation2 + $0xf0] sm:$0xff] %v2641
          %2706 = vst [vmem:[#allocation2 + $0xf8] sm:$0xff] %v2642
          %2707 = vst [vmem:[#allocation2 + $0x100] sm:$0xff] %v2643
          %2708 = vst [vmem:[#allocation2 + $0x108] sm:$0xff] %v2644
          %2709 = vst [vmem:[#allocation2 + $0x110] sm:$0xff] %v2645
          %2710 = vst [vmem:[#allocation2 + $0x118] sm:$0xff] %v2646
          %2711 = vst [vmem:[#allocation2 + $0x120] sm:$0xff] %v2647
          %2712 = vst [vmem:[#allocation2 + $0x128] sm:$0xff] %v2648
          %2713 = vst [vmem:[#allocation2 + $0x130] sm:$0xff] %v2649
          %2714 = vst [vmem:[#allocation2 + $0x138] sm:$0xff] %v2650
          %2715 = vst [vmem:[#allocation2 + $0x140] sm:$0xff] %v2651
          %2716 = vst [vmem:[#allocation2 + $0x148] sm:$0xff] %v2652
          %2717 = vst [vmem:[#allocation2 + $0x150] sm:$0xff] %v2653
          %2718 = vst [vmem:[#allocation2 + $0x158] sm:$0xff] %v2654
          %2719 = vst [vmem:[#allocation2 + $0x160] sm:$0xff] %v2655
          %2720 = vst [vmem:[#allocation2 + $0x168] sm:$0xff] %v2656
          %2721 = vst [vmem:[#allocation2 + $0x170] sm:$0xff] %v2657
          %2722 = vst [vmem:[#allocation2 + $0x178] sm:$0xff] %v2658
          %2723 = vst [vmem:[#allocation2 + $0x180] sm:$0xff] %v2659
          %2724 = vst [vmem:[#allocation2 + $0x188] sm:$0xff] %v2660
          %2725 = vst [vmem:[#allocation2 + $0x190] sm:$0xff] %v2661
          %2726 = vst [vmem:[#allocation2 + $0x198] sm:$0xff] %v2662
          %2727 = vst [vmem:[#allocation2 + $0x1a0] sm:$0xff] %v2663
          %2728 = vst [vmem:[#allocation2 + $0x1a8] sm:$0xff] %v2664
          %2729 = vst [vmem:[#allocation2 + $0x1b0] sm:$0xff] %v2665
          %2730 = vst [vmem:[#allocation2 + $0x1b8] sm:$0xff] %v2666
          %2731 = vst [vmem:[#allocation2 + $0x1c0] sm:$0xff] %v2667
          %2732 = vst [vmem:[#allocation2 + $0x1c8] sm:$0xff] %v2668
          %2733 = vst [vmem:[#allocation2 + $0x1d0] sm:$0xff] %v2669
          %2734 = vst [vmem:[#allocation2 + $0x1d8] sm:$0xff] %v2670
          %2735 = vst [vmem:[#allocation2 + $0x1e0] sm:$0xff] %v2671
          %2736 = vst [vmem:[#allocation2 + $0x1e8] sm:$0xff] %v2672
          %2737 = vst [vmem:[#allocation2 + $0x1f0] sm:$0xff] %v2673
          %2738 = vst [vmem:[#allocation2 + $0x1f8] sm:$0xff] %v2674
        $region68: #{tpu_custom_call.1} parent=39 // pred_fallthru
          _
        %p2739 = scmp.eq.s32.totalorder %s46, 3
        // Predicated region
        $region69: #{tpu_custom_call.1} parent=39 // pred_check
          %p2740 = pneg %p2739
        $region70: #{tpu_custom_call.1} parent=39 // pred_check_branch
          %2742 = sbr.rel (%p2740) target = $region72
        $region71: #{tpu_custom_call.1} parent=39 // pred_region
          %v2743 = vld [vmem:[#allocation2] sm:$0xff]
          %v2744 = vld [vmem:[#allocation2 + $0x8] sm:$0xff]
          %v2745 = vld [vmem:[#allocation2 + $0x10] sm:$0xff]
          %v2746 = vld [vmem:[#allocation2 + $0x18] sm:$0xff]
          %v2747 = vld [vmem:[#allocation2 + $0x20] sm:$0xff]
          %v2748 = vld [vmem:[#allocation2 + $0x28] sm:$0xff]
          %v2749 = vld [vmem:[#allocation2 + $0x30] sm:$0xff]
          %v2750 = vld [vmem:[#allocation2 + $0x38] sm:$0xff]
          %v2751 = vld [vmem:[#allocation2 + $0x40] sm:$0xff]
          %v2752 = vld [vmem:[#allocation2 + $0x48] sm:$0xff]
          %v2753 = vld [vmem:[#allocation2 + $0x50] sm:$0xff]
          %v2754 = vld [vmem:[#allocation2 + $0x58] sm:$0xff]
          %v2755 = vld [vmem:[#allocation2 + $0x60] sm:$0xff]
          %v2756 = vld [vmem:[#allocation2 + $0x68] sm:$0xff]
          %v2757 = vld [vmem:[#allocation2 + $0x70] sm:$0xff]
          %v2758 = vld [vmem:[#allocation2 + $0x78] sm:$0xff]
          %v2759 = vld [vmem:[#allocation2 + $0x80] sm:$0xff]
          %v2760 = vld [vmem:[#allocation2 + $0x88] sm:$0xff]
          %v2761 = vld [vmem:[#allocation2 + $0x90] sm:$0xff]
          %v2762 = vld [vmem:[#allocation2 + $0x98] sm:$0xff]
          %v2763 = vld [vmem:[#allocation2 + $0xa0] sm:$0xff]
          %v2764 = vld [vmem:[#allocation2 + $0xa8] sm:$0xff]
          %v2765 = vld [vmem:[#allocation2 + $0xb0] sm:$0xff]
          %v2766 = vld [vmem:[#allocation2 + $0xb8] sm:$0xff]
          %v2767 = vld [vmem:[#allocation2 + $0xc0] sm:$0xff]
          %v2768 = vld [vmem:[#allocation2 + $0xc8] sm:$0xff]
          %v2769 = vld [vmem:[#allocation2 + $0xd0] sm:$0xff]
          %v2770 = vld [vmem:[#allocation2 + $0xd8] sm:$0xff]
          %v2771 = vld [vmem:[#allocation2 + $0xe0] sm:$0xff]
          %v2772 = vld [vmem:[#allocation2 + $0xe8] sm:$0xff]
          %v2773 = vld [vmem:[#allocation2 + $0xf0] sm:$0xff]
          %v2774 = vld [vmem:[#allocation2 + $0xf8] sm:$0xff]
          %v2775 = vld [vmem:[#allocation2 + $0x100] sm:$0xff]
          %v2776 = vld [vmem:[#allocation2 + $0x108] sm:$0xff]
          %v2777 = vld [vmem:[#allocation2 + $0x110] sm:$0xff]
          %v2778 = vld [vmem:[#allocation2 + $0x118] sm:$0xff]
          %v2779 = vld [vmem:[#allocation2 + $0x120] sm:$0xff]
          %v2780 = vld [vmem:[#allocation2 + $0x128] sm:$0xff]
          %v2781 = vld [vmem:[#allocation2 + $0x130] sm:$0xff]
          %v2782 = vld [vmem:[#allocation2 + $0x138] sm:$0xff]
          %v2783 = vld [vmem:[#allocation2 + $0x140] sm:$0xff]
          %v2784 = vld [vmem:[#allocation2 + $0x148] sm:$0xff]
          %v2785 = vld [vmem:[#allocation2 + $0x150] sm:$0xff]
          %v2786 = vld [vmem:[#allocation2 + $0x158] sm:$0xff]
          %v2787 = vld [vmem:[#allocation2 + $0x160] sm:$0xff]
          %v2788 = vld [vmem:[#allocation2 + $0x168] sm:$0xff]
          %v2789 = vld [vmem:[#allocation2 + $0x170] sm:$0xff]
          %v2790 = vld [vmem:[#allocation2 + $0x178] sm:$0xff]
          %v2791 = vld [vmem:[#allocation2 + $0x180] sm:$0xff]
          %v2792 = vld [vmem:[#allocation2 + $0x188] sm:$0xff]
          %v2793 = vld [vmem:[#allocation2 + $0x190] sm:$0xff]
          %v2794 = vld [vmem:[#allocation2 + $0x198] sm:$0xff]
          %v2795 = vld [vmem:[#allocation2 + $0x1a0] sm:$0xff]
          %v2796 = vld [vmem:[#allocation2 + $0x1a8] sm:$0xff]
          %v2797 = vld [vmem:[#allocation2 + $0x1b0] sm:$0xff]
          %v2798 = vld [vmem:[#allocation2 + $0x1b8] sm:$0xff]
          %v2799 = vld [vmem:[#allocation2 + $0x1c0] sm:$0xff]
          %v2800 = vld [vmem:[#allocation2 + $0x1c8] sm:$0xff]
          %v2801 = vld [vmem:[#allocation2 + $0x1d0] sm:$0xff]
          %v2802 = vld [vmem:[#allocation2 + $0x1d8] sm:$0xff]
          %v2803 = vld [vmem:[#allocation2 + $0x1e0] sm:$0xff]
          %v2804 = vld [vmem:[#allocation2 + $0x1e8] sm:$0xff]
          %v2805 = vld [vmem:[#allocation2 + $0x1f0] sm:$0xff]
          %v2806 = vld [vmem:[#allocation2 + $0x1f8] sm:$0xff]
          %v2807 = vld [vmem:[#allocation12] sm:$0x1]
          %v2809 = vperm.slane %v2807, 0
          %v2811 = vadd.f32 %v2743, %v2809
          %v2812 = vadd.f32 %v2744, %v2809
          %v2813 = vadd.f32 %v2745, %v2809
          %v2814 = vadd.f32 %v2746, %v2809
          %v2815 = vadd.f32 %v2747, %v2809
          %v2816 = vadd.f32 %v2748, %v2809
          %v2817 = vadd.f32 %v2749, %v2809
          %v2818 = vadd.f32 %v2750, %v2809
          %v2819 = vadd.f32 %v2751, %v2809
          %v2820 = vadd.f32 %v2752, %v2809
          %v2821 = vadd.f32 %v2753, %v2809
          %v2822 = vadd.f32 %v2754, %v2809
          %v2823 = vadd.f32 %v2755, %v2809
          %v2824 = vadd.f32 %v2756, %v2809
          %v2825 = vadd.f32 %v2757, %v2809
          %v2826 = vadd.f32 %v2758, %v2809
          %v2827 = vadd.f32 %v2759, %v2809
          %v2828 = vadd.f32 %v2760, %v2809
          %v2829 = vadd.f32 %v2761, %v2809
          %v2830 = vadd.f32 %v2762, %v2809
          %v2831 = vadd.f32 %v2763, %v2809
          %v2832 = vadd.f32 %v2764, %v2809
          %v2833 = vadd.f32 %v2765, %v2809
          %v2834 = vadd.f32 %v2766, %v2809
          %v2835 = vadd.f32 %v2767, %v2809
          %v2836 = vadd.f32 %v2768, %v2809
          %v2837 = vadd.f32 %v2769, %v2809
          %v2838 = vadd.f32 %v2770, %v2809
          %v2839 = vadd.f32 %v2771, %v2809
          %v2840 = vadd.f32 %v2772, %v2809
          %v2841 = vadd.f32 %v2773, %v2809
          %v2842 = vadd.f32 %v2774, %v2809
          %v2843 = vadd.f32 %v2775, %v2809
          %v2844 = vadd.f32 %v2776, %v2809
          %v2845 = vadd.f32 %v2777, %v2809
          %v2846 = vadd.f32 %v2778, %v2809
          %v2847 = vadd.f32 %v2779, %v2809
          %v2848 = vadd.f32 %v2780, %v2809
          %v2849 = vadd.f32 %v2781, %v2809
          %v2850 = vadd.f32 %v2782, %v2809
          %v2851 = vadd.f32 %v2783, %v2809
          %v2852 = vadd.f32 %v2784, %v2809
          %v2853 = vadd.f32 %v2785, %v2809
          %v2854 = vadd.f32 %v2786, %v2809
          %v2855 = vadd.f32 %v2787, %v2809
          %v2856 = vadd.f32 %v2788, %v2809
          %v2857 = vadd.f32 %v2789, %v2809
          %v2858 = vadd.f32 %v2790, %v2809
          %v2859 = vadd.f32 %v2791, %v2809
          %v2860 = vadd.f32 %v2792, %v2809
          %v2861 = vadd.f32 %v2793, %v2809
          %v2862 = vadd.f32 %v2794, %v2809
          %v2863 = vadd.f32 %v2795, %v2809
          %v2864 = vadd.f32 %v2796, %v2809
          %v2865 = vadd.f32 %v2797, %v2809
          %v2866 = vadd.f32 %v2798, %v2809
          %v2867 = vadd.f32 %v2799, %v2809
          %v2868 = vadd.f32 %v2800, %v2809
          %v2869 = vadd.f32 %v2801, %v2809
          %v2870 = vadd.f32 %v2802, %v2809
          %v2871 = vadd.f32 %v2803, %v2809
          %v2872 = vadd.f32 %v2804, %v2809
          %v2873 = vadd.f32 %v2805, %v2809
          %v2874 = vadd.f32 %v2806, %v2809
          %v2875 = vmax.f32 %v2811, 0.0
          %v2876 = vmax.f32 %v2812, 0.0
          %v2877 = vmax.f32 %v2813, 0.0
          %v2878 = vmax.f32 %v2814, 0.0
          %v2879 = vmax.f32 %v2815, 0.0
          %v2880 = vmax.f32 %v2816, 0.0
          %v2881 = vmax.f32 %v2817, 0.0
          %v2882 = vmax.f32 %v2818, 0.0
          %v2883 = vmax.f32 %v2819, 0.0
          %v2884 = vmax.f32 %v2820, 0.0
          %v2885 = vmax.f32 %v2821, 0.0
          %v2886 = vmax.f32 %v2822, 0.0
          %v2887 = vmax.f32 %v2823, 0.0
          %v2888 = vmax.f32 %v2824, 0.0
          %v2889 = vmax.f32 %v2825, 0.0
          %v2890 = vmax.f32 %v2826, 0.0
          %v2891 = vmax.f32 %v2827, 0.0
          %v2892 = vmax.f32 %v2828, 0.0
          %v2893 = vmax.f32 %v2829, 0.0
          %v2894 = vmax.f32 %v2830, 0.0
          %v2895 = vmax.f32 %v2831, 0.0
          %v2896 = vmax.f32 %v2832, 0.0
          %v2897 = vmax.f32 %v2833, 0.0
          %v2898 = vmax.f32 %v2834, 0.0
          %v2899 = vmax.f32 %v2835, 0.0
          %v2900 = vmax.f32 %v2836, 0.0
          %v2901 = vmax.f32 %v2837, 0.0
          %v2902 = vmax.f32 %v2838, 0.0
          %v2903 = vmax.f32 %v2839, 0.0
          %v2904 = vmax.f32 %v2840, 0.0
          %v2905 = vmax.f32 %v2841, 0.0
          %v2906 = vmax.f32 %v2842, 0.0
          %v2907 = vmax.f32 %v2843, 0.0
          %v2908 = vmax.f32 %v2844, 0.0
          %v2909 = vmax.f32 %v2845, 0.0
          %v2910 = vmax.f32 %v2846, 0.0
          %v2911 = vmax.f32 %v2847, 0.0
          %v2912 = vmax.f32 %v2848, 0.0
          %v2913 = vmax.f32 %v2849, 0.0
          %v2914 = vmax.f32 %v2850, 0.0
          %v2915 = vmax.f32 %v2851, 0.0
          %v2916 = vmax.f32 %v2852, 0.0
          %v2917 = vmax.f32 %v2853, 0.0
          %v2918 = vmax.f32 %v2854, 0.0
          %v2919 = vmax.f32 %v2855, 0.0
          %v2920 = vmax.f32 %v2856, 0.0
          %v2921 = vmax.f32 %v2857, 0.0
          %v2922 = vmax.f32 %v2858, 0.0
          %v2923 = vmax.f32 %v2859, 0.0
          %v2924 = vmax.f32 %v2860, 0.0
          %v2925 = vmax.f32 %v2861, 0.0
          %v2926 = vmax.f32 %v2862, 0.0
          %v2927 = vmax.f32 %v2863, 0.0
          %v2928 = vmax.f32 %v2864, 0.0
          %v2929 = vmax.f32 %v2865, 0.0
          %v2930 = vmax.f32 %v2866, 0.0
          %v2931 = vmax.f32 %v2867, 0.0
          %v2932 = vmax.f32 %v2868, 0.0
          %v2933 = vmax.f32 %v2869, 0.0
          %v2934 = vmax.f32 %v2870, 0.0
          %v2935 = vmax.f32 %v2871, 0.0
          %v2936 = vmax.f32 %v2872, 0.0
          %v2937 = vmax.f32 %v2873, 0.0
          %v2938 = vmax.f32 %v2874, 0.0
          %v2939 = vpack.c.bf16 %v2876, %v2875
          %v2940 = vpack.c.bf16 %v2878, %v2877
          %v2941 = vpack.c.bf16 %v2880, %v2879
          %v2942 = vpack.c.bf16 %v2882, %v2881
          %v2943 = vpack.c.bf16 %v2884, %v2883
          %v2944 = vpack.c.bf16 %v2886, %v2885
          %v2945 = vpack.c.bf16 %v2888, %v2887
          %v2946 = vpack.c.bf16 %v2890, %v2889
          %v2947 = vpack.c.bf16 %v2892, %v2891
          %v2948 = vpack.c.bf16 %v2894, %v2893
          %v2949 = vpack.c.bf16 %v2896, %v2895
          %v2950 = vpack.c.bf16 %v2898, %v2897
          %v2951 = vpack.c.bf16 %v2900, %v2899
          %v2952 = vpack.c.bf16 %v2902, %v2901
          %v2953 = vpack.c.bf16 %v2904, %v2903
          %v2954 = vpack.c.bf16 %v2906, %v2905
          %v2955 = vpack.c.bf16 %v2908, %v2907
          %v2956 = vpack.c.bf16 %v2910, %v2909
          %v2957 = vpack.c.bf16 %v2912, %v2911
          %v2958 = vpack.c.bf16 %v2914, %v2913
          %v2959 = vpack.c.bf16 %v2916, %v2915
          %v2960 = vpack.c.bf16 %v2918, %v2917
          %v2961 = vpack.c.bf16 %v2920, %v2919
          %v2962 = vpack.c.bf16 %v2922, %v2921
          %v2963 = vpack.c.bf16 %v2924, %v2923
          %v2964 = vpack.c.bf16 %v2926, %v2925
          %v2965 = vpack.c.bf16 %v2928, %v2927
          %v2966 = vpack.c.bf16 %v2930, %v2929
          %v2967 = vpack.c.bf16 %v2932, %v2931
          %v2968 = vpack.c.bf16 %v2934, %v2933
          %v2969 = vpack.c.bf16 %v2936, %v2935
          %v2970 = vpack.c.bf16 %v2938, %v2937
          %v2971 = vld [vmem:[#allocation14] sm:$0xf]
          %v2972 = vld [vmem:[#allocation14 + $0x4] sm:$0xf]
          %v2973 = vld [vmem:[#allocation14 + $0x8] sm:$0xf]
          %v2974 = vld [vmem:[#allocation14 + $0xc] sm:$0xf]
          %v2975 = vld [vmem:[#allocation14 + $0x10] sm:$0xf]
          %v2976 = vld [vmem:[#allocation14 + $0x14] sm:$0xf]
          %v2977 = vld [vmem:[#allocation14 + $0x18] sm:$0xf]
          %v2978 = vld [vmem:[#allocation14 + $0x1c] sm:$0xf]
          %v2979 = vld [vmem:[#allocation14 + $0x20] sm:$0xf]
          %v2980 = vld [vmem:[#allocation14 + $0x24] sm:$0xf]
          %v2981 = vld [vmem:[#allocation14 + $0x28] sm:$0xf]
          %v2982 = vld [vmem:[#allocation14 + $0x2c] sm:$0xf]
          %v2983 = vld [vmem:[#allocation14 + $0x30] sm:$0xf]
          %v2984 = vld [vmem:[#allocation14 + $0x34] sm:$0xf]
          %v2985 = vld [vmem:[#allocation14 + $0x38] sm:$0xf]
          %v2986 = vld [vmem:[#allocation14 + $0x3c] sm:$0xf]
          %v3003 = vunpack.c.l.b16 %v2971
          %v3004 = vunpack.c.l.b16 %v2972
          %v3005 = vunpack.c.l.b16 %v2973
          %v3006 = vunpack.c.l.b16 %v2974
          %v3007 = vunpack.c.l.b16 %v2975
          %v3008 = vunpack.c.l.b16 %v2976
          %v3009 = vunpack.c.l.b16 %v2977
          %v3010 = vunpack.c.l.b16 %v2978
          %v3011 = vunpack.c.l.b16 %v2979
          %v3012 = vunpack.c.l.b16 %v2980
          %v3013 = vunpack.c.l.b16 %v2981
          %v3014 = vunpack.c.l.b16 %v2982
          %v3015 = vunpack.c.l.b16 %v2983
          %v3016 = vunpack.c.l.b16 %v2984
          %v3017 = vunpack.c.l.b16 %v2985
          %v3018 = vunpack.c.l.b16 %v2986
          %v3019 = vpack.c.b16 %v3004, %v3003
          %v3020 = vpack.c.b16 %v3006, %v3005
          %v3021 = vpack.c.b16 %v3008, %v3007
          %v3022 = vpack.c.b16 %v3010, %v3009
          %v3023 = vpack.c.b16 %v3012, %v3011
          %v3024 = vpack.c.b16 %v3014, %v3013
          %v3025 = vpack.c.b16 %v3016, %v3015
          %v3026 = vpack.c.b16 %v3018, %v3017
          %3035 = vmatpush.bf16.msra.mxu0 %v3026
          %3036 = vmatpush.bf16.msra.mxu0 %v3025
          %3037 = vmatpush.bf16.msra.mxu0 %v3024
          %3038 = vmatpush.bf16.msra.mxu0 %v3023
          %3039 = vmatpush.bf16.msra.mxu0 %v3022
          %3040 = vmatpush.bf16.msra.mxu0 %v3021
          %3041 = vmatpush.bf16.msra.mxu0 %v3020
          %3042 = vmatpush.bf16.msra.mxu0 %v3019
          %3043 = vmatmul.bf16.gmra.mxu0 %v2939
          %v3044 = vpop.f32.mrf.mxu0
          %v3045 = vadd.f32 0.0, %v3044
          %v3046 = vpop.f32.mrf.mxu0
          %v3047 = vadd.f32 0.0, %v3046
          %3048 = vmatmul.bf16.gmra.mxu0 %v2940
          %v3049 = vpop.f32.mrf.mxu0
          %v3050 = vadd.f32 0.0, %v3049
          %v3051 = vpop.f32.mrf.mxu0
          %v3052 = vadd.f32 0.0, %v3051
          %3053 = vmatmul.bf16.gmra.mxu0 %v2941
          %v3054 = vpop.f32.mrf.mxu0
          %v3055 = vadd.f32 0.0, %v3054
          %v3056 = vpop.f32.mrf.mxu0
          %v3057 = vadd.f32 0.0, %v3056
          %3058 = vmatmul.bf16.gmra.mxu0 %v2942
          %v3059 = vpop.f32.mrf.mxu0
          %v3060 = vadd.f32 0.0, %v3059
          %v3061 = vpop.f32.mrf.mxu0
          %v3062 = vadd.f32 0.0, %v3061
          %3063 = vmatmul.bf16.gmra.mxu0 %v2943
          %v3064 = vpop.f32.mrf.mxu0
          %v3065 = vadd.f32 0.0, %v3064
          %v3066 = vpop.f32.mrf.mxu0
          %v3067 = vadd.f32 0.0, %v3066
          %3068 = vmatmul.bf16.gmra.mxu0 %v2944
          %v3069 = vpop.f32.mrf.mxu0
          %v3070 = vadd.f32 0.0, %v3069
          %v3071 = vpop.f32.mrf.mxu0
          %v3072 = vadd.f32 0.0, %v3071
          %3073 = vmatmul.bf16.gmra.mxu0 %v2945
          %v3074 = vpop.f32.mrf.mxu0
          %v3075 = vadd.f32 0.0, %v3074
          %v3076 = vpop.f32.mrf.mxu0
          %v3077 = vadd.f32 0.0, %v3076
          %3078 = vmatmul.bf16.gmra.mxu0 %v2946
          %v3079 = vpop.f32.mrf.mxu0
          %v3080 = vadd.f32 0.0, %v3079
          %v3081 = vpop.f32.mrf.mxu0
          %v3082 = vadd.f32 0.0, %v3081
          %3083 = vmatmul.bf16.gmra.mxu0 %v2947
          %v3084 = vpop.f32.mrf.mxu0
          %v3085 = vadd.f32 0.0, %v3084
          %v3086 = vpop.f32.mrf.mxu0
          %v3087 = vadd.f32 0.0, %v3086
          %3088 = vmatmul.bf16.gmra.mxu0 %v2948
          %v3089 = vpop.f32.mrf.mxu0
          %v3090 = vadd.f32 0.0, %v3089
          %v3091 = vpop.f32.mrf.mxu0
          %v3092 = vadd.f32 0.0, %v3091
          %3093 = vmatmul.bf16.gmra.mxu0 %v2949
          %v3094 = vpop.f32.mrf.mxu0
          %v3095 = vadd.f32 0.0, %v3094
          %v3096 = vpop.f32.mrf.mxu0
          %v3097 = vadd.f32 0.0, %v3096
          %3098 = vmatmul.bf16.gmra.mxu0 %v2950
          %v3099 = vpop.f32.mrf.mxu0
          %v3100 = vadd.f32 0.0, %v3099
          %v3101 = vpop.f32.mrf.mxu0
          %v3102 = vadd.f32 0.0, %v3101
          %3103 = vmatmul.bf16.gmra.mxu0 %v2951
          %v3104 = vpop.f32.mrf.mxu0
          %v3105 = vadd.f32 0.0, %v3104
          %v3106 = vpop.f32.mrf.mxu0
          %v3107 = vadd.f32 0.0, %v3106
          %3108 = vmatmul.bf16.gmra.mxu0 %v2952
          %v3109 = vpop.f32.mrf.mxu0
          %v3110 = vadd.f32 0.0, %v3109
          %v3111 = vpop.f32.mrf.mxu0
          %v3112 = vadd.f32 0.0, %v3111
          %3113 = vmatmul.bf16.gmra.mxu0 %v2953
          %v3114 = vpop.f32.mrf.mxu0
          %v3115 = vadd.f32 0.0, %v3114
          %v3116 = vpop.f32.mrf.mxu0
          %v3117 = vadd.f32 0.0, %v3116
          %3118 = vmatmul.bf16.gmra.mxu0 %v2954
          %v3119 = vpop.f32.mrf.mxu0
          %v3120 = vadd.f32 0.0, %v3119
          %v3121 = vpop.f32.mrf.mxu0
          %v3122 = vadd.f32 0.0, %v3121
          %3123 = vmatmul.bf16.gmra.mxu0 %v2955
          %v3124 = vpop.f32.mrf.mxu0
          %v3125 = vadd.f32 0.0, %v3124
          %v3126 = vpop.f32.mrf.mxu0
          %v3127 = vadd.f32 0.0, %v3126
          %3128 = vmatmul.bf16.gmra.mxu0 %v2956
          %v3129 = vpop.f32.mrf.mxu0
          %v3130 = vadd.f32 0.0, %v3129
          %v3131 = vpop.f32.mrf.mxu0
          %v3132 = vadd.f32 0.0, %v3131
          %3133 = vmatmul.bf16.gmra.mxu0 %v2957
          %v3134 = vpop.f32.mrf.mxu0
          %v3135 = vadd.f32 0.0, %v3134
          %v3136 = vpop.f32.mrf.mxu0
          %v3137 = vadd.f32 0.0, %v3136
          %3138 = vmatmul.bf16.gmra.mxu0 %v2958
          %v3139 = vpop.f32.mrf.mxu0
          %v3140 = vadd.f32 0.0, %v3139
          %v3141 = vpop.f32.mrf.mxu0
          %v3142 = vadd.f32 0.0, %v3141
          %3143 = vmatmul.bf16.gmra.mxu0 %v2959
          %v3144 = vpop.f32.mrf.mxu0
          %v3145 = vadd.f32 0.0, %v3144
          %v3146 = vpop.f32.mrf.mxu0
          %v3147 = vadd.f32 0.0, %v3146
          %3148 = vmatmul.bf16.gmra.mxu0 %v2960
          %v3149 = vpop.f32.mrf.mxu0
          %v3150 = vadd.f32 0.0, %v3149
          %v3151 = vpop.f32.mrf.mxu0
          %v3152 = vadd.f32 0.0, %v3151
          %3153 = vmatmul.bf16.gmra.mxu0 %v2961
          %v3154 = vpop.f32.mrf.mxu0
          %v3155 = vadd.f32 0.0, %v3154
          %v3156 = vpop.f32.mrf.mxu0
          %v3157 = vadd.f32 0.0, %v3156
          %3158 = vmatmul.bf16.gmra.mxu0 %v2962
          %v3159 = vpop.f32.mrf.mxu0
          %v3160 = vadd.f32 0.0, %v3159
          %v3161 = vpop.f32.mrf.mxu0
          %v3162 = vadd.f32 0.0, %v3161
          %3163 = vmatmul.bf16.gmra.mxu0 %v2963
          %v3164 = vpop.f32.mrf.mxu0
          %v3165 = vadd.f32 0.0, %v3164
          %v3166 = vpop.f32.mrf.mxu0
          %v3167 = vadd.f32 0.0, %v3166
          %3168 = vmatmul.bf16.gmra.mxu0 %v2964
          %v3169 = vpop.f32.mrf.mxu0
          %v3170 = vadd.f32 0.0, %v3169
          %v3171 = vpop.f32.mrf.mxu0
          %v3172 = vadd.f32 0.0, %v3171
          %3173 = vmatmul.bf16.gmra.mxu0 %v2965
          %v3174 = vpop.f32.mrf.mxu0
          %v3175 = vadd.f32 0.0, %v3174
          %v3176 = vpop.f32.mrf.mxu0
          %v3177 = vadd.f32 0.0, %v3176
          %3178 = vmatmul.bf16.gmra.mxu0 %v2966
          %v3179 = vpop.f32.mrf.mxu0
          %v3180 = vadd.f32 0.0, %v3179
          %v3181 = vpop.f32.mrf.mxu0
          %v3182 = vadd.f32 0.0, %v3181
          %3183 = vmatmul.bf16.gmra.mxu0 %v2967
          %v3184 = vpop.f32.mrf.mxu0
          %v3185 = vadd.f32 0.0, %v3184
          %v3186 = vpop.f32.mrf.mxu0
          %v3187 = vadd.f32 0.0, %v3186
          %3188 = vmatmul.bf16.gmra.mxu0 %v2968
          %v3189 = vpop.f32.mrf.mxu0
          %v3190 = vadd.f32 0.0, %v3189
          %v3191 = vpop.f32.mrf.mxu0
          %v3192 = vadd.f32 0.0, %v3191
          %3193 = vmatmul.bf16.gmra.mxu0 %v2969
          %v3194 = vpop.f32.mrf.mxu0
          %v3195 = vadd.f32 0.0, %v3194
          %v3196 = vpop.f32.mrf.mxu0
          %v3197 = vadd.f32 0.0, %v3196
          %3198 = vmatmul.bf16.gmra.mxu0 %v2970
          %v3199 = vpop.f32.mrf.mxu0
          %v3200 = vadd.f32 0.0, %v3199
          %v3201 = vpop.f32.mrf.mxu0
          %v3202 = vadd.f32 0.0, %v3201
          %3203 = vdwg.mxu0
          %v3204 = vpack.c.bf16 %v3045, %v3045
          %v3205 = vpack.c.bf16 %v3047, %v3047
          %v3206 = vpack.c.bf16 %v3050, %v3050
          %v3207 = vpack.c.bf16 %v3052, %v3052
          %v3208 = vpack.c.bf16 %v3055, %v3055
          %v3209 = vpack.c.bf16 %v3057, %v3057
          %v3210 = vpack.c.bf16 %v3060, %v3060
          %v3211 = vpack.c.bf16 %v3062, %v3062
          %v3212 = vpack.c.bf16 %v3065, %v3065
          %v3213 = vpack.c.bf16 %v3067, %v3067
          %v3214 = vpack.c.bf16 %v3070, %v3070
          %v3215 = vpack.c.bf16 %v3072, %v3072
          %v3216 = vpack.c.bf16 %v3075, %v3075
          %v3217 = vpack.c.bf16 %v3077, %v3077
          %v3218 = vpack.c.bf16 %v3080, %v3080
          %v3219 = vpack.c.bf16 %v3082, %v3082
          %v3220 = vpack.c.bf16 %v3085, %v3085
          %v3221 = vpack.c.bf16 %v3087, %v3087
          %v3222 = vpack.c.bf16 %v3090, %v3090
          %v3223 = vpack.c.bf16 %v3092, %v3092
          %v3224 = vpack.c.bf16 %v3095, %v3095
          %v3225 = vpack.c.bf16 %v3097, %v3097
          %v3226 = vpack.c.bf16 %v3100, %v3100
          %v3227 = vpack.c.bf16 %v3102, %v3102
          %v3228 = vpack.c.bf16 %v3105, %v3105
          %v3229 = vpack.c.bf16 %v3107, %v3107
          %v3230 = vpack.c.bf16 %v3110, %v3110
          %v3231 = vpack.c.bf16 %v3112, %v3112
          %v3232 = vpack.c.bf16 %v3115, %v3115
          %v3233 = vpack.c.bf16 %v3117, %v3117
          %v3234 = vpack.c.bf16 %v3120, %v3120
          %v3235 = vpack.c.bf16 %v3122, %v3122
          %v3236 = vpack.c.bf16 %v3125, %v3125
          %v3237 = vpack.c.bf16 %v3127, %v3127
          %v3238 = vpack.c.bf16 %v3130, %v3130
          %v3239 = vpack.c.bf16 %v3132, %v3132
          %v3240 = vpack.c.bf16 %v3135, %v3135
          %v3241 = vpack.c.bf16 %v3137, %v3137
          %v3242 = vpack.c.bf16 %v3140, %v3140
          %v3243 = vpack.c.bf16 %v3142, %v3142
          %v3244 = vpack.c.bf16 %v3145, %v3145
          %v3245 = vpack.c.bf16 %v3147, %v3147
          %v3246 = vpack.c.bf16 %v3150, %v3150
          %v3247 = vpack.c.bf16 %v3152, %v3152
          %v3248 = vpack.c.bf16 %v3155, %v3155
          %v3249 = vpack.c.bf16 %v3157, %v3157
          %v3250 = vpack.c.bf16 %v3160, %v3160
          %v3251 = vpack.c.bf16 %v3162, %v3162
          %v3252 = vpack.c.bf16 %v3165, %v3165
          %v3253 = vpack.c.bf16 %v3167, %v3167
          %v3254 = vpack.c.bf16 %v3170, %v3170
          %v3255 = vpack.c.bf16 %v3172, %v3172
          %v3256 = vpack.c.bf16 %v3175, %v3175
          %v3257 = vpack.c.bf16 %v3177, %v3177
          %v3258 = vpack.c.bf16 %v3180, %v3180
          %v3259 = vpack.c.bf16 %v3182, %v3182
          %v3260 = vpack.c.bf16 %v3185, %v3185
          %v3261 = vpack.c.bf16 %v3187, %v3187
          %v3262 = vpack.c.bf16 %v3190, %v3190
          %v3263 = vpack.c.bf16 %v3192, %v3192
          %v3264 = vpack.c.bf16 %v3195, %v3195
          %v3265 = vpack.c.bf16 %v3197, %v3197
          %v3266 = vpack.c.bf16 %v3200, %v3200
          %v3267 = vpack.c.bf16 %v3202, %v3202
          %3268 = vst [vmem:[%s413] sm:$0xf] %v3204
          %3269 = vst [vmem:[%s413 + $0x4] sm:$0xf] %v3205
          %3270 = vst [vmem:[%s413 + $0x8] sm:$0xf] %v3206
          %3271 = vst [vmem:[%s413 + $0xc] sm:$0xf] %v3207
          %3272 = vst [vmem:[%s413 + $0x10] sm:$0xf] %v3208
          %3273 = vst [vmem:[%s413 + $0x14] sm:$0xf] %v3209
          %3274 = vst [vmem:[%s413 + $0x18] sm:$0xf] %v3210
          %3275 = vst [vmem:[%s413 + $0x1c] sm:$0xf] %v3211
          %3276 = vst [vmem:[%s413 + $0x20] sm:$0xf] %v3212
          %3277 = vst [vmem:[%s413 + $0x24] sm:$0xf] %v3213
          %3278 = vst [vmem:[%s413 + $0x28] sm:$0xf] %v3214
          %3279 = vst [vmem:[%s413 + $0x2c] sm:$0xf] %v3215
          %3280 = vst [vmem:[%s413 + $0x30] sm:$0xf] %v3216
          %3281 = vst [vmem:[%s413 + $0x34] sm:$0xf] %v3217
          %3282 = vst [vmem:[%s413 + $0x38] sm:$0xf] %v3218
          %3283 = vst [vmem:[%s413 + $0x3c] sm:$0xf] %v3219
          %3284 = vst [vmem:[%s413 + $0x40] sm:$0xf] %v3220
          %3285 = vst [vmem:[%s413 + $0x44] sm:$0xf] %v3221
          %3286 = vst [vmem:[%s413 + $0x48] sm:$0xf] %v3222
          %3287 = vst [vmem:[%s413 + $0x4c] sm:$0xf] %v3223
          %3288 = vst [vmem:[%s413 + $0x50] sm:$0xf] %v3224
          %3289 = vst [vmem:[%s413 + $0x54] sm:$0xf] %v3225
          %3290 = vst [vmem:[%s413 + $0x58] sm:$0xf] %v3226
          %3291 = vst [vmem:[%s413 + $0x5c] sm:$0xf] %v3227
          %3292 = vst [vmem:[%s413 + $0x60] sm:$0xf] %v3228
          %3293 = vst [vmem:[%s413 + $0x64] sm:$0xf] %v3229
          %3294 = vst [vmem:[%s413 + $0x68] sm:$0xf] %v3230
          %3295 = vst [vmem:[%s413 + $0x6c] sm:$0xf] %v3231
          %3296 = vst [vmem:[%s413 + $0x70] sm:$0xf] %v3232
          %3297 = vst [vmem:[%s413 + $0x74] sm:$0xf] %v3233
          %3298 = vst [vmem:[%s413 + $0x78] sm:$0xf] %v3234
          %3299 = vst [vmem:[%s413 + $0x7c] sm:$0xf] %v3235
          %3300 = vst [vmem:[%s413 + $0x80] sm:$0xf] %v3236
          %3301 = vst [vmem:[%s413 + $0x84] sm:$0xf] %v3237
          %3302 = vst [vmem:[%s413 + $0x88] sm:$0xf] %v3238
          %3303 = vst [vmem:[%s413 + $0x8c] sm:$0xf] %v3239
          %3304 = vst [vmem:[%s413 + $0x90] sm:$0xf] %v3240
          %3305 = vst [vmem:[%s413 + $0x94] sm:$0xf] %v3241
          %3306 = vst [vmem:[%s413 + $0x98] sm:$0xf] %v3242
          %3307 = vst [vmem:[%s413 + $0x9c] sm:$0xf] %v3243
          %3308 = vst [vmem:[%s413 + $0xa0] sm:$0xf] %v3244
          %3309 = vst [vmem:[%s413 + $0xa4] sm:$0xf] %v3245
          %3310 = vst [vmem:[%s413 + $0xa8] sm:$0xf] %v3246
          %3311 = vst [vmem:[%s413 + $0xac] sm:$0xf] %v3247
          %3312 = vst [vmem:[%s413 + $0xb0] sm:$0xf] %v3248
          %3313 = vst [vmem:[%s413 + $0xb4] sm:$0xf] %v3249
          %3314 = vst [vmem:[%s413 + $0xb8] sm:$0xf] %v3250
          %3315 = vst [vmem:[%s413 + $0xbc] sm:$0xf] %v3251
          %3316 = vst [vmem:[%s413 + $0xc0] sm:$0xf] %v3252
          %3317 = vst [vmem:[%s413 + $0xc4] sm:$0xf] %v3253
          %3318 = vst [vmem:[%s413 + $0xc8] sm:$0xf] %v3254
          %3319 = vst [vmem:[%s413 + $0xcc] sm:$0xf] %v3255
          %3320 = vst [vmem:[%s413 + $0xd0] sm:$0xf] %v3256
          %3321 = vst [vmem:[%s413 + $0xd4] sm:$0xf] %v3257
          %3322 = vst [vmem:[%s413 + $0xd8] sm:$0xf] %v3258
          %3323 = vst [vmem:[%s413 + $0xdc] sm:$0xf] %v3259
          %3324 = vst [vmem:[%s413 + $0xe0] sm:$0xf] %v3260
          %3325 = vst [vmem:[%s413 + $0xe4] sm:$0xf] %v3261
          %3326 = vst [vmem:[%s413 + $0xe8] sm:$0xf] %v3262
          %3327 = vst [vmem:[%s413 + $0xec] sm:$0xf] %v3263
          %3328 = vst [vmem:[%s413 + $0xf0] sm:$0xf] %v3264
          %3329 = vst [vmem:[%s413 + $0xf4] sm:$0xf] %v3265
          %3330 = vst [vmem:[%s413 + $0xf8] sm:$0xf] %v3266
          %3331 = vst [vmem:[%s413 + $0xfc] sm:$0xf] %v3267
        $region72: #{tpu_custom_call.1} parent=39 // pred_fallthru
          _
        %s3332 = sand.u32 %s210, 1
        %s3333 = scalar_lea.sflag [#allocation8], %s3332
        %s3334 = sand.u32 %s210, 1
        %s3335 = smul.addr %s3334, 256
        %s3336 = scalar_lea.vmem [#allocation15], %s3335
        // Predicated region
        $region73: #{tpu_custom_call.1} parent=39 // pred_check
          %p3337 = pneg %p220
        $region74: #{tpu_custom_call.1} parent=39 // pred_check_branch
          %3339 = sbr.rel (%p3337) target = $region76
        $region75: #{tpu_custom_call.1} parent=39 // pred_region
          %s3340 = smul.u32 64, %s45
          %3342 = vsyncadd %s3333, 0
          %s3343 = smul.addr %s3340, 4
          %s3344 = scalar_lea.hbm %s7, %s3343
          %s3345 = sshll.u32 %s3336, 4
          %s3346 = int_to_ptr.vmem [resolvable:$true] %s3345
          %s3347 = sshll.u32 %s3344, 4
          %s3348 = int_to_ptr.hbm [resolvable:$true] %s3347
          %3353 = dma.vmem_to_hbm [thread:$0]  %s3346, 4096, %s3348, %s3333, 64, 64, 4
        $region76: #{tpu_custom_call.1} parent=39 // pred_fallthru
          _
      $region40: #{tpu_custom_call.1} parent=5 // pred_fallthru
        _
      %p3354 = scmp.le.s32.totalorder 2, %s36
      // Predicated region
      $region77: #{tpu_custom_call.1} parent=5 // pred_check
        %p3355 = pneg %p3354
      $region78: #{tpu_custom_call.1} parent=5 // pred_check_branch
        %3357 = sbr.rel (%p3355) target = $region80
      $region79: #{tpu_custom_call.1} parent=5 // pred_region
        %s3358 = ssub.s32 %s36, 2
        // Predicated region
        $region81: #{tpu_custom_call.1} parent=79 // pred_check
          %p3359 = pneg %p226
        $region82: #{tpu_custom_call.1} parent=79 // pred_check_branch
          %3361 = sbr.rel (%p3359) target = $region84
        $region83: #{tpu_custom_call.1} parent=79 // pred_region
          %s3362 = sand.u32 %s211, 1
          %s3363 = scalar_lea.sflag [#allocation8], %s3362
          %s3364 = sand.u32 %s211, 1
          %s3365 = smul.addr %s3364, 256
          %s3366 = scalar_lea.vmem [#allocation15], %s3365
          %3368 = dma.done %s3363, 4096
        $region84: #{tpu_custom_call.1} parent=79 // pred_fallthru
          _
      $region80: #{tpu_custom_call.1} parent=5 // pred_fallthru
        _
    $region6: #{tpu_custom_call.1} parent=1 // loop_footer
      %s40 = sadd.s32 1, %s36
    $region7: #{tpu_custom_call.1} parent=1 // loop_footer_branch
      %35 = sbr.rel target = $region3
    $region8: #{tpu_custom_call.1} parent=1 // loop_exit
      _
    %3369 = vsyncpa [#allocation7], 1
    %s3370 = scalar_lea.sflag [#allocation7], 1
    %3371 = vsyncpa %s3370, 1
    %3372 = vsyncpa [#allocation10], 1
    %s3373 = scalar_lea.sflag [#allocation10], 1
    %3374 = vsyncpa %s3373, 1
    %3375 = vsyncpa [#allocation13], 1
    %3376 = vsyncpa [#allocation8], 1
    %s3377 = scalar_lea.sflag [#allocation8], 1
    %3378 = vsyncpa %s3377, 1

</llo_original>
